<compile_context>
chip_gen: v5e
topology: v5e:2x2
jax: 0.10.0
libtpu: 0.0.40
codegen_flags: <defaults>
</compile_context>

<pallas_src>
import functools
import math

import jax
import jax.numpy as jnp
import numpy as np
from jax import lax
from jax.experimental import pallas as pl
from jax.experimental.pallas import tpu as pltpu

# Full-precision f32 matmuls on both the reference and the kernel traces so the
# correctness check below is meaningful.
jax.config.update("jax_default_matmul_precision", "highest")


# ---------------------------------------------------------------------------
# Pallas kernel: one GAT layer
#   out = tanh( rownorm( g * exp(LeakyReLU(Wh a1 + (Wh a2)^T)) ) @ emb @ W )
# computed with flash-attention-style online accumulation over column panels.
# ---------------------------------------------------------------------------
def gat_layer_kernel(wh1_ref, wh2t_ref, g_ref, emb_ref, w_ref, out_ref,
                     acc_ref, m_ref, s_ref, sw_ref,
                     *, num_users, tile_rows, tile_cols, item_scale, alpha):
    i = pl.program_id(0)          # row tile ("parallel")
    j = pl.program_id(1)          # column panel (reduction axis, "arbitrary")

    @pl.when(j == 0)
    def _init():
        m_ref[...] = jnp.full(m_ref.shape, -jnp.inf, jnp.float32)
        s_ref[...] = jnp.zeros(s_ref.shape, jnp.float32)
        sw_ref[...] = jnp.zeros(sw_ref.shape, jnp.float32)
        acc_ref[...] = jnp.zeros(acc_ref.shape, jnp.float32)

    # attention logits for this (row tile, column panel): e = Wh a1 + (Wh a2)^T
    e = wh1_ref[...] + wh2t_ref[...]                      # (TR, TC)
    e = jnp.where(e > 0, e, alpha * e)                    # LeakyReLU

    # Online max-rescaling: mathematically a no-op after normalization (numerator
    # and both denominators carry the same exp(-m)), keeps exp() in range.
    m_prev = m_ref[...]
    m_new = jnp.maximum(m_prev, jnp.max(e, axis=1, keepdims=True))
    corr = jnp.exp(m_prev - m_new)

    p = g_ref[...] * jnp.exp(e - m_new)                   # un-normalized attention

    s_ref[...] = s_ref[...] * corr + jnp.sum(p, axis=1, keepdims=True)

    # User rows use a denominator where item columns are rescaled by
    # num_all_items / num_items; only accumulate it for row tiles with user rows.
    @pl.when(i * tile_rows < num_users)
    def _user_rows():
        col = j * tile_cols + lax.broadcasted_iota(jnp.int32, (1, tile_cols), 1)
        w_col = jnp.where(col >= num_users,
                          jnp.float32(item_scale), jnp.float32(1.0))
        sw_ref[...] = sw_ref[...] * corr + jnp.sum(p * w_col, axis=1, keepdims=True)

    # TODO(synk): cast p / emb panel to bf16 here for full-rate MXU and half the
    # g HBM traffic in production (kept f32 so the demo matches the f32 reference).
    acc_ref[...] = acc_ref[...] * corr + jnp.dot(
        p, emb_ref[...], preferred_element_type=jnp.float32)
    m_ref[...] = m_new

    @pl.when(j == pl.num_programs(1) - 1)
    def _finalize():
        row = i * tile_rows + lax.broadcasted_iota(jnp.int32, (tile_rows, 1), 0)
        att_sum = jnp.where(row < num_users, sw_ref[...], s_ref[...])
        h = acc_ref[...] * pl.reciprocal(att_sum, approx=False)   # row-normalize
        out_ref[...] = jnp.tanh(jnp.dot(h, w_ref[...],
                                        preferred_element_type=jnp.float32))


def gat_layer(wh1, wh2t, g, emb, w, *, num_users, item_scale, alpha,
              tile_rows=128, tile_cols=128, vmem_limit_bytes=32 * 1024 * 1024):
    n_pad, d_pad = emb.shape
    assert n_pad % tile_rows == 0 and n_pad % tile_cols == 0
    grid = (n_pad // tile_rows, n_pad // tile_cols)
    kernel = functools.partial(
        gat_layer_kernel, num_users=num_users, tile_rows=tile_rows,
        tile_cols=tile_cols, item_scale=float(item_scale), alpha=float(alpha))
    return pl.pallas_call(
        kernel,
        out_shape=jax.ShapeDtypeStruct((n_pad, d_pad), jnp.float32),
        grid_spec=pltpu.PrefetchScalarGridSpec(
            num_scalar_prefetch=0,
            grid=grid,
            in_specs=[
                pl.BlockSpec((tile_rows, 1), lambda i, j: (i, 0)),          # Wh a1
                pl.BlockSpec((1, tile_cols), lambda i, j: (0, j)),          # (Wh a2)^T
                pl.BlockSpec((tile_rows, tile_cols), lambda i, j: (i, j)),  # graph
                pl.BlockSpec((tile_cols, d_pad), lambda i, j: (j, 0)),      # emb panel
                pl.BlockSpec((d_pad, d_pad), lambda i, j: (0, 0)),          # W
            ],
            out_specs=pl.BlockSpec((tile_rows, d_pad), lambda i, j: (i, 0)),
            scratch_shapes=[
                pltpu.VMEM((tile_rows, d_pad), jnp.float32),   # acc of att @ emb
                pltpu.VMEM((tile_rows, 1), jnp.float32),       # running row max
                pltpu.VMEM((tile_rows, 1), jnp.float32),       # plain row sum
                pltpu.VMEM((tile_rows, 1), jnp.float32),       # item-rescaled row sum
            ]),
        compiler_params=pltpu.CompilerParams(
            dimension_semantics=("parallel", "arbitrary"),
            vmem_limit_bytes=vmem_limit_bytes),
    )(wh1, wh2t, g, emb, w)


# ---------------------------------------------------------------------------
# Forward wrapper (computer() + forward())
# ---------------------------------------------------------------------------
def _pad_to(x, rows, cols):
    return jnp.pad(x, ((0, rows - x.shape[0]), (0, cols - x.shape[1])))


@functools.partial(jax.jit, static_argnames=(
    "num_users", "n_layers", "item_scale", "alpha", "tile_rows", "tile_cols"))
def gat_forward(users, items, all_emb, g, w_stack, a1, a2, lw, *,
                num_users, n_layers, item_scale, alpha,
                tile_rows=128, tile_cols=128):
    n_total, d = all_emb.shape
    tile = math.lcm(tile_rows, tile_cols)
    n_pad = pl.cdiv(n_total, tile) * tile
    d_pad = max(128, pl.cdiv(d, 128) * 128)

    # Zero-pad to lane-dense, tileable shapes.  Padded graph rows get a 1 on the
    # diagonal so they act as isolated nodes (no zero denominator, rows stay 0).
    emb = _pad_to(all_emb, n_pad, d_pad)
    g_pad = _pad_to(g, n_pad, n_pad)
    if n_pad > n_total:
        pad_ix = jnp.arange(n_total, n_pad)
        g_pad = g_pad.at[pad_ix, pad_ix].set(1.0)
    w_pad = jnp.pad(w_stack, ((0, 0), (0, d_pad - d), (0, d_pad - d)))
    a1_pad = jnp.pad(a1, ((0, d_pad - d), (0, 0)))
    a2_pad = jnp.pad(a2, ((0, d_pad - d), (0, 0)))

    final = lw[0] * emb
    for layer in range(n_layers):
        w = w_pad[layer]
        # Attention projections: Wh a = emb @ (W @ a); the two width-1 projections
        # are fused into a single (Dp, 2) matmul.
        wa = jnp.concatenate([w @ a1_pad, w @ a2_pad], axis=1)   # (Dp, 2)
        wh = emb @ wa                                            # (Np, 2)
        wh1 = wh[:, 0:1]                                         # (Np, 1)
        wh2t = wh[:, 1:2].T                                      # (1, Np)
        emb = gat_layer(wh1, wh2t, g_pad, emb, w,
                        num_users=num_users, item_scale=item_scale, alpha=alpha,
                        tile_rows=tile_rows, tile_cols=tile_cols)
        final = final + lw[layer + 1] * emb

    # forward(): gather + per-pair inner product.  Left to XLA: it is ~batch*D
    # flops and fuses into one op; a pallas_call would only add HBM round-trips
    # and launch overhead (per perf review).
    all_users = final[:num_users]
    all_items = final[num_users:n_total]
    users_emb = jnp.take(all_users, users, axis=0)
    items_emb = jnp.take(all_items, items, axis=0)
    return jnp.sum(users_emb * items_emb, axis=1)


# ---------------------------------------------------------------------------
# Pure-JAX reference (mirrors the PyTorch math) for a correctness check.
# ---------------------------------------------------------------------------
def reference_forward(users, items, all_emb, g, w_stack, a1, a2, lw, *,
                      num_users, n_layers, item_scale, alpha):
    emb = all_emb
    embs = [emb]
    for layer in range(n_layers):
        W = w_stack[layer]
        Wh = emb @ W
        e = (Wh @ a1) + (Wh @ a2).T
        e = jnp.where(e > 0, e, alpha * e)
        e = jnp.exp(e)
        att = g * e
        uu = jnp.sum(att[:num_users, :num_users], axis=1)
        ui = jnp.sum(att[:num_users, num_users:] * item_scale, axis=1)
        si = jnp.sum(att[num_users:, :], axis=1)
        att_sum = jnp.concatenate([uu + ui, si])[:, None]
        att = att / att_sum
        emb = jnp.tanh((att @ emb) @ W)
        embs.append(emb)
    final = jnp.tensordot(jnp.stack(embs, axis=0), lw, axes=([0], [0]))
    ue = final[:num_users][users]
    ie = final[num_users:][items]
    return jnp.sum(ue * ie, axis=1)


# ---------------------------------------------------------------------------
if __name__ == "__main__":
    num_users, num_items, num_all_items = 90, 150, 200
    latent_dim, n_layers = 32, 2
    alpha = 0.2                                   # LeakyReLU slope
    item_scale = num_all_items / num_items        # num_all_items / num_items
    n_total = num_users + num_items               # 240 -> padded to 256 internally
    batch = 8

    key = jax.random.PRNGKey(0)
    k1, k2, k3, k4, k5, k6 = jax.random.split(key, 6)

    # parameters (deterministic synthetic init; values scaled for f32 stability)
    user_emb = 0.1 * jax.random.normal(k1, (num_users, latent_dim), jnp.float32)
    item_emb = 0.1 * jax.random.normal(k2, (num_items, latent_dim), jnp.float32)
    all_emb = jnp.concatenate([user_emb, item_emb], axis=0)

    w_stack = 0.1 * jax.random.normal(k3, (n_layers, latent_dim, latent_dim),
                                      jnp.float32)
    a_vec = jnp.ones((2 * latent_dim, 1), jnp.float32) / latent_dim
    a1, a2 = a_vec[:latent_dim], a_vec[latent_dim:]
    lw = jnp.ones((n_layers + 1,), jnp.float32) / (n_layers + 1)

    # dense symmetric nonnegative graph, diagonal filled with 1 (fill_diagonal_(1))
    gr = jax.random.uniform(k4, (n_total, n_total), jnp.float32)
    gr = jnp.where(gr > 0.6, gr, 0.0)
    gr = gr + gr.T
    gr = gr.at[jnp.arange(n_total), jnp.arange(n_total)].set(1.0)

    users = jax.random.randint(k5, (batch,), 0, num_users, dtype=jnp.int32)
    items = jax.random.randint(k6, (batch,), 0, num_items, dtype=jnp.int32)

    ratings = gat_forward(users, items, all_emb, gr, w_stack, a1, a2, lw,
                          num_users=num_users, n_layers=n_layers,
                          item_scale=item_scale, alpha=alpha)
    jax.block_until_ready(ratings)

    ref = reference_forward(users, items, all_emb, gr, w_stack, a1, a2, lw,
                            num_users=num_users, n_layers=n_layers,
                            item_scale=item_scale, alpha=alpha)
    np.testing.assert_allclose(np.asarray(ratings), np.asarray(ref),
                               rtol=1e-3, atol=1e-5)
    # TODO(synk): sparse-graph dropout (__dropout_x) and the missing_user_aggs /
    # phi_inv einsum path are training/federated-only and not exercised by forward().
    print("KERNEL_OK")
</pallas_src>

<mosaic_0001>
module attributes {stable_mosaic.version = 11 : i64} {
  func.func @gat_layer_kernel(%arg0: i32, %arg1: i32, %arg2: memref<128x1xf32, #tpu.memory_space<vmem>>, %arg3: memref<1x128xf32, #tpu.memory_space<vmem>>, %arg4: memref<128x128xf32, #tpu.memory_space<vmem>>, %arg5: memref<128x128xf32, #tpu.memory_space<vmem>>, %arg6: memref<128x128xf32, #tpu.memory_space<vmem>>, %arg7: memref<128x128xf32, #tpu.memory_space<vmem>>, %arg8: memref<128x128xf32, #tpu.memory_space<vmem>>, %arg9: memref<128x1xf32, #tpu.memory_space<vmem>>, %arg10: memref<128x1xf32, #tpu.memory_space<vmem>>, %arg11: memref<128x1xf32, #tpu.memory_space<vmem>>) attributes {dimension_semantics = [#tpu.dimension_semantics<parallel>, #tpu.dimension_semantics<arbitrary>], iteration_bounds = array<i64: 2, 2>, scalar_prefetch = 0 : i64, scratch_operands = 4 : i64, tpu.core_type = #tpu.core_type<tc>, window_params = [{transform_indices = @transform_0, window_bounds = array<i64: 128, 1>}, {transform_indices = @transform_1, window_bounds = array<i64: 1, 128>}, {transform_indices = @transform_2, window_bounds = array<i64: 128, 128>}, {transform_indices = @transform_3, window_bounds = array<i64: 128, 128>}, {pipeline_mode = #tpu.pipeline_mode<synchronous>, transform_indices = @transform_4, window_bounds = array<i64: 128, 128>}, {transform_indices = @transform_5, window_bounds = array<i64: 128, 128>}]} {
    %c0_i32 = arith.constant 0 : i32
    %0 = arith.cmpi eq, %arg1, %c0_i32 : i32
    %1 = arith.extui %0 : i1 to i32
    %c0_i32_0 = arith.constant 0 : i32
    %2 = arith.cmpi ne, %1, %c0_i32_0 : i32
    scf.if %2 {
      %cst_26 = arith.constant 0xFF800000 : f32
      %45 = vector.broadcast %cst_26 : f32 to vector<128x1xf32>
      %c0_27 = arith.constant 0 : index
      %c0_28 = arith.constant 0 : index
      %46 = vector.load %arg9[%c0_27, %c0_28] : memref<128x1xf32, #tpu.memory_space<vmem>>, vector<128x1xf32>
      tpu.vector_store %arg9[%c0_27, %c0_28], %45 {strides = array<i32>} : memref<128x1xf32, #tpu.memory_space<vmem>>, vector<128x1xf32>,
      %cst_29 = arith.constant 0.000000e+00 : f32
      %47 = vector.broadcast %cst_29 : f32 to vector<128x1xf32>
      %c0_30 = arith.constant 0 : index
      %c0_31 = arith.constant 0 : index
      %48 = vector.load %arg10[%c0_30, %c0_31] : memref<128x1xf32, #tpu.memory_space<vmem>>, vector<128x1xf32>
      tpu.vector_store %arg10[%c0_30, %c0_31], %47 {strides = array<i32>} : memref<128x1xf32, #tpu.memory_space<vmem>>, vector<128x1xf32>,
      %cst_32 = arith.constant 0.000000e+00 : f32
      %49 = vector.broadcast %cst_32 : f32 to vector<128x1xf32>
      %c0_33 = arith.constant 0 : index
      %c0_34 = arith.constant 0 : index
      %50 = vector.load %arg11[%c0_33, %c0_34] : memref<128x1xf32, #tpu.memory_space<vmem>>, vector<128x1xf32>
      tpu.vector_store %arg11[%c0_33, %c0_34], %49 {strides = array<i32>} : memref<128x1xf32, #tpu.memory_space<vmem>>, vector<128x1xf32>,
      %cst_35 = arith.constant 0.000000e+00 : f32
      %51 = vector.broadcast %cst_35 : f32 to vector<128x128xf32>
      %c0_36 = arith.constant 0 : index
      %c0_37 = arith.constant 0 : index
      %52 = vector.load %arg8[%c0_36, %c0_37] : memref<128x128xf32, #tpu.memory_space<vmem>>, vector<128x128xf32>
      tpu.vector_store %arg8[%c0_36, %c0_37], %51 {strides = array<i32>} : memref<128x128xf32, #tpu.memory_space<vmem>>, vector<128x128xf32>,
    } else {
    }
    %c0 = arith.constant 0 : index
    %c0_1 = arith.constant 0 : index
    %3 = vector.load %arg2[%c0, %c0_1] : memref<128x1xf32, #tpu.memory_space<vmem>>, vector<128x1xf32>
    %c0_2 = arith.constant 0 : index
    %c0_3 = arith.constant 0 : index
    %4 = vector.load %arg3[%c0_2, %c0_3] : memref<1x128xf32, #tpu.memory_space<vmem>>, vector<1x128xf32>
    %5 = vector.broadcast %3 : vector<128x1xf32> to vector<128x128xf32>
    %6 = vector.broadcast %4 : vector<1x128xf32> to vector<128x128xf32>
    %7 = arith.addf %5, %6 : vector<128x128xf32>
    %cst = arith.constant 0.000000e+00 : f32
    %8 = vector.broadcast %cst : f32 to vector<128x128xf32>
    %9 = arith.cmpf ogt, %7, %8 : vector<128x128xf32>
    %cst_4 = arith.constant 2.000000e-01 : f32
    %10 = vector.broadcast %cst_4 : f32 to vector<128x128xf32>
    %11 = arith.mulf %10, %7 : vector<128x128xf32>
    %12 = arith.select %9, %7, %11 : vector<128x128xi1>, vector<128x128xf32>
    %c0_5 = arith.constant 0 : index
    %c0_6 = arith.constant 0 : index
    %13 = vector.load %arg9[%c0_5, %c0_6] : memref<128x1xf32, #tpu.memory_space<vmem>>, vector<128x1xf32>
    %cst_7 = arith.constant dense<0xFF800000> : vector<128xf32>
    %14 = vector.multi_reduction <maximumf>, %12, %cst_7 [1] : vector<128x128xf32> to vector<128xf32>
    %15 = vector.shape_cast %14 : vector<128xf32> to vector<128x1xf32>
    %16 = arith.maximumf %13, %15 : vector<128x1xf32>
    %17 = arith.subf %13, %16 : vector<128x1xf32>
    %18 = math.exp %17 : vector<128x1xf32>
    %c0_8 = arith.constant 0 : index
    %c0_9 = arith.constant 0 : index
    %19 = vector.load %arg4[%c0_8, %c0_9] : memref<128x128xf32, #tpu.memory_space<vmem>>, vector<128x128xf32>
    %20 = vector.broadcast %16 : vector<128x1xf32> to vector<128x128xf32>
    %21 = arith.subf %12, %20 : vector<128x128xf32>
    %22 = math.exp %21 : vector<128x128xf32>
    %23 = arith.mulf %19, %22 : vector<128x128xf32>
    %c0_10 = arith.constant 0 : index
    %c0_11 = arith.constant 0 : index
    %24 = vector.load %arg10[%c0_10, %c0_11] : memref<128x1xf32, #tpu.memory_space<vmem>>, vector<128x1xf32>
    %25 = arith.mulf %24, %18 : vector<128x1xf32>
    %cst_12 = arith.constant dense<0.000000e+00> : vector<128xf32>
    %26 = vector.multi_reduction <add>, %23, %cst_12 [1] : vector<128x128xf32> to vector<128xf32>
    %27 = vector.shape_cast %26 : vector<128xf32> to vector<128x1xf32>
    %28 = arith.addf %25, %27 : vector<128x1xf32>
    %c0_13 = arith.constant 0 : index
    %c0_14 = arith.constant 0 : index
    %29 = vector.load %arg10[%c0_13, %c0_14] : memref<128x1xf32, #tpu.memory_space<vmem>>, vector<128x1xf32>
    tpu.vector_store %arg10[%c0_13, %c0_14], %28 {strides = array<i32>} : memref<128x1xf32, #tpu.memory_space<vmem>>, vector<128x1xf32>,
    %c128_i32 = arith.constant 128 : i32
    %30 = arith.muli %arg0, %c128_i32 : i32
    %c90_i32 = arith.constant 90 : i32
    %31 = arith.cmpi slt, %30, %c90_i32 : i32
    %32 = arith.extui %31 : i1 to i32
    %c0_i32_15 = arith.constant 0 : i32
    %33 = arith.cmpi ne, %32, %c0_i32_15 : i32
    scf.if %33 {
      %c128_i32_26 = arith.constant 128 : i32
      %45 = arith.muli %arg1, %c128_i32_26 : i32
      %46 = tpu.iota {dimensions = array<i32: 1>} : vector<1x128xi32>
      %47 = vector.broadcast %45 : i32 to vector<1x128xi32>
      %48 = arith.addi %47, %46 : vector<1x128xi32>
      %c90_i32_27 = arith.constant 90 : i32
      %49 = vector.broadcast %c90_i32_27 : i32 to vector<1x128xi32>
      %50 = arith.cmpi sge, %48, %49 : vector<1x128xi32>
      %cst_28 = arith.constant 1.33333337 : f32
      %cst_29 = arith.constant 1.000000e+00 : f32
      %51 = vector.broadcast %cst_28 : f32 to vector<1x128xf32>
      %52 = vector.broadcast %cst_29 : f32 to vector<1x128xf32>
      %53 = arith.select %50, %51, %52 : vector<1x128xi1>, vector<1x128xf32>
      %c0_30 = arith.constant 0 : index
      %c0_31 = arith.constant 0 : index
      %54 = vector.load %arg11[%c0_30, %c0_31] : memref<128x1xf32, #tpu.memory_space<vmem>>, vector<128x1xf32>
      %55 = arith.mulf %54, %18 : vector<128x1xf32>
      %56 = vector.broadcast %53 : vector<1x128xf32> to vector<128x128xf32>
      %57 = arith.mulf %23, %56 : vector<128x128xf32>
      %cst_32 = arith.constant dense<0.000000e+00> : vector<128xf32>
      %58 = vector.multi_reduction <add>, %57, %cst_32 [1] : vector<128x128xf32> to vector<128xf32>
      %59 = vector.shape_cast %58 : vector<128xf32> to vector<128x1xf32>
      %60 = arith.addf %55, %59 : vector<128x1xf32>
      %c0_33 = arith.constant 0 : index
      %c0_34 = arith.constant 0 : index
      %61 = vector.load %arg11[%c0_33, %c0_34] : memref<128x1xf32, #tpu.memory_space<vmem>>, vector<128x1xf32>
      tpu.vector_store %arg11[%c0_33, %c0_34], %60 {strides = array<i32>} : memref<128x1xf32, #tpu.memory_space<vmem>>, vector<128x1xf32>,
    } else {
    }
    %c0_16 = arith.constant 0 : index
    %c0_17 = arith.constant 0 : index
    %34 = vector.load %arg8[%c0_16, %c0_17] : memref<128x128xf32, #tpu.memory_space<vmem>>, vector<128x128xf32>
    %35 = vector.broadcast %18 : vector<128x1xf32> to vector<128x128xf32>
    %36 = arith.mulf %34, %35 : vector<128x128xf32>
    %c0_18 = arith.constant 0 : index
    %c0_19 = arith.constant 0 : index
    %37 = vector.load %arg5[%c0_18, %c0_19] : memref<128x128xf32, #tpu.memory_space<vmem>>, vector<128x128xf32>
    %cst_20 = arith.constant dense<0.000000e+00> : vector<128x128xf32>
    %38 = tpu.matmul %23, %37, %cst_20 {dimension_numbers = #tpu.dot_dimension_numbers<[1], [0], [0], [1], [0, 0, 1, 1], [], []>, precision = #tpu.contract_precision<fp32>} : vector<128x128xf32>, vector<128x128xf32>, vector<128x128xf32> -> vector<128x128xf32>
    %39 = arith.addf %36, %38 : vector<128x128xf32>
    %c0_21 = arith.constant 0 : index
    %c0_22 = arith.constant 0 : index
    %40 = vector.load %arg8[%c0_21, %c0_22] : memref<128x128xf32, #tpu.memory_space<vmem>>, vector<128x128xf32>
    tpu.vector_store %arg8[%c0_21, %c0_22], %39 {strides = array<i32>} : memref<128x128xf32, #tpu.memory_space<vmem>>, vector<128x128xf32>,
    %c0_23 = arith.constant 0 : index
    %c0_24 = arith.constant 0 : index
    %41 = vector.load %arg9[%c0_23, %c0_24] : memref<128x1xf32, #tpu.memory_space<vmem>>, vector<128x1xf32>
    tpu.vector_store %arg9[%c0_23, %c0_24], %16 {strides = array<i32>} : memref<128x1xf32, #tpu.memory_space<vmem>>, vector<128x1xf32>,
    %c1_i32 = arith.constant 1 : i32
    %42 = arith.cmpi eq, %arg1, %c1_i32 : i32
    %43 = arith.extui %42 : i1 to i32
    %c0_i32_25 = arith.constant 0 : i32
    %44 = arith.cmpi ne, %43, %c0_i32_25 : i32
    scf.if %44 {
      %c128_i32_26 = arith.constant 128 : i32
      %45 = arith.muli %arg0, %c128_i32_26 : i32
      %46 = tpu.iota {dimensions = array<i32: 0>} : vector<128x1xi32>
      %47 = vector.broadcast %45 : i32 to vector<128x1xi32>
      %48 = arith.addi %47, %46 : vector<128x1xi32>
      %c90_i32_27 = arith.constant 90 : i32
      %49 = vector.broadcast %c90_i32_27 : i32 to vector<128x1xi32>
      %50 = arith.cmpi slt, %48, %49 : vector<128x1xi32>
      %c0_28 = arith.constant 0 : index
      %c0_29 = arith.constant 0 : index
      %51 = vector.load %arg11[%c0_28, %c0_29] : memref<128x1xf32, #tpu.memory_space<vmem>>, vector<128x1xf32>
      %c0_30 = arith.constant 0 : index
      %c0_31 = arith.constant 0 : index
      %52 = vector.load %arg10[%c0_30, %c0_31] : memref<128x1xf32, #tpu.memory_space<vmem>>, vector<128x1xf32>
      %53 = arith.select %50, %51, %52 : vector<128x1xi1>, vector<128x1xf32>
      %c0_32 = arith.constant 0 : index
      %c0_33 = arith.constant 0 : index
      %54 = vector.load %arg8[%c0_32, %c0_33] : memref<128x128xf32, #tpu.memory_space<vmem>>, vector<128x128xf32>
      %55 = tpu.reciprocal %53 : vector<128x1xf32> -> vector<128x1xf32>
      %56 = vector.broadcast %55 : vector<128x1xf32> to vector<128x128xf32>
      %57 = arith.mulf %54, %56 : vector<128x128xf32>
      %c0_34 = arith.constant 0 : index
      %c0_35 = arith.constant 0 : index
      %58 = vector.load %arg6[%c0_34, %c0_35] : memref<128x128xf32, #tpu.memory_space<vmem>>, vector<128x128xf32>
      %cst_36 = arith.constant dense<0.000000e+00> : vector<128x128xf32>
      %59 = tpu.matmul %57, %58, %cst_36 {dimension_numbers = #tpu.dot_dimension_numbers<[1], [0], [0], [1], [0, 0, 1, 1], [], []>, precision = #tpu.contract_precision<fp32>} : vector<128x128xf32>, vector<128x128xf32>, vector<128x128xf32> -> vector<128x128xf32>
      %60 = math.tanh %59 : vector<128x128xf32>
      %c0_37 = arith.constant 0 : index
      %c0_38 = arith.constant 0 : index
      %61 = vector.load %arg7[%c0_37, %c0_38] : memref<128x128xf32, #tpu.memory_space<vmem>>, vector<128x128xf32>
      tpu.vector_store %arg7[%c0_37, %c0_38], %60 {strides = array<i32>} : memref<128x128xf32, #tpu.memory_space<vmem>>, vector<128x128xf32>,
    } else {
    }
    return
  }
  func.func @transform_0(%arg0: i32, %arg1: i32) -> (i32, i32) {
    %c0_i32 = arith.constant 0 : i32
    %c0_i32_0 = arith.constant 0 : i32
    return %arg0, %c0_i32 : i32, i32
  }
  func.func @transform_1(%arg0: i32, %arg1: i32) -> (i32, i32) {
    %c0_i32 = arith.constant 0 : i32
    %c0_i32_0 = arith.constant 0 : i32
    return %c0_i32, %arg1 : i32, i32
  }
  func.func @transform_2(%arg0: i32, %arg1: i32) -> (i32, i32) {
    %c0_i32 = arith.constant 0 : i32
    return %arg0, %arg1 : i32, i32
  }
  func.func @transform_3(%arg0: i32, %arg1: i32) -> (i32, i32) {
    %c0_i32 = arith.constant 0 : i32
    %c0_i32_0 = arith.constant 0 : i32
    return %arg1, %c0_i32 : i32, i32
  }
  func.func @transform_4(%arg0: i32, %arg1: i32) -> (i32, i32) {
    %c0_i32 = arith.constant 0 : i32
    %c0_i32_0 = arith.constant 0 : i32
    %c0_i32_1 = arith.constant 0 : i32
    return %c0_i32, %c0_i32_0 : i32, i32
  }
  func.func @transform_5(%arg0: i32, %arg1: i32) -> (i32, i32) {
    %c0_i32 = arith.constant 0 : i32
    %c0_i32_0 = arith.constant 0 : i32
    return %arg0, %c0_i32 : i32, i32
  }
}

</mosaic_0001>

<llo_original>
// kernel: gat_forward.2
$region0: #{gat_forward.2}
  #allocation0 [shape = 'u32[]', space=smem, size = 0x4, offset = 0x4, fixed_abs, tag = 'smem constant byte address 0x4 - core index']
  #allocation1 [shape = 'u32[72,128]{1,0:T(1,128)}', space=vmem, size = 0x9000, scoped, tag = 'internal scratch']
  #allocation2 [shape = 'f32[128,128]{1,0:T(8,128)}', space=vmem, size = 0x10000, scoped, tag = 'scratch operand']
  #allocation3 [shape = 'f32[128,1]{1,0:T(8,128)}', space=vmem, size = 0x10000, scoped, tag = 'scratch operand']
  #allocation4 [shape = 'f32[128,1]{1,0:T(8,128)}', space=vmem, size = 0x10000, scoped, tag = 'scratch operand']
  #allocation5 [shape = 'f32[128,1]{1,0:T(8,128)}', space=vmem, size = 0x10000, scoped, tag = 'scratch operand']
  %s0 = inlined_call_operand.vmem [shape: f32[256,1], index: 0, kind: input, shape index: {}]
  %s1 = inlined_call_operand.vmem [shape: f32[1,256], index: 1, kind: input, shape index: {}]
  %s2 = inlined_call_operand.vmem [shape: f32[256,256], index: 2, kind: input, shape index: {}]
  %s3 = inlined_call_operand.vmem [shape: f32[256,128], index: 3, kind: input, shape index: {}]
  %s4 = inlined_call_operand.vmem [shape: f32[128,128], index: 4, kind: input, shape index: {}]
  %s5 = inlined_call_operand.vmem [shape: f32[256,128], index: 5, kind: output, shape index: {}]
  %s6 = sld [smem:[#allocation0]]
  $region103: #{gat_forward.2} parent=0
    _
  %s8 = ssub.s32 1, %s6
  %s9 = scalar_select 0, %s8, %s6
  $region1: #{gat_forward.2} parent=0
    #allocation6 [shape = 'u8[131072]{0}', space=vmem, size = 0x20000, scoped, tag = 'input window, operand 2']
    loop: start=0, step=1, limit=6
    $region2: #{gat_forward.2} parent=1 // loop_pre_header
      _
    $region3: #{gat_forward.2} parent=1 // loop_header
      %s11 = sphi 0, %s15
      %p12 = scmp.ge.s32.totalorder %s11, 6
      %s18 = sphi 0, %s30
      %s19 = sphi 0, %s26
      %s20 = sphi 0, %s18
      %s21 = sphi 0, %s19
      %s22 = sphi 0, %s20
      %s23 = sphi 0, %s21
      %s33 = sphi 0, %s35
      %s36 = sphi 0, %s33
      %s37 = sphi 0, %s36
      %s53 = sphi 0, %s37
      %s59 = sphi 0, %s61
      %s62 = sphi 0, %s59
      %s63 = sphi 0, %s62
      %s79 = sphi 0, %s63
      %s87 = sphi 0, %s89
      %s90 = sphi 0, %s87
      %s91 = sphi 0, %s90
      %s107 = sphi 0, %s91
      %s113 = sphi 0, %s115
      %s116 = sphi 0, %s113
      %s117 = sphi 0, %s116
      %s133 = sphi 0, %s117
      %s137 = sphi 0, %s137
      %s139 = sphi 0, %s137
      %s140 = sphi 0, %s139
      %s154 = sphi 0, %s140
      %s160 = sphi 0, %s162
      %s163 = sphi 0, %s160
      %s164 = sphi 0, %s163
      %s180 = sphi 0, %s164
    $region4: #{gat_forward.2} parent=1 // loop_header_branch
      %14 = sbr.rel (%p12) target = $region8
    $region5: #{gat_forward.2} parent=1 // loop_body
      %s16 = ssub.s32 %s11, 1
      %s17 = ssub.s32 %s11, 2
      %s24 = sadd.s32 1, %s19
      %p25 = scmp.ge.s32.totalorder %s24, 2
      %s26 = scalar_select %p25, 0, %s24
      %s27 = sadd.s32 1, %s18
      %s28 = scalar_select %p25, %s27, %s18
      %p29 = scmp.ge.s32.totalorder %s28, 2
      %s30 = scalar_select %p29, 0, %s28
      %s31 = ssub.s32 %s18, %s30
      %p32 = scmp.eq.s32.totalorder %s31, 0
      %s34 = sadd.s32 %s33, 1
      %s35 = scalar_select %p32, %s33, %s34
      %p38 = pneg %p32
      %p39 = scmp.eq.s32.totalorder %s11, 3
      %p40 = por %p38, %p39
      %p41 = scmp.ne.s32.totalorder %s33, %s36
      %p42 = scmp.eq.s32.totalorder %s11, 0
      %p43 = por %p41, %p42
      %p44 = scmp.ne.s32.totalorder %s33, %s36
      %p45 = scmp.eq.s32.totalorder %s16, 3
      %p46 = por %p44, %p45
      %p47 = scmp.ne.s32.totalorder %s36, %s37
      %p48 = scmp.eq.s32.totalorder %s16, 0
      %p49 = por %p47, %p48
      %p50 = scmp.ne.s32.totalorder %s36, %s37
      %p51 = scmp.eq.s32.totalorder %s17, 3
      %p52 = por %p50, %p51
      %p54 = scmp.ne.s32.totalorder %s37, %s53
      %p55 = scmp.eq.s32.totalorder %s17, 0
      %p56 = por %p54, %p55
      %s57 = ssub.s32 %s19, %s26
      %p58 = scmp.eq.s32.totalorder %s57, 0
      %s60 = sadd.s32 %s59, 1
      %s61 = scalar_select %p58, %s59, %s60
      %p64 = pneg %p58
      %p65 = scmp.eq.s32.totalorder %s11, 3
      %p66 = por %p64, %p65
      %p67 = scmp.ne.s32.totalorder %s59, %s62
      %p68 = scmp.eq.s32.totalorder %s11, 0
      %p69 = por %p67, %p68
      %p70 = scmp.ne.s32.totalorder %s59, %s62
      %p71 = scmp.eq.s32.totalorder %s16, 3
      %p72 = por %p70, %p71
      %p73 = scmp.ne.s32.totalorder %s62, %s63
      %p74 = scmp.eq.s32.totalorder %s16, 0
      %p75 = por %p73, %p74
      %p76 = scmp.ne.s32.totalorder %s62, %s63
      %p77 = scmp.eq.s32.totalorder %s17, 3
      %p78 = por %p76, %p77
      %p80 = scmp.ne.s32.totalorder %s63, %s79
      %p81 = scmp.eq.s32.totalorder %s17, 0
      %p82 = por %p80, %p81
      %s83 = ssub.s32 %s18, %s30
      %s84 = ssub.s32 %s19, %s26
      %s85 = sor.u32 %s83, %s84
      %p86 = scmp.eq.s32.totalorder %s85, 0
      %s88 = sadd.s32 %s87, 1
      %s89 = scalar_select %p86, %s87, %s88
      %p92 = pneg %p86
      %p93 = scmp.eq.s32.totalorder %s11, 3
      %p94 = por %p92, %p93
      %p95 = scmp.ne.s32.totalorder %s87, %s90
      %p96 = scmp.eq.s32.totalorder %s11, 0
      %p97 = por %p95, %p96
      %p98 = scmp.ne.s32.totalorder %s87, %s90
      %p99 = scmp.eq.s32.totalorder %s16, 3
      %p100 = por %p98, %p99
      %p101 = scmp.ne.s32.totalorder %s90, %s91
      %p102 = scmp.eq.s32.totalorder %s16, 0
      %p103 = por %p101, %p102
      %p104 = scmp.ne.s32.totalorder %s90, %s91
      %p105 = scmp.eq.s32.totalorder %s17, 3
      %p106 = por %p104, %p105
      %p108 = scmp.ne.s32.totalorder %s91, %s107
      %p109 = scmp.eq.s32.totalorder %s17, 0
      %p110 = por %p108, %p109
      %s111 = ssub.s32 %s19, %s26
      %p112 = scmp.eq.s32.totalorder %s111, 0
      %s114 = sadd.s32 %s113, 1
      %s115 = scalar_select %p112, %s113, %s114
      %p118 = pneg %p112
      %p119 = scmp.eq.s32.totalorder %s11, 3
      %p120 = por %p118, %p119
      %p121 = scmp.ne.s32.totalorder %s113, %s116
      %p122 = scmp.eq.s32.totalorder %s11, 0
      %p123 = por %p121, %p122
      %p124 = scmp.ne.s32.totalorder %s113, %s116
      %p125 = scmp.eq.s32.totalorder %s16, 3
      %p126 = por %p124, %p125
      %p127 = scmp.ne.s32.totalorder %s116, %s117
      %p128 = scmp.eq.s32.totalorder %s16, 0
      %p129 = por %p127, %p128
      %p130 = scmp.ne.s32.totalorder %s116, %s117
      %p131 = scmp.eq.s32.totalorder %s17, 3
      %p132 = por %p130, %p131
      %p134 = scmp.ne.s32.totalorder %s117, %s133
      %p135 = scmp.eq.s32.totalorder %s17, 0
      %p136 = por %p134, %p135
      %s138 = sadd.s32 %s137, 1
      %p141 = scmp.eq.s32.totalorder %s11, 3
      %p142 = scmp.ne.s32.totalorder %s137, %s139
      %p143 = scmp.eq.s32.totalorder %s11, 0
      %p144 = por %p142, %p143
      %p145 = scmp.ne.s32.totalorder %s137, %s139
      %p146 = scmp.eq.s32.totalorder %s16, 3
      %p147 = por %p145, %p146
      %p148 = scmp.ne.s32.totalorder %s139, %s140
      %p149 = scmp.eq.s32.totalorder %s16, 0
      %p150 = por %p148, %p149
      %p151 = scmp.ne.s32.totalorder %s139, %s140
      %p152 = scmp.eq.s32.totalorder %s17, 3
      %p153 = por %p151, %p152
      %p155 = scmp.ne.s32.totalorder %s140, %s154
      %p156 = scmp.eq.s32.totalorder %s17, 0
      %p157 = por %p155, %p156
      %s158 = ssub.s32 %s18, %s30
      %p159 = scmp.eq.s32.totalorder %s158, 0
      %s161 = sadd.s32 %s160, 1
      %s162 = scalar_select %p159, %s160, %s161
      %p165 = pneg %p159
      %p166 = scmp.eq.s32.totalorder %s11, 3
      %p167 = por %p165, %p166
      %p168 = scmp.ne.s32.totalorder %s160, %s163
      %p169 = scmp.eq.s32.totalorder %s11, 0
      %p170 = por %p168, %p169
      %p171 = scmp.ne.s32.totalorder %s160, %s163
      %p172 = scmp.eq.s32.totalorder %s16, 3
      %p173 = por %p171, %p172
      %p174 = scmp.ne.s32.totalorder %s163, %s164
      %p175 = scmp.eq.s32.totalorder %s16, 0
      %p176 = por %p174, %p175
      %p177 = scmp.ne.s32.totalorder %s163, %s164
      %p178 = scmp.eq.s32.totalorder %s17, 3
      %p179 = por %p177, %p178
      %p181 = scmp.ne.s32.totalorder %s164, %s180
      %p182 = scmp.eq.s32.totalorder %s17, 0
      %p183 = por %p181, %p182
      %p184 = scmp.le.s32.totalorder 1, %s11
      %p185 = scmp.lt.s32.totalorder %s11, 5
      %p186 = pnand %p184, %p185
      %p187 = pneg %p186
      // Predicated region
      $region9: #{gat_forward.2} parent=5 // pred_check
        _
      $region10: #{gat_forward.2} parent=5 // pred_check_branch
        %189 = sbr.rel (%p186) target = $region12
      $region11: #{gat_forward.2} parent=5 // pred_region
        %s190 = ssub.s32 %s11, 1
        // Predicated region
        $region13: #{gat_forward.2} parent=11 // pred_check
          %p191 = pneg %p150
        $region14: #{gat_forward.2} parent=11 // pred_check_branch
          %193 = sbr.rel (%p191) target = $region16
        $region15: #{gat_forward.2} parent=11 // pred_region
          _
        $region16: #{gat_forward.2} parent=11 // pred_fallthru
          _
      $region12: #{gat_forward.2} parent=5 // pred_fallthru
        _
      %p194 = scmp.lt.s32.totalorder %s11, 4
      // Predicated region
      $region17: #{gat_forward.2} parent=5 // pred_check
        %p195 = pneg %p194
      $region18: #{gat_forward.2} parent=5 // pred_check_branch
        %197 = sbr.rel (%p195) target = $region20
      $region19: #{gat_forward.2} parent=5 // pred_region
        // Predicated region
        $region21: #{gat_forward.2} parent=19 // pred_check
          %p198 = pneg %p43
        $region22: #{gat_forward.2} parent=19 // pred_check_branch
          %200 = sbr.rel (%p198) target = $region24
        $region23: #{gat_forward.2} parent=19 // pred_region
          %s201 = smul.u32 16, %s18
          %p202 = scmp.lt.s32.totalorder %s201, 31
          %s203 = scalar_select %p202, %s201, 31
          %s204 = smul.addr %s203, 8
          %s205 = scalar_lea.vmem %s0, %s204
          %s206 = smul.u32 16, %s18
        $region24: #{gat_forward.2} parent=19 // pred_fallthru
          _
        // Predicated region
        $region25: #{gat_forward.2} parent=19 // pred_check
          %p207 = pneg %p69
        $region26: #{gat_forward.2} parent=19 // pred_check_branch
          %209 = sbr.rel (%p207) target = $region28
        $region27: #{gat_forward.2} parent=19 // pred_region
          %p210 = scmp.lt.s32.totalorder %s19, 1
          %s211 = scalar_select %p210, %s19, 1
          %s212 = scalar_lea.vmem %s1, %s211
        $region28: #{gat_forward.2} parent=19 // pred_fallthru
          _
        // Predicated region
        $region29: #{gat_forward.2} parent=19 // pred_check
          %p213 = pneg %p97
        $region30: #{gat_forward.2} parent=19 // pred_check_branch
          %215 = sbr.rel (%p213) target = $region32
        $region31: #{gat_forward.2} parent=19 // pred_region
          %s216 = sand.u32 %s87, 1
          %s217 = sand.u32 %s87, 1
          %s218 = smul.addr %s217, 128
          %s219 = scalar_lea.vmem [#allocation6], %s218
          %s220 = smul.u32 16, %s18
          %s221 = smul.addr %s220, 2
          %s222 = sadd.s32 %s19, %s221
          %s223 = smul.addr %s222, 8
          %s224 = scalar_lea.vmem %s2, %s223
          // Predicated region
          $region33: #{gat_forward.2} parent=31 // pred_check
            _
          $region34: #{gat_forward.2} parent=31 // pred_check_branch
            %226 = sbr.rel (0) target = $region36
          $region35: #{gat_forward.2} parent=31 // pred_region
            // Predicated region
            $region37: #{gat_forward.2} parent=35 // pred_check
              _
            $region38: #{gat_forward.2} parent=35 // pred_check_branch
              %228 = sbr.rel (0) target = $region40
            $region39: #{gat_forward.2} parent=35 // pred_region
              // Predicated region
              $region52: #{gat_forward.2} parent=39 // pred_check
                _
              $region53: #{gat_forward.2} parent=39 // pred_check_branch
                %274 = sbr.rel (0) target = $region55
              $region54: #{gat_forward.2} parent=39 // pred_region
                loop: start=0, step=1, limit=1
                $region56: #{gat_forward.2} parent=54 // loop_pre_header
                  _
                $region57: #{gat_forward.2} parent=54 // loop_header
                  %s276 = sphi 0, %s280
                  %p277 = scmp.ge.s32.totalorder %s276, 1
                  %s281 = sphi %s224, %s224
                  %s282 = sphi %s219, %s219
                $region58: #{gat_forward.2} parent=54 // loop_header_branch
                  %279 = sbr.rel (%p277) target = $region62
                $region59: #{gat_forward.2} parent=54 // loop_body
                  %v283 = vld [vmem:[%s281] sm:$0xff]
                  %284 = vst [vmem:[%s282] sm:$0xff] %v283
                  %v285 = vld [vmem:[%s281 + $0x10] sm:$0xff]
                  %286 = vst [vmem:[%s282 + $0x8] sm:$0xff] %v285
                  %v287 = vld [vmem:[%s281 + $0x20] sm:$0xff]
                  %288 = vst [vmem:[%s282 + $0x10] sm:$0xff] %v287
                  %v289 = vld [vmem:[%s281 + $0x30] sm:$0xff]
                  %290 = vst [vmem:[%s282 + $0x18] sm:$0xff] %v289
                  %v291 = vld [vmem:[%s281 + $0x40] sm:$0xff]
                  %292 = vst [vmem:[%s282 + $0x20] sm:$0xff] %v291
                  %v293 = vld [vmem:[%s281 + $0x50] sm:$0xff]
                  %294 = vst [vmem:[%s282 + $0x28] sm:$0xff] %v293
                  %v295 = vld [vmem:[%s281 + $0x60] sm:$0xff]
                  %296 = vst [vmem:[%s282 + $0x30] sm:$0xff] %v295
                  %v297 = vld [vmem:[%s281 + $0x70] sm:$0xff]
                  %298 = vst [vmem:[%s282 + $0x38] sm:$0xff] %v297
                  %v299 = vld [vmem:[%s281 + $0x80] sm:$0xff]
                  %300 = vst [vmem:[%s282 + $0x40] sm:$0xff] %v299
                  %v301 = vld [vmem:[%s281 + $0x90] sm:$0xff]
                  %302 = vst [vmem:[%s282 + $0x48] sm:$0xff] %v301
                  %v303 = vld [vmem:[%s281 + $0xa0] sm:$0xff]
                  %304 = vst [vmem:[%s282 + $0x50] sm:$0xff] %v303
                  %v305 = vld [vmem:[%s281 + $0xb0] sm:$0xff]
                  %306 = vst [vmem:[%s282 + $0x58] sm:$0xff] %v305
                  %v307 = vld [vmem:[%s281 + $0xc0] sm:$0xff]
                  %308 = vst [vmem:[%s282 + $0x60] sm:$0xff] %v307
                  %v309 = vld [vmem:[%s281 + $0xd0] sm:$0xff]
                  %310 = vst [vmem:[%s282 + $0x68] sm:$0xff] %v309
                  %v311 = vld [vmem:[%s281 + $0xe0] sm:$0xff]
                  %312 = vst [vmem:[%s282 + $0x70] sm:$0xff] %v311
                  %v313 = vld [vmem:[%s281 + $0xf0] sm:$0xff]
                  %314 = vst [vmem:[%s282 + $0x78] sm:$0xff] %v313
                $region60: #{gat_forward.2} parent=54 // loop_footer
                  %s280 = sadd.s32 1, %s276
                $region61: #{gat_forward.2} parent=54 // loop_footer_branch
                  %275 = sbr.rel target = $region57
                $region62: #{gat_forward.2} parent=54 // loop_exit
                  _
              $region55: #{gat_forward.2} parent=39 // pred_fallthru
                _
              // Predicated region
              $region63: #{gat_forward.2} parent=39 // pred_check
                _
              $region64: #{gat_forward.2} parent=39 // pred_check_branch
                %316 = sbr.rel target = $region66
              $region65: #{gat_forward.2} parent=39 // pred_region
                _
              $region66: #{gat_forward.2} parent=39 // pred_fallthru
                _
            $region40: #{gat_forward.2} parent=35 // pred_fallthru
              _
            // Predicated region
            $region41: #{gat_forward.2} parent=35 // pred_check
              _
            $region42: #{gat_forward.2} parent=35 // pred_check_branch
              %230 = sbr.rel target = $region44
            $region43: #{gat_forward.2} parent=35 // pred_region
              %s232 = ssub.s32 256, 1
              loop: start=0, step=1, limit=1
              $region45: #{gat_forward.2} parent=43 // loop_pre_header
                _
              $region46: #{gat_forward.2} parent=43 // loop_header
                %s234 = sphi 0, %s238
                %p235 = scmp.ge.s32.totalorder %s234, 1
                %s239 = sphi %s224, %s224
                %s240 = sphi %s219, %s219
              $region47: #{gat_forward.2} parent=43 // loop_header_branch
                %237 = sbr.rel (%p235) target = $region51
              $region48: #{gat_forward.2} parent=43 // loop_body
                %v241 = vld [vmem:[%s239] sm:%s232]
                %242 = vst [vmem:[%s240] sm:%s232] %v241
                %v243 = vld [vmem:[%s239 + $0x10] sm:%s232]
                %244 = vst [vmem:[%s240 + $0x8] sm:%s232] %v243
                %v245 = vld [vmem:[%s239 + $0x20] sm:%s232]
                %246 = vst [vmem:[%s240 + $0x10] sm:%s232] %v245
                %v247 = vld [vmem:[%s239 + $0x30] sm:%s232]
                %248 = vst [vmem:[%s240 + $0x18] sm:%s232] %v247
                %v249 = vld [vmem:[%s239 + $0x40] sm:%s232]
                %250 = vst [vmem:[%s240 + $0x20] sm:%s232] %v249
                %v251 = vld [vmem:[%s239 + $0x50] sm:%s232]
                %252 = vst [vmem:[%s240 + $0x28] sm:%s232] %v251
                %v253 = vld [vmem:[%s239 + $0x60] sm:%s232]
                %254 = vst [vmem:[%s240 + $0x30] sm:%s232] %v253
                %v255 = vld [vmem:[%s239 + $0x70] sm:%s232]
                %256 = vst [vmem:[%s240 + $0x38] sm:%s232] %v255
                %v257 = vld [vmem:[%s239 + $0x80] sm:%s232]
                %258 = vst [vmem:[%s240 + $0x40] sm:%s232] %v257
                %v259 = vld [vmem:[%s239 + $0x90] sm:%s232]
                %260 = vst [vmem:[%s240 + $0x48] sm:%s232] %v259
                %v261 = vld [vmem:[%s239 + $0xa0] sm:%s232]
                %262 = vst [vmem:[%s240 + $0x50] sm:%s232] %v261
                %v263 = vld [vmem:[%s239 + $0xb0] sm:%s232]
                %264 = vst [vmem:[%s240 + $0x58] sm:%s232] %v263
                %v265 = vld [vmem:[%s239 + $0xc0] sm:%s232]
                %266 = vst [vmem:[%s240 + $0x60] sm:%s232] %v265
                %v267 = vld [vmem:[%s239 + $0xd0] sm:%s232]
                %268 = vst [vmem:[%s240 + $0x68] sm:%s232] %v267
                %v269 = vld [vmem:[%s239 + $0xe0] sm:%s232]
                %270 = vst [vmem:[%s240 + $0x70] sm:%s232] %v269
                %v271 = vld [vmem:[%s239 + $0xf0] sm:%s232]
                %272 = vst [vmem:[%s240 + $0x78] sm:%s232] %v271
              $region49: #{gat_forward.2} parent=43 // loop_footer
                %s238 = sadd.s32 1, %s234
              $region50: #{gat_forward.2} parent=43 // loop_footer_branch
                %233 = sbr.rel target = $region46
              $region51: #{gat_forward.2} parent=43 // loop_exit
                _
            $region44: #{gat_forward.2} parent=35 // pred_fallthru
              _
          $region36: #{gat_forward.2} parent=31 // pred_fallthru
            _
          %317 = vnop
        $region32: #{gat_forward.2} parent=19 // pred_fallthru
          _
        // Predicated region
        $region67: #{gat_forward.2} parent=19 // pred_check
          %p318 = pneg %p123
        $region68: #{gat_forward.2} parent=19 // pred_check_branch
          %320 = sbr.rel (%p318) target = $region70
        $region69: #{gat_forward.2} parent=19 // pred_region
          %s321 = smul.u32 16, %s19
          %p322 = scmp.lt.s32.totalorder %s321, 31
          %s323 = scalar_select %p322, %s321, 31
          %s324 = smul.addr %s323, 8
          %s325 = scalar_lea.vmem %s3, %s324
          %s326 = smul.u32 16, %s19
        $region70: #{gat_forward.2} parent=19 // pred_fallthru
          _
      $region20: #{gat_forward.2} parent=5 // pred_fallthru
        _
      %p327 = scmp.le.s32.totalorder 1, %s11
      %p328 = scmp.lt.s32.totalorder %s11, 5
      %p329 = pnand %p327, %p328
      %p330 = pneg %p329
      // Predicated region
      $region71: #{gat_forward.2} parent=5 // pred_check
        _
      $region72: #{gat_forward.2} parent=5 // pred_check_branch
        %332 = sbr.rel (%p329) target = $region74
      $region73: #{gat_forward.2} parent=5 // pred_region
        %s333 = ssub.s32 %s11, 1
        %s334 = sand.u32 %s90, 1
        %s335 = sand.u32 %s90, 1
        %s336 = smul.addr %s335, 128
        %s337 = scalar_lea.vmem [#allocation6], %s336
        // Predicated region
        $region75: #{gat_forward.2} parent=73 // pred_check
          %p338 = pneg %p103
        $region76: #{gat_forward.2} parent=73 // pred_check_branch
          %340 = sbr.rel (%p338) target = $region78
        $region77: #{gat_forward.2} parent=73 // pred_region
          _
        $region78: #{gat_forward.2} parent=73 // pred_fallthru
          _
        %s341 = smul.u32 16, %s20
        %p342 = scmp.lt.s32.totalorder %s341, 31
        %s343 = scalar_select %p342, %s341, 31
        %s344 = smul.addr %s343, 8
        %s345 = scalar_lea.vmem %s0, %s344
        %p346 = pneg %p49
        %p347 = pneg %p46
        %p348 = scmp.lt.s32.totalorder %s21, 1
        %s349 = scalar_select %p348, %s21, 1
        %s350 = scalar_lea.vmem %s1, %s349
        %p351 = pneg %p75
        %p352 = pneg %p72
        %s353 = sand.u32 %s90, 1
        %s354 = sand.u32 %s90, 1
        %s355 = smul.addr %s354, 128
        %s356 = scalar_lea.vmem [#allocation6], %s355
        %p357 = pneg %p103
        %p358 = pneg %p100
        %s359 = smul.u32 16, %s21
        %p360 = scmp.lt.s32.totalorder %s359, 31
        %s361 = scalar_select %p360, %s359, 31
        %s362 = smul.addr %s361, 8
        %s363 = scalar_lea.vmem %s3, %s362
        %p364 = pneg %p129
        %p365 = pneg %p126
        %p366 = pneg %p150
        %p367 = pneg %p147
        %p368 = pneg %p176
        %p369 = pneg %p173
        %s370 = smul.u32 16, %s20
        %p371 = scmp.lt.s32.totalorder %s370, 31
        %s372 = scalar_select %p371, %s370, 31
        %s373 = smul.addr %s372, 8
        %s374 = scalar_lea.vmem %s5, %s373
        %s375 = smul.u32 16, %s20
        %p376 = scmp.lt.s32.totalorder %s375, 31
        %s377 = scalar_select %p376, %s375, 31
        %s378 = smul.addr %s377, 8
        %s379 = scalar_lea.vmem %s0, %s378
        %s380 = smul.u32 16, %s20
        %p381 = scmp.lt.s32.totalorder %s21, 1
        %s382 = scalar_select %p381, %s21, 1
        %s383 = scalar_lea.vmem %s1, %s382
        %s384 = smul.u32 16, %s20
        %s385 = smul.u32 16, %s21
        %p386 = scmp.lt.s32.totalorder %s385, 31
        %s387 = scalar_select %p386, %s385, 31
        %s388 = smul.addr %s387, 8
        %s389 = scalar_lea.vmem %s3, %s388
        %s390 = smul.u32 16, %s21
        %s391 = smul.u32 16, %s20
        %p392 = scmp.lt.s32.totalorder %s391, 31
        %s393 = scalar_select %p392, %s391, 31
        %s394 = smul.addr %s393, 8
        %s395 = scalar_lea.vmem %s5, %s394
        %s396 = smul.u32 16, %s20
        %p397 = scmp.eq.s32.totalorder %s21, 0
        // Predicated region
        $region79: #{gat_forward.2} parent=73 // pred_check
          %p398 = pneg %p397
        $region80: #{gat_forward.2} parent=73 // pred_check_branch
          %400 = sbr.rel (%p398) target = $region82
        $region81: #{gat_forward.2} parent=73 // pred_region
          %vm401 = vcmask 7168
          %402 = vst.msk [vmem:[#allocation3] sm:$0xff] %vm401, -inf
          %403 = vst.msk [vmem:[#allocation3 + $0x8] sm:$0xff] %vm401, -inf
          %404 = vst.msk [vmem:[#allocation3 + $0x10] sm:$0xff] %vm401, -inf
          %405 = vst.msk [vmem:[#allocation3 + $0x18] sm:$0xff] %vm401, -inf
          %406 = vst.msk [vmem:[#allocation3 + $0x20] sm:$0xff] %vm401, -inf
          %407 = vst.msk [vmem:[#allocation3 + $0x28] sm:$0xff] %vm401, -inf
          %408 = vst.msk [vmem:[#allocation3 + $0x30] sm:$0xff] %vm401, -inf
          %409 = vst.msk [vmem:[#allocation3 + $0x38] sm:$0xff] %vm401, -inf
          %410 = vst.msk [vmem:[#allocation3 + $0x40] sm:$0xff] %vm401, -inf
          %411 = vst.msk [vmem:[#allocation3 + $0x48] sm:$0xff] %vm401, -inf
          %412 = vst.msk [vmem:[#allocation3 + $0x50] sm:$0xff] %vm401, -inf
          %413 = vst.msk [vmem:[#allocation3 + $0x58] sm:$0xff] %vm401, -inf
          %414 = vst.msk [vmem:[#allocation3 + $0x60] sm:$0xff] %vm401, -inf
          %415 = vst.msk [vmem:[#allocation3 + $0x68] sm:$0xff] %vm401, -inf
          %416 = vst.msk [vmem:[#allocation3 + $0x70] sm:$0xff] %vm401, -inf
          %417 = vst.msk [vmem:[#allocation3 + $0x78] sm:$0xff] %vm401, -inf
          %418 = vst.msk [vmem:[#allocation4] sm:$0xff] %vm401, 0.0
          %419 = vst.msk [vmem:[#allocation4 + $0x8] sm:$0xff] %vm401, 0.0
          %420 = vst.msk [vmem:[#allocation4 + $0x10] sm:$0xff] %vm401, 0.0
          %421 = vst.msk [vmem:[#allocation4 + $0x18] sm:$0xff] %vm401, 0.0
          %422 = vst.msk [vmem:[#allocation4 + $0x20] sm:$0xff] %vm401, 0.0
          %423 = vst.msk [vmem:[#allocation4 + $0x28] sm:$0xff] %vm401, 0.0
          %424 = vst.msk [vmem:[#allocation4 + $0x30] sm:$0xff] %vm401, 0.0
          %425 = vst.msk [vmem:[#allocation4 + $0x38] sm:$0xff] %vm401, 0.0
          %426 = vst.msk [vmem:[#allocation4 + $0x40] sm:$0xff] %vm401, 0.0
          %427 = vst.msk [vmem:[#allocation4 + $0x48] sm:$0xff] %vm401, 0.0
          %428 = vst.msk [vmem:[#allocation4 + $0x50] sm:$0xff] %vm401, 0.0
          %429 = vst.msk [vmem:[#allocation4 + $0x58] sm:$0xff] %vm401, 0.0
          %430 = vst.msk [vmem:[#allocation4 + $0x60] sm:$0xff] %vm401, 0.0
          %431 = vst.msk [vmem:[#allocation4 + $0x68] sm:$0xff] %vm401, 0.0
          %432 = vst.msk [vmem:[#allocation4 + $0x70] sm:$0xff] %vm401, 0.0
          %433 = vst.msk [vmem:[#allocation4 + $0x78] sm:$0xff] %vm401, 0.0
          %434 = vst.msk [vmem:[#allocation5] sm:$0xff] %vm401, 0.0
          %435 = vst.msk [vmem:[#allocation5 + $0x8] sm:$0xff] %vm401, 0.0
          %436 = vst.msk [vmem:[#allocation5 + $0x10] sm:$0xff] %vm401, 0.0
          %437 = vst.msk [vmem:[#allocation5 + $0x18] sm:$0xff] %vm401, 0.0
          %438 = vst.msk [vmem:[#allocation5 + $0x20] sm:$0xff] %vm401, 0.0
          %439 = vst.msk [vmem:[#allocation5 + $0x28] sm:$0xff] %vm401, 0.0
          %440 = vst.msk [vmem:[#allocation5 + $0x30] sm:$0xff] %vm401, 0.0
          %441 = vst.msk [vmem:[#allocation5 + $0x38] sm:$0xff] %vm401, 0.0
          %442 = vst.msk [vmem:[#allocation5 + $0x40] sm:$0xff] %vm401, 0.0
          %443 = vst.msk [vmem:[#allocation5 + $0x48] sm:$0xff] %vm401, 0.0
          %444 = vst.msk [vmem:[#allocation5 + $0x50] sm:$0xff] %vm401, 0.0
          %445 = vst.msk [vmem:[#allocation5 + $0x58] sm:$0xff] %vm401, 0.0
          %446 = vst.msk [vmem:[#allocation5 + $0x60] sm:$0xff] %vm401, 0.0
          %447 = vst.msk [vmem:[#allocation5 + $0x68] sm:$0xff] %vm401, 0.0
          %448 = vst.msk [vmem:[#allocation5 + $0x70] sm:$0xff] %vm401, 0.0
          %449 = vst.msk [vmem:[#allocation5 + $0x78] sm:$0xff] %vm401, 0.0
          %450 = vst [vmem:[#allocation2] sm:$0xff] 0.0
          %451 = vst [vmem:[#allocation2 + $0x8] sm:$0xff] 0.0
          %452 = vst [vmem:[#allocation2 + $0x10] sm:$0xff] 0.0
          %453 = vst [vmem:[#allocation2 + $0x18] sm:$0xff] 0.0
          %454 = vst [vmem:[#allocation2 + $0x20] sm:$0xff] 0.0
          %455 = vst [vmem:[#allocation2 + $0x28] sm:$0xff] 0.0
          %456 = vst [vmem:[#allocation2 + $0x30] sm:$0xff] 0.0
          %457 = vst [vmem:[#allocation2 + $0x38] sm:$0xff] 0.0
          %458 = vst [vmem:[#allocation2 + $0x40] sm:$0xff] 0.0
          %459 = vst [vmem:[#allocation2 + $0x48] sm:$0xff] 0.0
          %460 = vst [vmem:[#allocation2 + $0x50] sm:$0xff] 0.0
          %461 = vst [vmem:[#allocation2 + $0x58] sm:$0xff] 0.0
          %462 = vst [vmem:[#allocation2 + $0x60] sm:$0xff] 0.0
          %463 = vst [vmem:[#allocation2 + $0x68] sm:$0xff] 0.0
          %464 = vst [vmem:[#allocation2 + $0x70] sm:$0xff] 0.0
          %465 = vst [vmem:[#allocation2 + $0x78] sm:$0xff] 0.0
        $region82: #{gat_forward.2} parent=73 // pred_fallthru
          _
        %v466 = vld [vmem:[%s379] sm:$0xff]
        %v467 = vld [vmem:[%s379 + $0x8] sm:$0xff]
        %v468 = vld [vmem:[%s379 + $0x10] sm:$0xff]
        %v469 = vld [vmem:[%s379 + $0x18] sm:$0xff]
        %v470 = vld [vmem:[%s379 + $0x20] sm:$0xff]
        %v471 = vld [vmem:[%s379 + $0x28] sm:$0xff]
        %v472 = vld [vmem:[%s379 + $0x30] sm:$0xff]
        %v473 = vld [vmem:[%s379 + $0x38] sm:$0xff]
        %v474 = vld [vmem:[%s379 + $0x40] sm:$0xff]
        %v475 = vld [vmem:[%s379 + $0x48] sm:$0xff]
        %v476 = vld [vmem:[%s379 + $0x50] sm:$0xff]
        %v477 = vld [vmem:[%s379 + $0x58] sm:$0xff]
        %v478 = vld [vmem:[%s379 + $0x60] sm:$0xff]
        %v479 = vld [vmem:[%s379 + $0x68] sm:$0xff]
        %v480 = vld [vmem:[%s379 + $0x70] sm:$0xff]
        %v481 = vld [vmem:[%s379 + $0x78] sm:$0xff]
        %v482 = vld [vmem:[%s383] sm:$0x1]
        %484 = vset.pattern.permute.xlu0 0
        %485 = vperm.xlu0 %484, %v466
        %v486 = vpop.permute.xlu0 %485
        %489 = vset.pattern.permute.xlu0 0
        %490 = vperm.xlu0 %489, %v467
        %v491 = vpop.permute.xlu0 %490
        %494 = vset.pattern.permute.xlu0 0
        %495 = vperm.xlu0 %494, %v468
        %v496 = vpop.permute.xlu0 %495
        %499 = vset.pattern.permute.xlu0 0
        %500 = vperm.xlu0 %499, %v469
        %v501 = vpop.permute.xlu0 %500
        %504 = vset.pattern.permute.xlu0 0
        %505 = vperm.xlu0 %504, %v470
        %v506 = vpop.permute.xlu0 %505
        %509 = vset.pattern.permute.xlu0 0
        %510 = vperm.xlu0 %509, %v471
        %v511 = vpop.permute.xlu0 %510
        %514 = vset.pattern.permute.xlu0 0
        %515 = vperm.xlu0 %514, %v472
        %v516 = vpop.permute.xlu0 %515
        %519 = vset.pattern.permute.xlu0 0
        %520 = vperm.xlu0 %519, %v473
        %v521 = vpop.permute.xlu0 %520
        %524 = vset.pattern.permute.xlu0 0
        %525 = vperm.xlu0 %524, %v474
        %v526 = vpop.permute.xlu0 %525
        %529 = vset.pattern.permute.xlu0 0
        %530 = vperm.xlu0 %529, %v475
        %v531 = vpop.permute.xlu0 %530
        %534 = vset.pattern.permute.xlu0 0
        %535 = vperm.xlu0 %534, %v476
        %v536 = vpop.permute.xlu0 %535
        %539 = vset.pattern.permute.xlu0 0
        %540 = vperm.xlu0 %539, %v477
        %v541 = vpop.permute.xlu0 %540
        %544 = vset.pattern.permute.xlu0 0
        %545 = vperm.xlu0 %544, %v478
        %v546 = vpop.permute.xlu0 %545
        %549 = vset.pattern.permute.xlu0 0
        %550 = vperm.xlu0 %549, %v479
        %v551 = vpop.permute.xlu0 %550
        %554 = vset.pattern.permute.xlu0 0
        %555 = vperm.xlu0 %554, %v480
        %v556 = vpop.permute.xlu0 %555
        %559 = vset.pattern.permute.xlu0 0
        %560 = vperm.xlu0 %559, %v481
        %v561 = vpop.permute.xlu0 %560
        %v564 = vperm.slane %v482, 0
        %v566 = vadd.f32 %v486, %v564
        %v567 = vadd.f32 %v491, %v564
        %v568 = vadd.f32 %v496, %v564
        %v569 = vadd.f32 %v501, %v564
        %v570 = vadd.f32 %v506, %v564
        %v571 = vadd.f32 %v511, %v564
        %v572 = vadd.f32 %v516, %v564
        %v573 = vadd.f32 %v521, %v564
        %v574 = vadd.f32 %v526, %v564
        %v575 = vadd.f32 %v531, %v564
        %v576 = vadd.f32 %v536, %v564
        %v577 = vadd.f32 %v541, %v564
        %v578 = vadd.f32 %v546, %v564
        %v579 = vadd.f32 %v551, %v564
        %v580 = vadd.f32 %v556, %v564
        %v581 = vadd.f32 %v561, %v564
        %vm582 = vcmp.gt.f32.partialorder %v566, 0.0
        %vm583 = vcmp.gt.f32.partialorder %v567, 0.0
        %vm584 = vcmp.gt.f32.partialorder %v568, 0.0
        %vm585 = vcmp.gt.f32.partialorder %v569, 0.0
        %vm586 = vcmp.gt.f32.partialorder %v570, 0.0
        %vm587 = vcmp.gt.f32.partialorder %v571, 0.0
        %vm588 = vcmp.gt.f32.partialorder %v572, 0.0
        %vm589 = vcmp.gt.f32.partialorder %v573, 0.0
        %vm590 = vcmp.gt.f32.partialorder %v574, 0.0
        %vm591 = vcmp.gt.f32.partialorder %v575, 0.0
        %vm592 = vcmp.gt.f32.partialorder %v576, 0.0
        %vm593 = vcmp.gt.f32.partialorder %v577, 0.0
        %vm594 = vcmp.gt.f32.partialorder %v578, 0.0
        %vm595 = vcmp.gt.f32.partialorder %v579, 0.0
        %vm596 = vcmp.gt.f32.partialorder %v580, 0.0
        %vm597 = vcmp.gt.f32.partialorder %v581, 0.0
        %v598 = vmul.f32 %v566, 0.2
        %v599 = vmul.f32 %v567, 0.2
        %v600 = vmul.f32 %v568, 0.2
        %v601 = vmul.f32 %v569, 0.2
        %v602 = vmul.f32 %v570, 0.2
        %v603 = vmul.f32 %v571, 0.2
        %v604 = vmul.f32 %v572, 0.2
        %v605 = vmul.f32 %v573, 0.2
        %v606 = vmul.f32 %v574, 0.2
        %v607 = vmul.f32 %v575, 0.2
        %v608 = vmul.f32 %v576, 0.2
        %v609 = vmul.f32 %v577, 0.2
        %v610 = vmul.f32 %v578, 0.2
        %v611 = vmul.f32 %v579, 0.2
        %v612 = vmul.f32 %v580, 0.2
        %v613 = vmul.f32 %v581, 0.2
        %v614 = vsel %vm582, %v566, %v598
        %v615 = vsel %vm583, %v567, %v599
        %v616 = vsel %vm584, %v568, %v600
        %v617 = vsel %vm585, %v569, %v601
        %v618 = vsel %vm586, %v570, %v602
        %v619 = vsel %vm587, %v571, %v603
        %v620 = vsel %vm588, %v572, %v604
        %v621 = vsel %vm589, %v573, %v605
        %v622 = vsel %vm590, %v574, %v606
        %v623 = vsel %vm591, %v575, %v607
        %v624 = vsel %vm592, %v576, %v608
        %v625 = vsel %vm593, %v577, %v609
        %v626 = vsel %vm594, %v578, %v610
        %v627 = vsel %vm595, %v579, %v611
        %v628 = vsel %vm596, %v580, %v612
        %v629 = vsel %vm597, %v581, %v613
        %v630 = vld [vmem:[#allocation3] sm:$0xff]
        %v631 = vld [vmem:[#allocation3 + $0x8] sm:$0xff]
        %v632 = vld [vmem:[#allocation3 + $0x10] sm:$0xff]
        %v633 = vld [vmem:[#allocation3 + $0x18] sm:$0xff]
        %v634 = vld [vmem:[#allocation3 + $0x20] sm:$0xff]
        %v635 = vld [vmem:[#allocation3 + $0x28] sm:$0xff]
        %v636 = vld [vmem:[#allocation3 + $0x30] sm:$0xff]
        %v637 = vld [vmem:[#allocation3 + $0x38] sm:$0xff]
        %v638 = vld [vmem:[#allocation3 + $0x40] sm:$0xff]
        %v639 = vld [vmem:[#allocation3 + $0x48] sm:$0xff]
        %v640 = vld [vmem:[#allocation3 + $0x50] sm:$0xff]
        %v641 = vld [vmem:[#allocation3 + $0x58] sm:$0xff]
        %v642 = vld [vmem:[#allocation3 + $0x60] sm:$0xff]
        %v643 = vld [vmem:[#allocation3 + $0x68] sm:$0xff]
        %v644 = vld [vmem:[#allocation3 + $0x70] sm:$0xff]
        %v645 = vld [vmem:[#allocation3 + $0x78] sm:$0xff]
        %646 = vmax.xlane.f32.xlu0 %v614
        %v647 = vpop.xlane.xlu0 %646
        %648 = vmax.xlane.f32.xlu0 %v615
        %v649 = vpop.xlane.xlu0 %648
        %650 = vmax.xlane.f32.xlu0 %v616
        %v651 = vpop.xlane.xlu0 %650
        %652 = vmax.xlane.f32.xlu0 %v617
        %v653 = vpop.xlane.xlu0 %652
        %654 = vmax.xlane.f32.xlu0 %v618
        %v655 = vpop.xlane.xlu0 %654
        %656 = vmax.xlane.f32.xlu0 %v619
        %v657 = vpop.xlane.xlu0 %656
        %658 = vmax.xlane.f32.xlu0 %v620
        %v659 = vpop.xlane.xlu0 %658
        %660 = vmax.xlane.f32.xlu0 %v621
        %v661 = vpop.xlane.xlu0 %660
        %662 = vmax.xlane.f32.xlu0 %v622
        %v663 = vpop.xlane.xlu0 %662
        %664 = vmax.xlane.f32.xlu0 %v623
        %v665 = vpop.xlane.xlu0 %664
        %666 = vmax.xlane.f32.xlu0 %v624
        %v667 = vpop.xlane.xlu0 %666
        %668 = vmax.xlane.f32.xlu0 %v625
        %v669 = vpop.xlane.xlu0 %668
        %670 = vmax.xlane.f32.xlu0 %v626
        %v671 = vpop.xlane.xlu0 %670
        %672 = vmax.xlane.f32.xlu0 %v627
        %v673 = vpop.xlane.xlu0 %672
        %674 = vmax.xlane.f32.xlu0 %v628
        %v675 = vpop.xlane.xlu0 %674
        %676 = vmax.xlane.f32.xlu0 %v629
        %v677 = vpop.xlane.xlu0 %676
        %v678 = vmax.f32 %v630, %v647
        %v679 = vmax.f32 %v631, %v649
        %v680 = vmax.f32 %v632, %v651
        %v681 = vmax.f32 %v633, %v653
        %v682 = vmax.f32 %v634, %v655
        %v683 = vmax.f32 %v635, %v657
        %v684 = vmax.f32 %v636, %v659
        %v685 = vmax.f32 %v637, %v661
        %v686 = vmax.f32 %v638, %v663
        %v687 = vmax.f32 %v639, %v665
        %v688 = vmax.f32 %v640, %v667
        %v689 = vmax.f32 %v641, %v669
        %v690 = vmax.f32 %v642, %v671
        %v691 = vmax.f32 %v643, %v673
        %v692 = vmax.f32 %v644, %v675
        %v693 = vmax.f32 %v645, %v677
        %v694 = vsub.f32 %v630, %v678
        %v695 = vsub.f32 %v631, %v679
        %v696 = vsub.f32 %v632, %v680
        %v697 = vsub.f32 %v633, %v681
        %v698 = vsub.f32 %v634, %v682
        %v699 = vsub.f32 %v635, %v683
        %v700 = vsub.f32 %v636, %v684
        %v701 = vsub.f32 %v637, %v685
        %v702 = vsub.f32 %v638, %v686
        %v703 = vsub.f32 %v639, %v687
        %v704 = vsub.f32 %v640, %v688
        %v705 = vsub.f32 %v641, %v689
        %v706 = vsub.f32 %v642, %v690
        %v707 = vsub.f32 %v643, %v691
        %v708 = vsub.f32 %v644, %v692
        %v709 = vsub.f32 %v645, %v693
        %v710 = vmul.f32 %v694, 1.442695
        %v711 = vpow.pop %v710
        %v712 = vmul.f32 %v695, 1.442695
        %v713 = vpow.pop %v712
        %v714 = vmul.f32 %v696, 1.442695
        %v715 = vpow.pop %v714
        %v716 = vmul.f32 %v697, 1.442695
        %v717 = vpow.pop %v716
        %v718 = vmul.f32 %v698, 1.442695
        %v719 = vpow.pop %v718
        %v720 = vmul.f32 %v699, 1.442695
        %v721 = vpow.pop %v720
        %v722 = vmul.f32 %v700, 1.442695
        %v723 = vpow.pop %v722
        %v724 = vmul.f32 %v701, 1.442695
        %v725 = vpow.pop %v724
        %v726 = vmul.f32 %v702, 1.442695
        %v727 = vpow.pop %v726
        %v728 = vmul.f32 %v703, 1.442695
        %v729 = vpow.pop %v728
        %v730 = vmul.f32 %v704, 1.442695
        %v731 = vpow.pop %v730
        %v732 = vmul.f32 %v705, 1.442695
        %v733 = vpow.pop %v732
        %v734 = vmul.f32 %v706, 1.442695
        %v735 = vpow.pop %v734
        %v736 = vmul.f32 %v707, 1.442695
        %v737 = vpow.pop %v736
        %v738 = vmul.f32 %v708, 1.442695
        %v739 = vpow.pop %v738
        %v740 = vmul.f32 %v709, 1.442695
        %v741 = vpow.pop %v740
        %v742 = vld [vmem:[%s337] sm:$0xff]
        %v743 = vld [vmem:[%s337 + $0x8] sm:$0xff]
        %v744 = vld [vmem:[%s337 + $0x10] sm:$0xff]
        %v745 = vld [vmem:[%s337 + $0x18] sm:$0xff]
        %v746 = vld [vmem:[%s337 + $0x20] sm:$0xff]
        %v747 = vld [vmem:[%s337 + $0x28] sm:$0xff]
        %v748 = vld [vmem:[%s337 + $0x30] sm:$0xff]
        %v749 = vld [vmem:[%s337 + $0x38] sm:$0xff]
        %v750 = vld [vmem:[%s337 + $0x40] sm:$0xff]
        %v751 = vld [vmem:[%s337 + $0x48] sm:$0xff]
        %v752 = vld [vmem:[%s337 + $0x50] sm:$0xff]
        %v753 = vld [vmem:[%s337 + $0x58] sm:$0xff]
        %v754 = vld [vmem:[%s337 + $0x60] sm:$0xff]
        %v755 = vld [vmem:[%s337 + $0x68] sm:$0xff]
        %v756 = vld [vmem:[%s337 + $0x70] sm:$0xff]
        %v757 = vld [vmem:[%s337 + $0x78] sm:$0xff]
        %759 = vset.pattern.permute.xlu0 0
        %760 = vperm.xlu0 %759, %v678
        %v761 = vpop.permute.xlu0 %760
        %764 = vset.pattern.permute.xlu0 0
        %765 = vperm.xlu0 %764, %v679
        %v766 = vpop.permute.xlu0 %765
        %769 = vset.pattern.permute.xlu0 0
        %770 = vperm.xlu0 %769, %v680
        %v771 = vpop.permute.xlu0 %770
        %774 = vset.pattern.permute.xlu0 0
        %775 = vperm.xlu0 %774, %v681
        %v776 = vpop.permute.xlu0 %775
        %779 = vset.pattern.permute.xlu0 0
        %780 = vperm.xlu0 %779, %v682
        %v781 = vpop.permute.xlu0 %780
        %784 = vset.pattern.permute.xlu0 0
        %785 = vperm.xlu0 %784, %v683
        %v786 = vpop.permute.xlu0 %785
        %789 = vset.pattern.permute.xlu0 0
        %790 = vperm.xlu0 %789, %v684
        %v791 = vpop.permute.xlu0 %790
        %794 = vset.pattern.permute.xlu0 0
        %795 = vperm.xlu0 %794, %v685
        %v796 = vpop.permute.xlu0 %795
        %799 = vset.pattern.permute.xlu0 0
        %800 = vperm.xlu0 %799, %v686
        %v801 = vpop.permute.xlu0 %800
        %804 = vset.pattern.permute.xlu0 0
        %805 = vperm.xlu0 %804, %v687
        %v806 = vpop.permute.xlu0 %805
        %809 = vset.pattern.permute.xlu0 0
        %810 = vperm.xlu0 %809, %v688
        %v811 = vpop.permute.xlu0 %810
        %814 = vset.pattern.permute.xlu0 0
        %815 = vperm.xlu0 %814, %v689
        %v816 = vpop.permute.xlu0 %815
        %819 = vset.pattern.permute.xlu0 0
        %820 = vperm.xlu0 %819, %v690
        %v821 = vpop.permute.xlu0 %820
        %824 = vset.pattern.permute.xlu0 0
        %825 = vperm.xlu0 %824, %v691
        %v826 = vpop.permute.xlu0 %825
        %829 = vset.pattern.permute.xlu0 0
        %830 = vperm.xlu0 %829, %v692
        %v831 = vpop.permute.xlu0 %830
        %834 = vset.pattern.permute.xlu0 0
        %835 = vperm.xlu0 %834, %v693
        %v836 = vpop.permute.xlu0 %835
        %v838 = vsub.f32 %v614, %v761
        %v839 = vsub.f32 %v615, %v766
        %v840 = vsub.f32 %v616, %v771
        %v841 = vsub.f32 %v617, %v776
        %v842 = vsub.f32 %v618, %v781
        %v843 = vsub.f32 %v619, %v786
        %v844 = vsub.f32 %v620, %v791
        %v845 = vsub.f32 %v621, %v796
        %v846 = vsub.f32 %v622, %v801
        %v847 = vsub.f32 %v623, %v806
        %v848 = vsub.f32 %v624, %v811
        %v849 = vsub.f32 %v625, %v816
        %v850 = vsub.f32 %v626, %v821
        %v851 = vsub.f32 %v627, %v826
        %v852 = vsub.f32 %v628, %v831
        %v853 = vsub.f32 %v629, %v836
        %v854 = vmul.f32 %v838, 1.442695
        %v855 = vpow.pop %v854
        %v856 = vmul.f32 %v839, 1.442695
        %v857 = vpow.pop %v856
        %v858 = vmul.f32 %v840, 1.442695
        %v859 = vpow.pop %v858
        %v860 = vmul.f32 %v841, 1.442695
        %v861 = vpow.pop %v860
        %v862 = vmul.f32 %v842, 1.442695
        %v863 = vpow.pop %v862
        %v864 = vmul.f32 %v843, 1.442695
        %v865 = vpow.pop %v864
        %v866 = vmul.f32 %v844, 1.442695
        %v867 = vpow.pop %v866
        %v868 = vmul.f32 %v845, 1.442695
        %v869 = vpow.pop %v868
        %v870 = vmul.f32 %v846, 1.442695
        %v871 = vpow.pop %v870
        %v872 = vmul.f32 %v847, 1.442695
        %v873 = vpow.pop %v872
        %v874 = vmul.f32 %v848, 1.442695
        %v875 = vpow.pop %v874
        %v876 = vmul.f32 %v849, 1.442695
        %v877 = vpow.pop %v876
        %v878 = vmul.f32 %v850, 1.442695
        %v879 = vpow.pop %v878
        %v880 = vmul.f32 %v851, 1.442695
        %v881 = vpow.pop %v880
        %v882 = vmul.f32 %v852, 1.442695
        %v883 = vpow.pop %v882
        %v884 = vmul.f32 %v853, 1.442695
        %v885 = vpow.pop %v884
        %v886 = vmul.f32 %v742, %v855
        %v887 = vmul.f32 %v743, %v857
        %v888 = vmul.f32 %v744, %v859
        %v889 = vmul.f32 %v745, %v861
        %v890 = vmul.f32 %v746, %v863
        %v891 = vmul.f32 %v747, %v865
        %v892 = vmul.f32 %v748, %v867
        %v893 = vmul.f32 %v749, %v869
        %v894 = vmul.f32 %v750, %v871
        %v895 = vmul.f32 %v751, %v873
        %v896 = vmul.f32 %v752, %v875
        %v897 = vmul.f32 %v753, %v877
        %v898 = vmul.f32 %v754, %v879
        %v899 = vmul.f32 %v755, %v881
        %v900 = vmul.f32 %v756, %v883
        %v901 = vmul.f32 %v757, %v885
        %v902 = vld [vmem:[#allocation4] sm:$0xff]
        %v903 = vld [vmem:[#allocation4 + $0x8] sm:$0xff]
        %v904 = vld [vmem:[#allocation4 + $0x10] sm:$0xff]
        %v905 = vld [vmem:[#allocation4 + $0x18] sm:$0xff]
        %v906 = vld [vmem:[#allocation4 + $0x20] sm:$0xff]
        %v907 = vld [vmem:[#allocation4 + $0x28] sm:$0xff]
        %v908 = vld [vmem:[#allocation4 + $0x30] sm:$0xff]
        %v909 = vld [vmem:[#allocation4 + $0x38] sm:$0xff]
        %v910 = vld [vmem:[#allocation4 + $0x40] sm:$0xff]
        %v911 = vld [vmem:[#allocation4 + $0x48] sm:$0xff]
        %v912 = vld [vmem:[#allocation4 + $0x50] sm:$0xff]
        %v913 = vld [vmem:[#allocation4 + $0x58] sm:$0xff]
        %v914 = vld [vmem:[#allocation4 + $0x60] sm:$0xff]
        %v915 = vld [vmem:[#allocation4 + $0x68] sm:$0xff]
        %v916 = vld [vmem:[#allocation4 + $0x70] sm:$0xff]
        %v917 = vld [vmem:[#allocation4 + $0x78] sm:$0xff]
        %v918 = vmul.f32 %v902, %v711
        %v919 = vmul.f32 %v903, %v713
        %v920 = vmul.f32 %v904, %v715
        %v921 = vmul.f32 %v905, %v717
        %v922 = vmul.f32 %v906, %v719
        %v923 = vmul.f32 %v907, %v721
        %v924 = vmul.f32 %v908, %v723
        %v925 = vmul.f32 %v909, %v725
        %v926 = vmul.f32 %v910, %v727
        %v927 = vmul.f32 %v911, %v729
        %v928 = vmul.f32 %v912, %v731
        %v929 = vmul.f32 %v913, %v733
        %v930 = vmul.f32 %v914, %v735
        %v931 = vmul.f32 %v915, %v737
        %v932 = vmul.f32 %v916, %v739
        %v933 = vmul.f32 %v917, %v741
        %934 = vadd.xlane.f32.xlu0 %v886
        %v935 = vpop.xlane.xlu0 %934
        %936 = vadd.xlane.f32.xlu0 %v887
        %v937 = vpop.xlane.xlu0 %936
        %938 = vadd.xlane.f32.xlu0 %v888
        %v939 = vpop.xlane.xlu0 %938
        %940 = vadd.xlane.f32.xlu0 %v889
        %v941 = vpop.xlane.xlu0 %940
        %942 = vadd.xlane.f32.xlu0 %v890
        %v943 = vpop.xlane.xlu0 %942
        %944 = vadd.xlane.f32.xlu0 %v891
        %v945 = vpop.xlane.xlu0 %944
        %946 = vadd.xlane.f32.xlu0 %v892
        %v947 = vpop.xlane.xlu0 %946
        %948 = vadd.xlane.f32.xlu0 %v893
        %v949 = vpop.xlane.xlu0 %948
        %950 = vadd.xlane.f32.xlu0 %v894
        %v951 = vpop.xlane.xlu0 %950
        %952 = vadd.xlane.f32.xlu0 %v895
        %v953 = vpop.xlane.xlu0 %952
        %954 = vadd.xlane.f32.xlu0 %v896
        %v955 = vpop.xlane.xlu0 %954
        %956 = vadd.xlane.f32.xlu0 %v897
        %v957 = vpop.xlane.xlu0 %956
        %958 = vadd.xlane.f32.xlu0 %v898
        %v959 = vpop.xlane.xlu0 %958
        %960 = vadd.xlane.f32.xlu0 %v899
        %v961 = vpop.xlane.xlu0 %960
        %962 = vadd.xlane.f32.xlu0 %v900
        %v963 = vpop.xlane.xlu0 %962
        %964 = vadd.xlane.f32.xlu0 %v901
        %v965 = vpop.xlane.xlu0 %964
        %v966 = vadd.f32 %v918, %v935
        %v967 = vadd.f32 %v919, %v937
        %v968 = vadd.f32 %v920, %v939
        %v969 = vadd.f32 %v921, %v941
        %v970 = vadd.f32 %v922, %v943
        %v971 = vadd.f32 %v923, %v945
        %v972 = vadd.f32 %v924, %v947
        %v973 = vadd.f32 %v925, %v949
        %v974 = vadd.f32 %v926, %v951
        %v975 = vadd.f32 %v927, %v953
        %v976 = vadd.f32 %v928, %v955
        %v977 = vadd.f32 %v929, %v957
        %v978 = vadd.f32 %v930, %v959
        %v979 = vadd.f32 %v931, %v961
        %v980 = vadd.f32 %v932, %v963
        %v981 = vadd.f32 %v933, %v965
        %vm982 = vcmask 7168
        %983 = vst.msk [vmem:[#allocation4] sm:$0xff] %vm982, %v966
        %984 = vst.msk [vmem:[#allocation4 + $0x8] sm:$0xff] %vm982, %v967
        %985 = vst.msk [vmem:[#allocation4 + $0x10] sm:$0xff] %vm982, %v968
        %986 = vst.msk [vmem:[#allocation4 + $0x18] sm:$0xff] %vm982, %v969
        %987 = vst.msk [vmem:[#allocation4 + $0x20] sm:$0xff] %vm982, %v970
        %988 = vst.msk [vmem:[#allocation4 + $0x28] sm:$0xff] %vm982, %v971
        %989 = vst.msk [vmem:[#allocation4 + $0x30] sm:$0xff] %vm982, %v972
        %990 = vst.msk [vmem:[#allocation4 + $0x38] sm:$0xff] %vm982, %v973
        %991 = vst.msk [vmem:[#allocation4 + $0x40] sm:$0xff] %vm982, %v974
        %992 = vst.msk [vmem:[#allocation4 + $0x48] sm:$0xff] %vm982, %v975
        %993 = vst.msk [vmem:[#allocation4 + $0x50] sm:$0xff] %vm982, %v976
        %994 = vst.msk [vmem:[#allocation4 + $0x58] sm:$0xff] %vm982, %v977
        %995 = vst.msk [vmem:[#allocation4 + $0x60] sm:$0xff] %vm982, %v978
        %996 = vst.msk [vmem:[#allocation4 + $0x68] sm:$0xff] %vm982, %v979
        %997 = vst.msk [vmem:[#allocation4 + $0x70] sm:$0xff] %vm982, %v980
        %998 = vst.msk [vmem:[#allocation4 + $0x78] sm:$0xff] %vm982, %v981
        %s999 = smul.u32 %s20, 128
        %p1000 = scmp.lt.s32.totalorder %s999, 90
        // Predicated region
        $region83: #{gat_forward.2} parent=73 // pred_check
          %p1001 = pneg %p1000
        $region84: #{gat_forward.2} parent=73 // pred_check_branch
          %1003 = sbr.rel (%p1001) target = $region86
        $region85: #{gat_forward.2} parent=73 // pred_region
          %s1004 = smul.u32 %s21, 128
          %v1005 = vlaneseq
          %v1006 = vand.u32 %v1005, 127
          %v1007 = vstv %s1004
          %v1008 = vadd.s32 %v1007, %v1006
          %vm1009 = vcmp.ge.s32.totalorder %v1008, 90
          %v1010 = vsel %vm1009, 1.3333334, 1.0
          %v1011 = vld [vmem:[#allocation5] sm:$0xff]
          %v1012 = vld [vmem:[#allocation5 + $0x8] sm:$0xff]
          %v1013 = vld [vmem:[#allocation5 + $0x10] sm:$0xff]
          %v1014 = vld [vmem:[#allocation5 + $0x18] sm:$0xff]
          %v1015 = vld [vmem:[#allocation5 + $0x20] sm:$0xff]
          %v1016 = vld [vmem:[#allocation5 + $0x28] sm:$0xff]
          %v1017 = vld [vmem:[#allocation5 + $0x30] sm:$0xff]
          %v1018 = vld [vmem:[#allocation5 + $0x38] sm:$0xff]
          %v1019 = vld [vmem:[#allocation5 + $0x40] sm:$0xff]
          %v1020 = vld [vmem:[#allocation5 + $0x48] sm:$0xff]
          %v1021 = vld [vmem:[#allocation5 + $0x50] sm:$0xff]
          %v1022 = vld [vmem:[#allocation5 + $0x58] sm:$0xff]
          %v1023 = vld [vmem:[#allocation5 + $0x60] sm:$0xff]
          %v1024 = vld [vmem:[#allocation5 + $0x68] sm:$0xff]
          %v1025 = vld [vmem:[#allocation5 + $0x70] sm:$0xff]
          %v1026 = vld [vmem:[#allocation5 + $0x78] sm:$0xff]
          %v1027 = vmul.f32 %v1011, %v711
          %v1028 = vmul.f32 %v1012, %v713
          %v1029 = vmul.f32 %v1013, %v715
          %v1030 = vmul.f32 %v1014, %v717
          %v1031 = vmul.f32 %v1015, %v719
          %v1032 = vmul.f32 %v1016, %v721
          %v1033 = vmul.f32 %v1017, %v723
          %v1034 = vmul.f32 %v1018, %v725
          %v1035 = vmul.f32 %v1019, %v727
          %v1036 = vmul.f32 %v1020, %v729
          %v1037 = vmul.f32 %v1021, %v731
          %v1038 = vmul.f32 %v1022, %v733
          %v1039 = vmul.f32 %v1023, %v735
          %v1040 = vmul.f32 %v1024, %v737
          %v1041 = vmul.f32 %v1025, %v739
          %v1042 = vmul.f32 %v1026, %v741
          %v1043 = vmul.f32 %v886, %v1010
          %v1044 = vmul.f32 %v887, %v1010
          %v1045 = vmul.f32 %v888, %v1010
          %v1046 = vmul.f32 %v889, %v1010
          %v1047 = vmul.f32 %v890, %v1010
          %v1048 = vmul.f32 %v891, %v1010
          %v1049 = vmul.f32 %v892, %v1010
          %v1050 = vmul.f32 %v893, %v1010
          %v1051 = vmul.f32 %v894, %v1010
          %v1052 = vmul.f32 %v895, %v1010
          %v1053 = vmul.f32 %v896, %v1010
          %v1054 = vmul.f32 %v897, %v1010
          %v1055 = vmul.f32 %v898, %v1010
          %v1056 = vmul.f32 %v899, %v1010
          %v1057 = vmul.f32 %v900, %v1010
          %v1058 = vmul.f32 %v901, %v1010
          %1059 = vadd.xlane.f32.xlu0 %v1043
          %v1060 = vpop.xlane.xlu0 %1059
          %1061 = vadd.xlane.f32.xlu0 %v1044
          %v1062 = vpop.xlane.xlu0 %1061
          %1063 = vadd.xlane.f32.xlu0 %v1045
          %v1064 = vpop.xlane.xlu0 %1063
          %1065 = vadd.xlane.f32.xlu0 %v1046
          %v1066 = vpop.xlane.xlu0 %1065
          %1067 = vadd.xlane.f32.xlu0 %v1047
          %v1068 = vpop.xlane.xlu0 %1067
          %1069 = vadd.xlane.f32.xlu0 %v1048
          %v1070 = vpop.xlane.xlu0 %1069
          %1071 = vadd.xlane.f32.xlu0 %v1049
          %v1072 = vpop.xlane.xlu0 %1071
          %1073 = vadd.xlane.f32.xlu0 %v1050
          %v1074 = vpop.xlane.xlu0 %1073
          %1075 = vadd.xlane.f32.xlu0 %v1051
          %v1076 = vpop.xlane.xlu0 %1075
          %1077 = vadd.xlane.f32.xlu0 %v1052
          %v1078 = vpop.xlane.xlu0 %1077
          %1079 = vadd.xlane.f32.xlu0 %v1053
          %v1080 = vpop.xlane.xlu0 %1079
          %1081 = vadd.xlane.f32.xlu0 %v1054
          %v1082 = vpop.xlane.xlu0 %1081
          %1083 = vadd.xlane.f32.xlu0 %v1055
          %v1084 = vpop.xlane.xlu0 %1083
          %1085 = vadd.xlane.f32.xlu0 %v1056
          %v1086 = vpop.xlane.xlu0 %1085
          %1087 = vadd.xlane.f32.xlu0 %v1057
          %v1088 = vpop.xlane.xlu0 %1087
          %1089 = vadd.xlane.f32.xlu0 %v1058
          %v1090 = vpop.xlane.xlu0 %1089
          %v1091 = vadd.f32 %v1027, %v1060
          %v1092 = vadd.f32 %v1028, %v1062
          %v1093 = vadd.f32 %v1029, %v1064
          %v1094 = vadd.f32 %v1030, %v1066
          %v1095 = vadd.f32 %v1031, %v1068
          %v1096 = vadd.f32 %v1032, %v1070
          %v1097 = vadd.f32 %v1033, %v1072
          %v1098 = vadd.f32 %v1034, %v1074
          %v1099 = vadd.f32 %v1035, %v1076
          %v1100 = vadd.f32 %v1036, %v1078
          %v1101 = vadd.f32 %v1037, %v1080
          %v1102 = vadd.f32 %v1038, %v1082
          %v1103 = vadd.f32 %v1039, %v1084
          %v1104 = vadd.f32 %v1040, %v1086
          %v1105 = vadd.f32 %v1041, %v1088
          %v1106 = vadd.f32 %v1042, %v1090
          %1107 = vst.msk [vmem:[#allocation5] sm:$0xff] %vm982, %v1091
          %1108 = vst.msk [vmem:[#allocation5 + $0x8] sm:$0xff] %vm982, %v1092
          %1109 = vst.msk [vmem:[#allocation5 + $0x10] sm:$0xff] %vm982, %v1093
          %1110 = vst.msk [vmem:[#allocation5 + $0x18] sm:$0xff] %vm982, %v1094
          %1111 = vst.msk [vmem:[#allocation5 + $0x20] sm:$0xff] %vm982, %v1095
          %1112 = vst.msk [vmem:[#allocation5 + $0x28] sm:$0xff] %vm982, %v1096
          %1113 = vst.msk [vmem:[#allocation5 + $0x30] sm:$0xff] %vm982, %v1097
          %1114 = vst.msk [vmem:[#allocation5 + $0x38] sm:$0xff] %vm982, %v1098
          %1115 = vst.msk [vmem:[#allocation5 + $0x40] sm:$0xff] %vm982, %v1099
          %1116 = vst.msk [vmem:[#allocation5 + $0x48] sm:$0xff] %vm982, %v1100
          %1117 = vst.msk [vmem:[#allocation5 + $0x50] sm:$0xff] %vm982, %v1101
          %1118 = vst.msk [vmem:[#allocation5 + $0x58] sm:$0xff] %vm982, %v1102
          %1119 = vst.msk [vmem:[#allocation5 + $0x60] sm:$0xff] %vm982, %v1103
          %1120 = vst.msk [vmem:[#allocation5 + $0x68] sm:$0xff] %vm982, %v1104
          %1121 = vst.msk [vmem:[#allocation5 + $0x70] sm:$0xff] %vm982, %v1105
          %1122 = vst.msk [vmem:[#allocation5 + $0x78] sm:$0xff] %vm982, %v1106
        $region86: #{gat_forward.2} parent=73 // pred_fallthru
          _
        %v1123 = vld [vmem:[#allocation2] sm:$0xff]
        %v1124 = vld [vmem:[#allocation2 + $0x8] sm:$0xff]
        %v1125 = vld [vmem:[#allocation2 + $0x10] sm:$0xff]
        %v1126 = vld [vmem:[#allocation2 + $0x18] sm:$0xff]
        %v1127 = vld [vmem:[#allocation2 + $0x20] sm:$0xff]
        %v1128 = vld [vmem:[#allocation2 + $0x28] sm:$0xff]
        %v1129 = vld [vmem:[#allocation2 + $0x30] sm:$0xff]
        %v1130 = vld [vmem:[#allocation2 + $0x38] sm:$0xff]
        %v1131 = vld [vmem:[#allocation2 + $0x40] sm:$0xff]
        %v1132 = vld [vmem:[#allocation2 + $0x48] sm:$0xff]
        %v1133 = vld [vmem:[#allocation2 + $0x50] sm:$0xff]
        %v1134 = vld [vmem:[#allocation2 + $0x58] sm:$0xff]
        %v1135 = vld [vmem:[#allocation2 + $0x60] sm:$0xff]
        %v1136 = vld [vmem:[#allocation2 + $0x68] sm:$0xff]
        %v1137 = vld [vmem:[#allocation2 + $0x70] sm:$0xff]
        %v1138 = vld [vmem:[#allocation2 + $0x78] sm:$0xff]
        %1140 = vset.pattern.permute.xlu0 0
        %1141 = vperm.xlu0 %1140, %v711
        %v1142 = vpop.permute.xlu0 %1141
        %1145 = vset.pattern.permute.xlu0 0
        %1146 = vperm.xlu0 %1145, %v713
        %v1147 = vpop.permute.xlu0 %1146
        %1150 = vset.pattern.permute.xlu0 0
        %1151 = vperm.xlu0 %1150, %v715
        %v1152 = vpop.permute.xlu0 %1151
        %1155 = vset.pattern.permute.xlu0 0
        %1156 = vperm.xlu0 %1155, %v717
        %v1157 = vpop.permute.xlu0 %1156
        %1160 = vset.pattern.permute.xlu0 0
        %1161 = vperm.xlu0 %1160, %v719
        %v1162 = vpop.permute.xlu0 %1161
        %1165 = vset.pattern.permute.xlu0 0
        %1166 = vperm.xlu0 %1165, %v721
        %v1167 = vpop.permute.xlu0 %1166
        %1170 = vset.pattern.permute.xlu0 0
        %1171 = vperm.xlu0 %1170, %v723
        %v1172 = vpop.permute.xlu0 %1171
        %1175 = vset.pattern.permute.xlu0 0
        %1176 = vperm.xlu0 %1175, %v725
        %v1177 = vpop.permute.xlu0 %1176
        %1180 = vset.pattern.permute.xlu0 0
        %1181 = vperm.xlu0 %1180, %v727
        %v1182 = vpop.permute.xlu0 %1181
        %1185 = vset.pattern.permute.xlu0 0
        %1186 = vperm.xlu0 %1185, %v729
        %v1187 = vpop.permute.xlu0 %1186
        %1190 = vset.pattern.permute.xlu0 0
        %1191 = vperm.xlu0 %1190, %v731
        %v1192 = vpop.permute.xlu0 %1191
        %1195 = vset.pattern.permute.xlu0 0
        %1196 = vperm.xlu0 %1195, %v733
        %v1197 = vpop.permute.xlu0 %1196
        %1200 = vset.pattern.permute.xlu0 0
        %1201 = vperm.xlu0 %1200, %v735
        %v1202 = vpop.permute.xlu0 %1201
        %1205 = vset.pattern.permute.xlu0 0
        %1206 = vperm.xlu0 %1205, %v737
        %v1207 = vpop.permute.xlu0 %1206
        %1210 = vset.pattern.permute.xlu0 0
        %1211 = vperm.xlu0 %1210, %v739
        %v1212 = vpop.permute.xlu0 %1211
        %1215 = vset.pattern.permute.xlu0 0
        %1216 = vperm.xlu0 %1215, %v741
        %v1217 = vpop.permute.xlu0 %1216
        %v1219 = vmul.f32 %v1123, %v1142
        %v1220 = vmul.f32 %v1124, %v1147
        %v1221 = vmul.f32 %v1125, %v1152
        %v1222 = vmul.f32 %v1126, %v1157
        %v1223 = vmul.f32 %v1127, %v1162
        %v1224 = vmul.f32 %v1128, %v1167
        %v1225 = vmul.f32 %v1129, %v1172
        %v1226 = vmul.f32 %v1130, %v1177
        %v1227 = vmul.f32 %v1131, %v1182
        %v1228 = vmul.f32 %v1132, %v1187
        %v1229 = vmul.f32 %v1133, %v1192
        %v1230 = vmul.f32 %v1134, %v1197
        %v1231 = vmul.f32 %v1135, %v1202
        %v1232 = vmul.f32 %v1136, %v1207
        %v1233 = vmul.f32 %v1137, %v1212
        %v1234 = vmul.f32 %v1138, %v1217
        %v1235 = vld [vmem:[%s389] sm:$0xff]
        %v1236 = vld [vmem:[%s389 + $0x8] sm:$0xff]
        %v1237 = vld [vmem:[%s389 + $0x10] sm:$0xff]
        %v1238 = vld [vmem:[%s389 + $0x18] sm:$0xff]
        %v1239 = vld [vmem:[%s389 + $0x20] sm:$0xff]
        %v1240 = vld [vmem:[%s389 + $0x28] sm:$0xff]
        %v1241 = vld [vmem:[%s389 + $0x30] sm:$0xff]
        %v1242 = vld [vmem:[%s389 + $0x38] sm:$0xff]
        %v1243 = vld [vmem:[%s389 + $0x40] sm:$0xff]
        %v1244 = vld [vmem:[%s389 + $0x48] sm:$0xff]
        %v1245 = vld [vmem:[%s389 + $0x50] sm:$0xff]
        %v1246 = vld [vmem:[%s389 + $0x58] sm:$0xff]
        %v1247 = vld [vmem:[%s389 + $0x60] sm:$0xff]
        %v1248 = vld [vmem:[%s389 + $0x68] sm:$0xff]
        %v1249 = vld [vmem:[%s389 + $0x70] sm:$0xff]
        %v1250 = vld [vmem:[%s389 + $0x78] sm:$0xff]
        %v1251 = vand.u32 %v1250, 4294901760
        %1252 = vmatpush.msra.mxu0 %v1251
        %v1253 = vand.u32 %v1249, 4294901760
        %1254 = vmatpush.msra.mxu0 %v1253
        %v1255 = vand.u32 %v1248, 4294901760
        %1256 = vmatpush.msra.mxu0 %v1255
        %v1257 = vand.u32 %v1247, 4294901760
        %1258 = vmatpush.msra.mxu0 %v1257
        %v1259 = vand.u32 %v1246, 4294901760
        %1260 = vmatpush.msra.mxu0 %v1259
        %v1261 = vand.u32 %v1245, 4294901760
        %1262 = vmatpush.msra.mxu0 %v1261
        %v1263 = vand.u32 %v1244, 4294901760
        %1264 = vmatpush.msra.mxu0 %v1263
        %v1265 = vand.u32 %v1243, 4294901760
        %1266 = vmatpush.msra.mxu0 %v1265
        %v1267 = vand.u32 %v1242, 4294901760
        %1268 = vmatpush.msra.mxu0 %v1267
        %v1269 = vand.u32 %v1241, 4294901760
        %1270 = vmatpush.msra.mxu0 %v1269
        %v1271 = vand.u32 %v1240, 4294901760
        %1272 = vmatpush.msra.mxu0 %v1271
        %v1273 = vand.u32 %v1239, 4294901760
        %1274 = vmatpush.msra.mxu0 %v1273
        %v1275 = vand.u32 %v1238, 4294901760
        %1276 = vmatpush.msra.mxu0 %v1275
        %v1277 = vand.u32 %v1237, 4294901760
        %1278 = vmatpush.msra.mxu0 %v1277
        %v1279 = vand.u32 %v1236, 4294901760
        %1280 = vmatpush.msra.mxu0 %v1279
        %v1281 = vand.u32 %v1235, 4294901760
        %1282 = vmatpush.msra.mxu0 %v1281
        %v1283 = vand.u32 %v886, 4294901760
        %v1284 = vsub.f32 %v886, %v1283
        %v1285 = vand.u32 %v1284, 4294901760
        %v1286 = vsub.f32 %v1284, %v1285
        %v1287 = vand.u32 %v1286, 4294901760
        %1288 = vmatmul.f32.gmra.mxu0 %v1287
        %v1289 = vpop.f32.mrf.mxu0
        %v1290 = vadd.f32 0.0, %v1289
        %v1291 = vand.u32 %v887, 4294901760
        %v1292 = vsub.f32 %v887, %v1291
        %v1293 = vand.u32 %v1292, 4294901760
        %v1294 = vsub.f32 %v1292, %v1293
        %v1295 = vand.u32 %v1294, 4294901760
        %1296 = vmatmul.f32.gmra.mxu0 %v1295
        %v1297 = vpop.f32.mrf.mxu0
        %v1298 = vadd.f32 0.0, %v1297
        %v1299 = vand.u32 %v888, 4294901760
        %v1300 = vsub.f32 %v888, %v1299
        %v1301 = vand.u32 %v1300, 4294901760
        %v1302 = vsub.f32 %v1300, %v1301
        %v1303 = vand.u32 %v1302, 4294901760
        %1304 = vmatmul.f32.gmra.mxu0 %v1303
        %v1305 = vpop.f32.mrf.mxu0
        %v1306 = vadd.f32 0.0, %v1305
        %v1307 = vand.u32 %v889, 4294901760
        %v1308 = vsub.f32 %v889, %v1307
        %v1309 = vand.u32 %v1308, 4294901760
        %v1310 = vsub.f32 %v1308, %v1309
        %v1311 = vand.u32 %v1310, 4294901760
        %1312 = vmatmul.f32.gmra.mxu0 %v1311
        %v1313 = vpop.f32.mrf.mxu0
        %v1314 = vadd.f32 0.0, %v1313
        %v1315 = vand.u32 %v890, 4294901760
        %v1316 = vsub.f32 %v890, %v1315
        %v1317 = vand.u32 %v1316, 4294901760
        %v1318 = vsub.f32 %v1316, %v1317
        %v1319 = vand.u32 %v1318, 4294901760
        %1320 = vmatmul.f32.gmra.mxu0 %v1319
        %v1321 = vpop.f32.mrf.mxu0
        %v1322 = vadd.f32 0.0, %v1321
        %v1323 = vand.u32 %v891, 4294901760
        %v1324 = vsub.f32 %v891, %v1323
        %v1325 = vand.u32 %v1324, 4294901760
        %v1326 = vsub.f32 %v1324, %v1325
        %v1327 = vand.u32 %v1326, 4294901760
        %1328 = vmatmul.f32.gmra.mxu0 %v1327
        %v1329 = vpop.f32.mrf.mxu0
        %v1330 = vadd.f32 0.0, %v1329
        %v1331 = vand.u32 %v892, 4294901760
        %v1332 = vsub.f32 %v892, %v1331
        %v1333 = vand.u32 %v1332, 4294901760
        %v1334 = vsub.f32 %v1332, %v1333
        %v1335 = vand.u32 %v1334, 4294901760
        %1336 = vmatmul.f32.gmra.mxu0 %v1335
        %v1337 = vpop.f32.mrf.mxu0
        %v1338 = vadd.f32 0.0, %v1337
        %v1339 = vand.u32 %v893, 4294901760
        %v1340 = vsub.f32 %v893, %v1339
        %v1341 = vand.u32 %v1340, 4294901760
        %v1342 = vsub.f32 %v1340, %v1341
        %v1343 = vand.u32 %v1342, 4294901760
        %1344 = vmatmul.f32.gmra.mxu0 %v1343
        %v1345 = vpop.f32.mrf.mxu0
        %v1346 = vadd.f32 0.0, %v1345
        %v1347 = vand.u32 %v894, 4294901760
        %v1348 = vsub.f32 %v894, %v1347
        %v1349 = vand.u32 %v1348, 4294901760
        %v1350 = vsub.f32 %v1348, %v1349
        %v1351 = vand.u32 %v1350, 4294901760
        %1352 = vmatmul.f32.gmra.mxu0 %v1351
        %v1353 = vpop.f32.mrf.mxu0
        %v1354 = vadd.f32 0.0, %v1353
        %v1355 = vand.u32 %v895, 4294901760
        %v1356 = vsub.f32 %v895, %v1355
        %v1357 = vand.u32 %v1356, 4294901760
        %v1358 = vsub.f32 %v1356, %v1357
        %v1359 = vand.u32 %v1358, 4294901760
        %1360 = vmatmul.f32.gmra.mxu0 %v1359
        %v1361 = vpop.f32.mrf.mxu0
        %v1362 = vadd.f32 0.0, %v1361
        %v1363 = vand.u32 %v896, 4294901760
        %v1364 = vsub.f32 %v896, %v1363
        %v1365 = vand.u32 %v1364, 4294901760
        %v1366 = vsub.f32 %v1364, %v1365
        %v1367 = vand.u32 %v1366, 4294901760
        %1368 = vmatmul.f32.gmra.mxu0 %v1367
        %v1369 = vpop.f32.mrf.mxu0
        %v1370 = vadd.f32 0.0, %v1369
        %v1371 = vand.u32 %v897, 4294901760
        %v1372 = vsub.f32 %v897, %v1371
        %v1373 = vand.u32 %v1372, 4294901760
        %v1374 = vsub.f32 %v1372, %v1373
        %v1375 = vand.u32 %v1374, 4294901760
        %1376 = vmatmul.f32.gmra.mxu0 %v1375
        %v1377 = vpop.f32.mrf.mxu0
        %v1378 = vadd.f32 0.0, %v1377
        %v1379 = vand.u32 %v898, 4294901760
        %v1380 = vsub.f32 %v898, %v1379
        %v1381 = vand.u32 %v1380, 4294901760
        %v1382 = vsub.f32 %v1380, %v1381
        %v1383 = vand.u32 %v1382, 4294901760
        %1384 = vmatmul.f32.gmra.mxu0 %v1383
        %v1385 = vpop.f32.mrf.mxu0
        %v1386 = vadd.f32 0.0, %v1385
        %v1387 = vand.u32 %v899, 4294901760
        %v1388 = vsub.f32 %v899, %v1387
        %v1389 = vand.u32 %v1388, 4294901760
        %v1390 = vsub.f32 %v1388, %v1389
        %v1391 = vand.u32 %v1390, 4294901760
        %1392 = vmatmul.f32.gmra.mxu0 %v1391
        %v1393 = vpop.f32.mrf.mxu0
        %v1394 = vadd.f32 0.0, %v1393
        %v1395 = vand.u32 %v900, 4294901760
        %v1396 = vsub.f32 %v900, %v1395
        %v1397 = vand.u32 %v1396, 4294901760
        %v1398 = vsub.f32 %v1396, %v1397
        %v1399 = vand.u32 %v1398, 4294901760
        %1400 = vmatmul.f32.gmra.mxu0 %v1399
        %v1401 = vpop.f32.mrf.mxu0
        %v1402 = vadd.f32 0.0, %v1401
        %v1403 = vand.u32 %v901, 4294901760
        %v1404 = vsub.f32 %v901, %v1403
        %v1405 = vand.u32 %v1404, 4294901760
        %v1406 = vsub.f32 %v1404, %v1405
        %v1407 = vand.u32 %v1406, 4294901760
        %1408 = vmatmul.f32.gmra.mxu0 %v1407
        %v1409 = vpop.f32.mrf.mxu0
        %v1410 = vadd.f32 0.0, %v1409
        %1411 = vdwg.mxu0
        %v1412 = vand.u32 %v1250, 4294901760
        %v1413 = vsub.f32 %v1250, %v1412
        %v1414 = vand.u32 %v1413, 4294901760
        %v1415 = vsub.f32 %v1413, %v1414
        %v1416 = vand.u32 %v1415, 4294901760
        %1417 = vmatpush.msra.mxu0 %v1416
        %v1418 = vand.u32 %v1249, 4294901760
        %v1419 = vsub.f32 %v1249, %v1418
        %v1420 = vand.u32 %v1419, 4294901760
        %v1421 = vsub.f32 %v1419, %v1420
        %v1422 = vand.u32 %v1421, 4294901760
        %1423 = vmatpush.msra.mxu0 %v1422
        %v1424 = vand.u32 %v1248, 4294901760
        %v1425 = vsub.f32 %v1248, %v1424
        %v1426 = vand.u32 %v1425, 4294901760
        %v1427 = vsub.f32 %v1425, %v1426
        %v1428 = vand.u32 %v1427, 4294901760
        %1429 = vmatpush.msra.mxu0 %v1428
        %v1430 = vand.u32 %v1247, 4294901760
        %v1431 = vsub.f32 %v1247, %v1430
        %v1432 = vand.u32 %v1431, 4294901760
        %v1433 = vsub.f32 %v1431, %v1432
        %v1434 = vand.u32 %v1433, 4294901760
        %1435 = vmatpush.msra.mxu0 %v1434
        %v1436 = vand.u32 %v1246, 4294901760
        %v1437 = vsub.f32 %v1246, %v1436
        %v1438 = vand.u32 %v1437, 4294901760
        %v1439 = vsub.f32 %v1437, %v1438
        %v1440 = vand.u32 %v1439, 4294901760
        %1441 = vmatpush.msra.mxu0 %v1440
        %v1442 = vand.u32 %v1245, 4294901760
        %v1443 = vsub.f32 %v1245, %v1442
        %v1444 = vand.u32 %v1443, 4294901760
        %v1445 = vsub.f32 %v1443, %v1444
        %v1446 = vand.u32 %v1445, 4294901760
        %1447 = vmatpush.msra.mxu0 %v1446
        %v1448 = vand.u32 %v1244, 4294901760
        %v1449 = vsub.f32 %v1244, %v1448
        %v1450 = vand.u32 %v1449, 4294901760
        %v1451 = vsub.f32 %v1449, %v1450
        %v1452 = vand.u32 %v1451, 4294901760
        %1453 = vmatpush.msra.mxu0 %v1452
        %v1454 = vand.u32 %v1243, 4294901760
        %v1455 = vsub.f32 %v1243, %v1454
        %v1456 = vand.u32 %v1455, 4294901760
        %v1457 = vsub.f32 %v1455, %v1456
        %v1458 = vand.u32 %v1457, 4294901760
        %1459 = vmatpush.msra.mxu0 %v1458
        %v1460 = vand.u32 %v1242, 4294901760
        %v1461 = vsub.f32 %v1242, %v1460
        %v1462 = vand.u32 %v1461, 4294901760
        %v1463 = vsub.f32 %v1461, %v1462
        %v1464 = vand.u32 %v1463, 4294901760
        %1465 = vmatpush.msra.mxu0 %v1464
        %v1466 = vand.u32 %v1241, 4294901760
        %v1467 = vsub.f32 %v1241, %v1466
        %v1468 = vand.u32 %v1467, 4294901760
        %v1469 = vsub.f32 %v1467, %v1468
        %v1470 = vand.u32 %v1469, 4294901760
        %1471 = vmatpush.msra.mxu0 %v1470
        %v1472 = vand.u32 %v1240, 4294901760
        %v1473 = vsub.f32 %v1240, %v1472
        %v1474 = vand.u32 %v1473, 4294901760
        %v1475 = vsub.f32 %v1473, %v1474
        %v1476 = vand.u32 %v1475, 4294901760
        %1477 = vmatpush.msra.mxu0 %v1476
        %v1478 = vand.u32 %v1239, 4294901760
        %v1479 = vsub.f32 %v1239, %v1478
        %v1480 = vand.u32 %v1479, 4294901760
        %v1481 = vsub.f32 %v1479, %v1480
        %v1482 = vand.u32 %v1481, 4294901760
        %1483 = vmatpush.msra.mxu0 %v1482
        %v1484 = vand.u32 %v1238, 4294901760
        %v1485 = vsub.f32 %v1238, %v1484
        %v1486 = vand.u32 %v1485, 4294901760
        %v1487 = vsub.f32 %v1485, %v1486
        %v1488 = vand.u32 %v1487, 4294901760
        %1489 = vmatpush.msra.mxu0 %v1488
        %v1490 = vand.u32 %v1237, 4294901760
        %v1491 = vsub.f32 %v1237, %v1490
        %v1492 = vand.u32 %v1491, 4294901760
        %v1493 = vsub.f32 %v1491, %v1492
        %v1494 = vand.u32 %v1493, 4294901760
        %1495 = vmatpush.msra.mxu0 %v1494
        %v1496 = vand.u32 %v1236, 4294901760
        %v1497 = vsub.f32 %v1236, %v1496
        %v1498 = vand.u32 %v1497, 4294901760
        %v1499 = vsub.f32 %v1497, %v1498
        %v1500 = vand.u32 %v1499, 4294901760
        %1501 = vmatpush.msra.mxu0 %v1500
        %v1502 = vand.u32 %v1235, 4294901760
        %v1503 = vsub.f32 %v1235, %v1502
        %v1504 = vand.u32 %v1503, 4294901760
        %v1505 = vsub.f32 %v1503, %v1504
        %v1506 = vand.u32 %v1505, 4294901760
        %1507 = vmatpush.msra.mxu0 %v1506
        %v1508 = vand.u32 %v886, 4294901760
        %1509 = vmatmul.f32.gmra.mxu0 %v1508
        %v1510 = vpop.f32.mrf.mxu0
        %v1511 = vadd.f32 %v1290, %v1510
        %v1512 = vand.u32 %v887, 4294901760
        %1513 = vmatmul.f32.gmra.mxu0 %v1512
        %v1514 = vpop.f32.mrf.mxu0
        %v1515 = vadd.f32 %v1298, %v1514
        %v1516 = vand.u32 %v888, 4294901760
        %1517 = vmatmul.f32.gmra.mxu0 %v1516
        %v1518 = vpop.f32.mrf.mxu0
        %v1519 = vadd.f32 %v1306, %v1518
        %v1520 = vand.u32 %v889, 4294901760
        %1521 = vmatmul.f32.gmra.mxu0 %v1520
        %v1522 = vpop.f32.mrf.mxu0
        %v1523 = vadd.f32 %v1314, %v1522
        %v1524 = vand.u32 %v890, 4294901760
        %1525 = vmatmul.f32.gmra.mxu0 %v1524
        %v1526 = vpop.f32.mrf.mxu0
        %v1527 = vadd.f32 %v1322, %v1526
        %v1528 = vand.u32 %v891, 4294901760
        %1529 = vmatmul.f32.gmra.mxu0 %v1528
        %v1530 = vpop.f32.mrf.mxu0
        %v1531 = vadd.f32 %v1330, %v1530
        %v1532 = vand.u32 %v892, 4294901760
        %1533 = vmatmul.f32.gmra.mxu0 %v1532
        %v1534 = vpop.f32.mrf.mxu0
        %v1535 = vadd.f32 %v1338, %v1534
        %v1536 = vand.u32 %v893, 4294901760
        %1537 = vmatmul.f32.gmra.mxu0 %v1536
        %v1538 = vpop.f32.mrf.mxu0
        %v1539 = vadd.f32 %v1346, %v1538
        %v1540 = vand.u32 %v894, 4294901760
        %1541 = vmatmul.f32.gmra.mxu0 %v1540
        %v1542 = vpop.f32.mrf.mxu0
        %v1543 = vadd.f32 %v1354, %v1542
        %v1544 = vand.u32 %v895, 4294901760
        %1545 = vmatmul.f32.gmra.mxu0 %v1544
        %v1546 = vpop.f32.mrf.mxu0
        %v1547 = vadd.f32 %v1362, %v1546
        %v1548 = vand.u32 %v896, 4294901760
        %1549 = vmatmul.f32.gmra.mxu0 %v1548
        %v1550 = vpop.f32.mrf.mxu0
        %v1551 = vadd.f32 %v1370, %v1550
        %v1552 = vand.u32 %v897, 4294901760
        %1553 = vmatmul.f32.gmra.mxu0 %v1552
        %v1554 = vpop.f32.mrf.mxu0
        %v1555 = vadd.f32 %v1378, %v1554
        %v1556 = vand.u32 %v898, 4294901760
        %1557 = vmatmul.f32.gmra.mxu0 %v1556
        %v1558 = vpop.f32.mrf.mxu0
        %v1559 = vadd.f32 %v1386, %v1558
        %v1560 = vand.u32 %v899, 4294901760
        %1561 = vmatmul.f32.gmra.mxu0 %v1560
        %v1562 = vpop.f32.mrf.mxu0
        %v1563 = vadd.f32 %v1394, %v1562
        %v1564 = vand.u32 %v900, 4294901760
        %1565 = vmatmul.f32.gmra.mxu0 %v1564
        %v1566 = vpop.f32.mrf.mxu0
        %v1567 = vadd.f32 %v1402, %v1566
        %v1568 = vand.u32 %v901, 4294901760
        %1569 = vmatmul.f32.gmra.mxu0 %v1568
        %v1570 = vpop.f32.mrf.mxu0
        %v1571 = vadd.f32 %v1410, %v1570
        %1572 = vdwg.mxu0
        %v1573 = vand.u32 %v1250, 4294901760
        %v1574 = vsub.f32 %v1250, %v1573
        %1575 = vmatpush.msra.mxu0 %v1574
        %v1576 = vand.u32 %v1249, 4294901760
        %v1577 = vsub.f32 %v1249, %v1576
        %1578 = vmatpush.msra.mxu0 %v1577
        %v1579 = vand.u32 %v1248, 4294901760
        %v1580 = vsub.f32 %v1248, %v1579
        %1581 = vmatpush.msra.mxu0 %v1580
        %v1582 = vand.u32 %v1247, 4294901760
        %v1583 = vsub.f32 %v1247, %v1582
        %1584 = vmatpush.msra.mxu0 %v1583
        %v1585 = vand.u32 %v1246, 4294901760
        %v1586 = vsub.f32 %v1246, %v1585
        %1587 = vmatpush.msra.mxu0 %v1586
        %v1588 = vand.u32 %v1245, 4294901760
        %v1589 = vsub.f32 %v1245, %v1588
        %1590 = vmatpush.msra.mxu0 %v1589
        %v1591 = vand.u32 %v1244, 4294901760
        %v1592 = vsub.f32 %v1244, %v1591
        %1593 = vmatpush.msra.mxu0 %v1592
        %v1594 = vand.u32 %v1243, 4294901760
        %v1595 = vsub.f32 %v1243, %v1594
        %1596 = vmatpush.msra.mxu0 %v1595
        %v1597 = vand.u32 %v1242, 4294901760
        %v1598 = vsub.f32 %v1242, %v1597
        %1599 = vmatpush.msra.mxu0 %v1598
        %v1600 = vand.u32 %v1241, 4294901760
        %v1601 = vsub.f32 %v1241, %v1600
        %1602 = vmatpush.msra.mxu0 %v1601
        %v1603 = vand.u32 %v1240, 4294901760
        %v1604 = vsub.f32 %v1240, %v1603
        %1605 = vmatpush.msra.mxu0 %v1604
        %v1606 = vand.u32 %v1239, 4294901760
        %v1607 = vsub.f32 %v1239, %v1606
        %1608 = vmatpush.msra.mxu0 %v1607
        %v1609 = vand.u32 %v1238, 4294901760
        %v1610 = vsub.f32 %v1238, %v1609
        %1611 = vmatpush.msra.mxu0 %v1610
        %v1612 = vand.u32 %v1237, 4294901760
        %v1613 = vsub.f32 %v1237, %v1612
        %1614 = vmatpush.msra.mxu0 %v1613
        %v1615 = vand.u32 %v1236, 4294901760
        %v1616 = vsub.f32 %v1236, %v1615
        %1617 = vmatpush.msra.mxu0 %v1616
        %v1618 = vand.u32 %v1235, 4294901760
        %v1619 = vsub.f32 %v1235, %v1618
        %1620 = vmatpush.msra.mxu0 %v1619
        %v1621 = vand.u32 %v886, 4294901760
        %v1622 = vsub.f32 %v886, %v1621
        %1623 = vmatmul.f32.gmra.mxu0 %v1622
        %v1624 = vpop.f32.mrf.mxu0
        %v1625 = vadd.f32 %v1511, %v1624
        %v1626 = vand.u32 %v887, 4294901760
        %v1627 = vsub.f32 %v887, %v1626
        %1628 = vmatmul.f32.gmra.mxu0 %v1627
        %v1629 = vpop.f32.mrf.mxu0
        %v1630 = vadd.f32 %v1515, %v1629
        %v1631 = vand.u32 %v888, 4294901760
        %v1632 = vsub.f32 %v888, %v1631
        %1633 = vmatmul.f32.gmra.mxu0 %v1632
        %v1634 = vpop.f32.mrf.mxu0
        %v1635 = vadd.f32 %v1519, %v1634
        %v1636 = vand.u32 %v889, 4294901760
        %v1637 = vsub.f32 %v889, %v1636
        %1638 = vmatmul.f32.gmra.mxu0 %v1637
        %v1639 = vpop.f32.mrf.mxu0
        %v1640 = vadd.f32 %v1523, %v1639
        %v1641 = vand.u32 %v890, 4294901760
        %v1642 = vsub.f32 %v890, %v1641
        %1643 = vmatmul.f32.gmra.mxu0 %v1642
        %v1644 = vpop.f32.mrf.mxu0
        %v1645 = vadd.f32 %v1527, %v1644
        %v1646 = vand.u32 %v891, 4294901760
        %v1647 = vsub.f32 %v891, %v1646
        %1648 = vmatmul.f32.gmra.mxu0 %v1647
        %v1649 = vpop.f32.mrf.mxu0
        %v1650 = vadd.f32 %v1531, %v1649
        %v1651 = vand.u32 %v892, 4294901760
        %v1652 = vsub.f32 %v892, %v1651
        %1653 = vmatmul.f32.gmra.mxu0 %v1652
        %v1654 = vpop.f32.mrf.mxu0
        %v1655 = vadd.f32 %v1535, %v1654
        %v1656 = vand.u32 %v893, 4294901760
        %v1657 = vsub.f32 %v893, %v1656
        %1658 = vmatmul.f32.gmra.mxu0 %v1657
        %v1659 = vpop.f32.mrf.mxu0
        %v1660 = vadd.f32 %v1539, %v1659
        %v1661 = vand.u32 %v894, 4294901760
        %v1662 = vsub.f32 %v894, %v1661
        %1663 = vmatmul.f32.gmra.mxu0 %v1662
        %v1664 = vpop.f32.mrf.mxu0
        %v1665 = vadd.f32 %v1543, %v1664
        %v1666 = vand.u32 %v895, 4294901760
        %v1667 = vsub.f32 %v895, %v1666
        %1668 = vmatmul.f32.gmra.mxu0 %v1667
        %v1669 = vpop.f32.mrf.mxu0
        %v1670 = vadd.f32 %v1547, %v1669
        %v1671 = vand.u32 %v896, 4294901760
        %v1672 = vsub.f32 %v896, %v1671
        %1673 = vmatmul.f32.gmra.mxu0 %v1672
        %v1674 = vpop.f32.mrf.mxu0
        %v1675 = vadd.f32 %v1551, %v1674
        %v1676 = vand.u32 %v897, 4294901760
        %v1677 = vsub.f32 %v897, %v1676
        %1678 = vmatmul.f32.gmra.mxu0 %v1677
        %v1679 = vpop.f32.mrf.mxu0
        %v1680 = vadd.f32 %v1555, %v1679
        %v1681 = vand.u32 %v898, 4294901760
        %v1682 = vsub.f32 %v898, %v1681
        %1683 = vmatmul.f32.gmra.mxu0 %v1682
        %v1684 = vpop.f32.mrf.mxu0
        %v1685 = vadd.f32 %v1559, %v1684
        %v1686 = vand.u32 %v899, 4294901760
        %v1687 = vsub.f32 %v899, %v1686
        %1688 = vmatmul.f32.gmra.mxu0 %v1687
        %v1689 = vpop.f32.mrf.mxu0
        %v1690 = vadd.f32 %v1563, %v1689
        %v1691 = vand.u32 %v900, 4294901760
        %v1692 = vsub.f32 %v900, %v1691
        %1693 = vmatmul.f32.gmra.mxu0 %v1692
        %v1694 = vpop.f32.mrf.mxu0
        %v1695 = vadd.f32 %v1567, %v1694
        %v1696 = vand.u32 %v901, 4294901760
        %v1697 = vsub.f32 %v901, %v1696
        %1698 = vmatmul.f32.gmra.mxu0 %v1697
        %v1699 = vpop.f32.mrf.mxu0
        %v1700 = vadd.f32 %v1571, %v1699
        %1701 = vdwg.mxu0
        %v1702 = vand.u32 %v1250, 4294901760
        %1703 = vmatpush.msra.mxu0 %v1702
        %v1704 = vand.u32 %v1249, 4294901760
        %1705 = vmatpush.msra.mxu0 %v1704
        %v1706 = vand.u32 %v1248, 4294901760
        %1707 = vmatpush.msra.mxu0 %v1706
        %v1708 = vand.u32 %v1247, 4294901760
        %1709 = vmatpush.msra.mxu0 %v1708
        %v1710 = vand.u32 %v1246, 4294901760
        %1711 = vmatpush.msra.mxu0 %v1710
        %v1712 = vand.u32 %v1245, 4294901760
        %1713 = vmatpush.msra.mxu0 %v1712
        %v1714 = vand.u32 %v1244, 4294901760
        %1715 = vmatpush.msra.mxu0 %v1714
        %v1716 = vand.u32 %v1243, 4294901760
        %1717 = vmatpush.msra.mxu0 %v1716
        %v1718 = vand.u32 %v1242, 4294901760
        %1719 = vmatpush.msra.mxu0 %v1718
        %v1720 = vand.u32 %v1241, 4294901760
        %1721 = vmatpush.msra.mxu0 %v1720
        %v1722 = vand.u32 %v1240, 4294901760
        %1723 = vmatpush.msra.mxu0 %v1722
        %v1724 = vand.u32 %v1239, 4294901760
        %1725 = vmatpush.msra.mxu0 %v1724
        %v1726 = vand.u32 %v1238, 4294901760
        %1727 = vmatpush.msra.mxu0 %v1726
        %v1728 = vand.u32 %v1237, 4294901760
        %1729 = vmatpush.msra.mxu0 %v1728
        %v1730 = vand.u32 %v1236, 4294901760
        %1731 = vmatpush.msra.mxu0 %v1730
        %v1732 = vand.u32 %v1235, 4294901760
        %1733 = vmatpush.msra.mxu0 %v1732
        %v1734 = vand.u32 %v886, 4294901760
        %v1735 = vsub.f32 %v886, %v1734
        %v1736 = vand.u32 %v1735, 4294901760
        %1737 = vmatmul.f32.gmra.mxu0 %v1736
        %v1738 = vpop.f32.mrf.mxu0
        %v1739 = vadd.f32 %v1625, %v1738
        %v1740 = vand.u32 %v887, 4294901760
        %v1741 = vsub.f32 %v887, %v1740
        %v1742 = vand.u32 %v1741, 4294901760
        %1743 = vmatmul.f32.gmra.mxu0 %v1742
        %v1744 = vpop.f32.mrf.mxu0
        %v1745 = vadd.f32 %v1630, %v1744
        %v1746 = vand.u32 %v888, 4294901760
        %v1747 = vsub.f32 %v888, %v1746
        %v1748 = vand.u32 %v1747, 4294901760
        %1749 = vmatmul.f32.gmra.mxu0 %v1748
        %v1750 = vpop.f32.mrf.mxu0
        %v1751 = vadd.f32 %v1635, %v1750
        %v1752 = vand.u32 %v889, 4294901760
        %v1753 = vsub.f32 %v889, %v1752
        %v1754 = vand.u32 %v1753, 4294901760
        %1755 = vmatmul.f32.gmra.mxu0 %v1754
        %v1756 = vpop.f32.mrf.mxu0
        %v1757 = vadd.f32 %v1640, %v1756
        %v1758 = vand.u32 %v890, 4294901760
        %v1759 = vsub.f32 %v890, %v1758
        %v1760 = vand.u32 %v1759, 4294901760
        %1761 = vmatmul.f32.gmra.mxu0 %v1760
        %v1762 = vpop.f32.mrf.mxu0
        %v1763 = vadd.f32 %v1645, %v1762
        %v1764 = vand.u32 %v891, 4294901760
        %v1765 = vsub.f32 %v891, %v1764
        %v1766 = vand.u32 %v1765, 4294901760
        %1767 = vmatmul.f32.gmra.mxu0 %v1766
        %v1768 = vpop.f32.mrf.mxu0
        %v1769 = vadd.f32 %v1650, %v1768
        %v1770 = vand.u32 %v892, 4294901760
        %v1771 = vsub.f32 %v892, %v1770
        %v1772 = vand.u32 %v1771, 4294901760
        %1773 = vmatmul.f32.gmra.mxu0 %v1772
        %v1774 = vpop.f32.mrf.mxu0
        %v1775 = vadd.f32 %v1655, %v1774
        %v1776 = vand.u32 %v893, 4294901760
        %v1777 = vsub.f32 %v893, %v1776
        %v1778 = vand.u32 %v1777, 4294901760
        %1779 = vmatmul.f32.gmra.mxu0 %v1778
        %v1780 = vpop.f32.mrf.mxu0
        %v1781 = vadd.f32 %v1660, %v1780
        %v1782 = vand.u32 %v894, 4294901760
        %v1783 = vsub.f32 %v894, %v1782
        %v1784 = vand.u32 %v1783, 4294901760
        %1785 = vmatmul.f32.gmra.mxu0 %v1784
        %v1786 = vpop.f32.mrf.mxu0
        %v1787 = vadd.f32 %v1665, %v1786
        %v1788 = vand.u32 %v895, 4294901760
        %v1789 = vsub.f32 %v895, %v1788
        %v1790 = vand.u32 %v1789, 4294901760
        %1791 = vmatmul.f32.gmra.mxu0 %v1790
        %v1792 = vpop.f32.mrf.mxu0
        %v1793 = vadd.f32 %v1670, %v1792
        %v1794 = vand.u32 %v896, 4294901760
        %v1795 = vsub.f32 %v896, %v1794
        %v1796 = vand.u32 %v1795, 4294901760
        %1797 = vmatmul.f32.gmra.mxu0 %v1796
        %v1798 = vpop.f32.mrf.mxu0
        %v1799 = vadd.f32 %v1675, %v1798
        %v1800 = vand.u32 %v897, 4294901760
        %v1801 = vsub.f32 %v897, %v1800
        %v1802 = vand.u32 %v1801, 4294901760
        %1803 = vmatmul.f32.gmra.mxu0 %v1802
        %v1804 = vpop.f32.mrf.mxu0
        %v1805 = vadd.f32 %v1680, %v1804
        %v1806 = vand.u32 %v898, 4294901760
        %v1807 = vsub.f32 %v898, %v1806
        %v1808 = vand.u32 %v1807, 4294901760
        %1809 = vmatmul.f32.gmra.mxu0 %v1808
        %v1810 = vpop.f32.mrf.mxu0
        %v1811 = vadd.f32 %v1685, %v1810
        %v1812 = vand.u32 %v899, 4294901760
        %v1813 = vsub.f32 %v899, %v1812
        %v1814 = vand.u32 %v1813, 4294901760
        %1815 = vmatmul.f32.gmra.mxu0 %v1814
        %v1816 = vpop.f32.mrf.mxu0
        %v1817 = vadd.f32 %v1690, %v1816
        %v1818 = vand.u32 %v900, 4294901760
        %v1819 = vsub.f32 %v900, %v1818
        %v1820 = vand.u32 %v1819, 4294901760
        %1821 = vmatmul.f32.gmra.mxu0 %v1820
        %v1822 = vpop.f32.mrf.mxu0
        %v1823 = vadd.f32 %v1695, %v1822
        %v1824 = vand.u32 %v901, 4294901760
        %v1825 = vsub.f32 %v901, %v1824
        %v1826 = vand.u32 %v1825, 4294901760
        %1827 = vmatmul.f32.gmra.mxu0 %v1826
        %v1828 = vpop.f32.mrf.mxu0
        %v1829 = vadd.f32 %v1700, %v1828
        %1830 = vdwg.mxu0
        %v1831 = vand.u32 %v1250, 4294901760
        %v1832 = vsub.f32 %v1250, %v1831
        %v1833 = vand.u32 %v1832, 4294901760
        %1834 = vmatpush.msra.mxu0 %v1833
        %v1835 = vand.u32 %v1249, 4294901760
        %v1836 = vsub.f32 %v1249, %v1835
        %v1837 = vand.u32 %v1836, 4294901760
        %1838 = vmatpush.msra.mxu0 %v1837
        %v1839 = vand.u32 %v1248, 4294901760
        %v1840 = vsub.f32 %v1248, %v1839
        %v1841 = vand.u32 %v1840, 4294901760
        %1842 = vmatpush.msra.mxu0 %v1841
        %v1843 = vand.u32 %v1247, 4294901760
        %v1844 = vsub.f32 %v1247, %v1843
        %v1845 = vand.u32 %v1844, 4294901760
        %1846 = vmatpush.msra.mxu0 %v1845
        %v1847 = vand.u32 %v1246, 4294901760
        %v1848 = vsub.f32 %v1246, %v1847
        %v1849 = vand.u32 %v1848, 4294901760
        %1850 = vmatpush.msra.mxu0 %v1849
        %v1851 = vand.u32 %v1245, 4294901760
        %v1852 = vsub.f32 %v1245, %v1851
        %v1853 = vand.u32 %v1852, 4294901760
        %1854 = vmatpush.msra.mxu0 %v1853
        %v1855 = vand.u32 %v1244, 4294901760
        %v1856 = vsub.f32 %v1244, %v1855
        %v1857 = vand.u32 %v1856, 4294901760
        %1858 = vmatpush.msra.mxu0 %v1857
        %v1859 = vand.u32 %v1243, 4294901760
        %v1860 = vsub.f32 %v1243, %v1859
        %v1861 = vand.u32 %v1860, 4294901760
        %1862 = vmatpush.msra.mxu0 %v1861
        %v1863 = vand.u32 %v1242, 4294901760
        %v1864 = vsub.f32 %v1242, %v1863
        %v1865 = vand.u32 %v1864, 4294901760
        %1866 = vmatpush.msra.mxu0 %v1865
        %v1867 = vand.u32 %v1241, 4294901760
        %v1868 = vsub.f32 %v1241, %v1867
        %v1869 = vand.u32 %v1868, 4294901760
        %1870 = vmatpush.msra.mxu0 %v1869
        %v1871 = vand.u32 %v1240, 4294901760
        %v1872 = vsub.f32 %v1240, %v1871
        %v1873 = vand.u32 %v1872, 4294901760
        %1874 = vmatpush.msra.mxu0 %v1873
        %v1875 = vand.u32 %v1239, 4294901760
        %v1876 = vsub.f32 %v1239, %v1875
        %v1877 = vand.u32 %v1876, 4294901760
        %1878 = vmatpush.msra.mxu0 %v1877
        %v1879 = vand.u32 %v1238, 4294901760
        %v1880 = vsub.f32 %v1238, %v1879
        %v1881 = vand.u32 %v1880, 4294901760
        %1882 = vmatpush.msra.mxu0 %v1881
        %v1883 = vand.u32 %v1237, 4294901760
        %v1884 = vsub.f32 %v1237, %v1883
        %v1885 = vand.u32 %v1884, 4294901760
        %1886 = vmatpush.msra.mxu0 %v1885
        %v1887 = vand.u32 %v1236, 4294901760
        %v1888 = vsub.f32 %v1236, %v1887
        %v1889 = vand.u32 %v1888, 4294901760
        %1890 = vmatpush.msra.mxu0 %v1889
        %v1891 = vand.u32 %v1235, 4294901760
        %v1892 = vsub.f32 %v1235, %v1891
        %v1893 = vand.u32 %v1892, 4294901760
        %1894 = vmatpush.msra.mxu0 %v1893
        %v1895 = vand.u32 %v886, 4294901760
        %1896 = vmatmul.f32.gmra.mxu0 %v1895
        %v1897 = vpop.f32.mrf.mxu0
        %v1898 = vadd.f32 %v1739, %v1897
        %v1899 = vand.u32 %v887, 4294901760
        %1900 = vmatmul.f32.gmra.mxu0 %v1899
        %v1901 = vpop.f32.mrf.mxu0
        %v1902 = vadd.f32 %v1745, %v1901
        %v1903 = vand.u32 %v888, 4294901760
        %1904 = vmatmul.f32.gmra.mxu0 %v1903
        %v1905 = vpop.f32.mrf.mxu0
        %v1906 = vadd.f32 %v1751, %v1905
        %v1907 = vand.u32 %v889, 4294901760
        %1908 = vmatmul.f32.gmra.mxu0 %v1907
        %v1909 = vpop.f32.mrf.mxu0
        %v1910 = vadd.f32 %v1757, %v1909
        %v1911 = vand.u32 %v890, 4294901760
        %1912 = vmatmul.f32.gmra.mxu0 %v1911
        %v1913 = vpop.f32.mrf.mxu0
        %v1914 = vadd.f32 %v1763, %v1913
        %v1915 = vand.u32 %v891, 4294901760
        %1916 = vmatmul.f32.gmra.mxu0 %v1915
        %v1917 = vpop.f32.mrf.mxu0
        %v1918 = vadd.f32 %v1769, %v1917
        %v1919 = vand.u32 %v892, 4294901760
        %1920 = vmatmul.f32.gmra.mxu0 %v1919
        %v1921 = vpop.f32.mrf.mxu0
        %v1922 = vadd.f32 %v1775, %v1921
        %v1923 = vand.u32 %v893, 4294901760
        %1924 = vmatmul.f32.gmra.mxu0 %v1923
        %v1925 = vpop.f32.mrf.mxu0
        %v1926 = vadd.f32 %v1781, %v1925
        %v1927 = vand.u32 %v894, 4294901760
        %1928 = vmatmul.f32.gmra.mxu0 %v1927
        %v1929 = vpop.f32.mrf.mxu0
        %v1930 = vadd.f32 %v1787, %v1929
        %v1931 = vand.u32 %v895, 4294901760
        %1932 = vmatmul.f32.gmra.mxu0 %v1931
        %v1933 = vpop.f32.mrf.mxu0
        %v1934 = vadd.f32 %v1793, %v1933
        %v1935 = vand.u32 %v896, 4294901760
        %1936 = vmatmul.f32.gmra.mxu0 %v1935
        %v1937 = vpop.f32.mrf.mxu0
        %v1938 = vadd.f32 %v1799, %v1937
        %v1939 = vand.u32 %v897, 4294901760
        %1940 = vmatmul.f32.gmra.mxu0 %v1939
        %v1941 = vpop.f32.mrf.mxu0
        %v1942 = vadd.f32 %v1805, %v1941
        %v1943 = vand.u32 %v898, 4294901760
        %1944 = vmatmul.f32.gmra.mxu0 %v1943
        %v1945 = vpop.f32.mrf.mxu0
        %v1946 = vadd.f32 %v1811, %v1945
        %v1947 = vand.u32 %v899, 4294901760
        %1948 = vmatmul.f32.gmra.mxu0 %v1947
        %v1949 = vpop.f32.mrf.mxu0
        %v1950 = vadd.f32 %v1817, %v1949
        %v1951 = vand.u32 %v900, 4294901760
        %1952 = vmatmul.f32.gmra.mxu0 %v1951
        %v1953 = vpop.f32.mrf.mxu0
        %v1954 = vadd.f32 %v1823, %v1953
        %v1955 = vand.u32 %v901, 4294901760
        %1956 = vmatmul.f32.gmra.mxu0 %v1955
        %v1957 = vpop.f32.mrf.mxu0
        %v1958 = vadd.f32 %v1829, %v1957
        %1959 = vdwg.mxu0
        %v1960 = vand.u32 %v1250, 4294901760
        %1961 = vmatpush.msra.mxu0 %v1960
        %v1962 = vand.u32 %v1249, 4294901760
        %1963 = vmatpush.msra.mxu0 %v1962
        %v1964 = vand.u32 %v1248, 4294901760
        %1965 = vmatpush.msra.mxu0 %v1964
        %v1966 = vand.u32 %v1247, 4294901760
        %1967 = vmatpush.msra.mxu0 %v1966
        %v1968 = vand.u32 %v1246, 4294901760
        %1969 = vmatpush.msra.mxu0 %v1968
        %v1970 = vand.u32 %v1245, 4294901760
        %1971 = vmatpush.msra.mxu0 %v1970
        %v1972 = vand.u32 %v1244, 4294901760
        %1973 = vmatpush.msra.mxu0 %v1972
        %v1974 = vand.u32 %v1243, 4294901760
        %1975 = vmatpush.msra.mxu0 %v1974
        %v1976 = vand.u32 %v1242, 4294901760
        %1977 = vmatpush.msra.mxu0 %v1976
        %v1978 = vand.u32 %v1241, 4294901760
        %1979 = vmatpush.msra.mxu0 %v1978
        %v1980 = vand.u32 %v1240, 4294901760
        %1981 = vmatpush.msra.mxu0 %v1980
        %v1982 = vand.u32 %v1239, 4294901760
        %1983 = vmatpush.msra.mxu0 %v1982
        %v1984 = vand.u32 %v1238, 4294901760
        %1985 = vmatpush.msra.mxu0 %v1984
        %v1986 = vand.u32 %v1237, 4294901760
        %1987 = vmatpush.msra.mxu0 %v1986
        %v1988 = vand.u32 %v1236, 4294901760
        %1989 = vmatpush.msra.mxu0 %v1988
        %v1990 = vand.u32 %v1235, 4294901760
        %1991 = vmatpush.msra.mxu0 %v1990
        %v1992 = vand.u32 %v886, 4294901760
        %1993 = vmatmul.f32.gmra.mxu0 %v1992
        %v1994 = vpop.f32.mrf.mxu0
        %v1995 = vadd.f32 %v1898, %v1994
        %v1996 = vand.u32 %v887, 4294901760
        %1997 = vmatmul.f32.gmra.mxu0 %v1996
        %v1998 = vpop.f32.mrf.mxu0
        %v1999 = vadd.f32 %v1902, %v1998
        %v2000 = vand.u32 %v888, 4294901760
        %2001 = vmatmul.f32.gmra.mxu0 %v2000
        %v2002 = vpop.f32.mrf.mxu0
        %v2003 = vadd.f32 %v1906, %v2002
        %v2004 = vand.u32 %v889, 4294901760
        %2005 = vmatmul.f32.gmra.mxu0 %v2004
        %v2006 = vpop.f32.mrf.mxu0
        %v2007 = vadd.f32 %v1910, %v2006
        %v2008 = vand.u32 %v890, 4294901760
        %2009 = vmatmul.f32.gmra.mxu0 %v2008
        %v2010 = vpop.f32.mrf.mxu0
        %v2011 = vadd.f32 %v1914, %v2010
        %v2012 = vand.u32 %v891, 4294901760
        %2013 = vmatmul.f32.gmra.mxu0 %v2012
        %v2014 = vpop.f32.mrf.mxu0
        %v2015 = vadd.f32 %v1918, %v2014
        %v2016 = vand.u32 %v892, 4294901760
        %2017 = vmatmul.f32.gmra.mxu0 %v2016
        %v2018 = vpop.f32.mrf.mxu0
        %v2019 = vadd.f32 %v1922, %v2018
        %v2020 = vand.u32 %v893, 4294901760
        %2021 = vmatmul.f32.gmra.mxu0 %v2020
        %v2022 = vpop.f32.mrf.mxu0
        %v2023 = vadd.f32 %v1926, %v2022
        %v2024 = vand.u32 %v894, 4294901760
        %2025 = vmatmul.f32.gmra.mxu0 %v2024
        %v2026 = vpop.f32.mrf.mxu0
        %v2027 = vadd.f32 %v1930, %v2026
        %v2028 = vand.u32 %v895, 4294901760
        %2029 = vmatmul.f32.gmra.mxu0 %v2028
        %v2030 = vpop.f32.mrf.mxu0
        %v2031 = vadd.f32 %v1934, %v2030
        %v2032 = vand.u32 %v896, 4294901760
        %2033 = vmatmul.f32.gmra.mxu0 %v2032
        %v2034 = vpop.f32.mrf.mxu0
        %v2035 = vadd.f32 %v1938, %v2034
        %v2036 = vand.u32 %v897, 4294901760
        %2037 = vmatmul.f32.gmra.mxu0 %v2036
        %v2038 = vpop.f32.mrf.mxu0
        %v2039 = vadd.f32 %v1942, %v2038
        %v2040 = vand.u32 %v898, 4294901760
        %2041 = vmatmul.f32.gmra.mxu0 %v2040
        %v2042 = vpop.f32.mrf.mxu0
        %v2043 = vadd.f32 %v1946, %v2042
        %v2044 = vand.u32 %v899, 4294901760
        %2045 = vmatmul.f32.gmra.mxu0 %v2044
        %v2046 = vpop.f32.mrf.mxu0
        %v2047 = vadd.f32 %v1950, %v2046
        %v2048 = vand.u32 %v900, 4294901760
        %2049 = vmatmul.f32.gmra.mxu0 %v2048
        %v2050 = vpop.f32.mrf.mxu0
        %v2051 = vadd.f32 %v1954, %v2050
        %v2052 = vand.u32 %v901, 4294901760
        %2053 = vmatmul.f32.gmra.mxu0 %v2052
        %v2054 = vpop.f32.mrf.mxu0
        %v2055 = vadd.f32 %v1958, %v2054
        %2056 = vdwg.mxu0
        %v2057 = vadd.f32 %v1219, %v1995
        %v2058 = vadd.f32 %v1220, %v1999
        %v2059 = vadd.f32 %v1221, %v2003
        %v2060 = vadd.f32 %v1222, %v2007
        %v2061 = vadd.f32 %v1223, %v2011
        %v2062 = vadd.f32 %v1224, %v2015
        %v2063 = vadd.f32 %v1225, %v2019
        %v2064 = vadd.f32 %v1226, %v2023
        %v2065 = vadd.f32 %v1227, %v2027
        %v2066 = vadd.f32 %v1228, %v2031
        %v2067 = vadd.f32 %v1229, %v2035
        %v2068 = vadd.f32 %v1230, %v2039
        %v2069 = vadd.f32 %v1231, %v2043
        %v2070 = vadd.f32 %v1232, %v2047
        %v2071 = vadd.f32 %v1233, %v2051
        %v2072 = vadd.f32 %v1234, %v2055
        %2073 = vst [vmem:[#allocation2] sm:$0xff] %v2057
        %2074 = vst [vmem:[#allocation2 + $0x8] sm:$0xff] %v2058
        %2075 = vst [vmem:[#allocation2 + $0x10] sm:$0xff] %v2059
        %2076 = vst [vmem:[#allocation2 + $0x18] sm:$0xff] %v2060
        %2077 = vst [vmem:[#allocation2 + $0x20] sm:$0xff] %v2061
        %2078 = vst [vmem:[#allocation2 + $0x28] sm:$0xff] %v2062
        %2079 = vst [vmem:[#allocation2 + $0x30] sm:$0xff] %v2063
        %2080 = vst [vmem:[#allocation2 + $0x38] sm:$0xff] %v2064
        %2081 = vst [vmem:[#allocation2 + $0x40] sm:$0xff] %v2065
        %2082 = vst [vmem:[#allocation2 + $0x48] sm:$0xff] %v2066
        %2083 = vst [vmem:[#allocation2 + $0x50] sm:$0xff] %v2067
        %2084 = vst [vmem:[#allocation2 + $0x58] sm:$0xff] %v2068
        %2085 = vst [vmem:[#allocation2 + $0x60] sm:$0xff] %v2069
        %2086 = vst [vmem:[#allocation2 + $0x68] sm:$0xff] %v2070
        %2087 = vst [vmem:[#allocation2 + $0x70] sm:$0xff] %v2071
        %2088 = vst [vmem:[#allocation2 + $0x78] sm:$0xff] %v2072
        %2089 = vst.msk [vmem:[#allocation3] sm:$0xff] %vm982, %v678
        %2090 = vst.msk [vmem:[#allocation3 + $0x8] sm:$0xff] %vm982, %v679
        %2091 = vst.msk [vmem:[#allocation3 + $0x10] sm:$0xff] %vm982, %v680
        %2092 = vst.msk [vmem:[#allocation3 + $0x18] sm:$0xff] %vm982, %v681
        %2093 = vst.msk [vmem:[#allocation3 + $0x20] sm:$0xff] %vm982, %v682
        %2094 = vst.msk [vmem:[#allocation3 + $0x28] sm:$0xff] %vm982, %v683
        %2095 = vst.msk [vmem:[#allocation3 + $0x30] sm:$0xff] %vm982, %v684
        %2096 = vst.msk [vmem:[#allocation3 + $0x38] sm:$0xff] %vm982, %v685
        %2097 = vst.msk [vmem:[#allocation3 + $0x40] sm:$0xff] %vm982, %v686
        %2098 = vst.msk [vmem:[#allocation3 + $0x48] sm:$0xff] %vm982, %v687
        %2099 = vst.msk [vmem:[#allocation3 + $0x50] sm:$0xff] %vm982, %v688
        %2100 = vst.msk [vmem:[#allocation3 + $0x58] sm:$0xff] %vm982, %v689
        %2101 = vst.msk [vmem:[#allocation3 + $0x60] sm:$0xff] %vm982, %v690
        %2102 = vst.msk [vmem:[#allocation3 + $0x68] sm:$0xff] %vm982, %v691
        %2103 = vst.msk [vmem:[#allocation3 + $0x70] sm:$0xff] %vm982, %v692
        %2104 = vst.msk [vmem:[#allocation3 + $0x78] sm:$0xff] %vm982, %v693
        %p2105 = scmp.eq.s32.totalorder %s21, 1
        // Predicated region
        $region87: #{gat_forward.2} parent=73 // pred_check
          %p2106 = pneg %p2105
        $region88: #{gat_forward.2} parent=73 // pred_check_branch
          %2108 = sbr.rel (%p2106) target = $region90
        $region89: #{gat_forward.2} parent=73 // pred_region
          %v2109 = vlaneseq
          %v2110 = vshrl.u32 %v2109, 7
          %v2111 = vadd.s32 %v2110, 8
          %v2112 = vadd.s32 %v2110, 16
          %v2113 = vadd.s32 %v2110, 24
          %v2114 = vadd.s32 %v2110, 32
          %v2115 = vadd.s32 %v2110, 40
          %v2116 = vadd.s32 %v2110, 48
          %v2117 = vadd.s32 %v2110, 56
          %v2118 = vadd.s32 %v2110, 64
          %v2119 = vadd.s32 %v2110, 72
          %v2120 = vadd.s32 %v2110, 80
          %v2121 = vadd.s32 %v2110, 88
          %v2122 = vadd.s32 %v2110, 96
          %v2123 = vadd.s32 %v2110, 104
          %v2124 = vadd.s32 %v2110, 112
          %v2125 = vadd.s32 %v2110, 120
          %v2126 = vstv %s999
          %v2127 = vadd.s32 %v2126, %v2110
          %v2128 = vadd.s32 %v2126, %v2111
          %v2129 = vadd.s32 %v2126, %v2112
          %v2130 = vadd.s32 %v2126, %v2113
          %v2131 = vadd.s32 %v2126, %v2114
          %v2132 = vadd.s32 %v2126, %v2115
          %v2133 = vadd.s32 %v2126, %v2116
          %v2134 = vadd.s32 %v2126, %v2117
          %v2135 = vadd.s32 %v2126, %v2118
          %v2136 = vadd.s32 %v2126, %v2119
          %v2137 = vadd.s32 %v2126, %v2120
          %v2138 = vadd.s32 %v2126, %v2121
          %v2139 = vadd.s32 %v2126, %v2122
          %v2140 = vadd.s32 %v2126, %v2123
          %v2141 = vadd.s32 %v2126, %v2124
          %v2142 = vadd.s32 %v2126, %v2125
          %vm2143 = vcmp.lt.s32.totalorder %v2127, 90
          %vm2144 = vcmp.lt.s32.totalorder %v2128, 90
          %vm2145 = vcmp.lt.s32.totalorder %v2129, 90
          %vm2146 = vcmp.lt.s32.totalorder %v2130, 90
          %vm2147 = vcmp.lt.s32.totalorder %v2131, 90
          %vm2148 = vcmp.lt.s32.totalorder %v2132, 90
          %vm2149 = vcmp.lt.s32.totalorder %v2133, 90
          %vm2150 = vcmp.lt.s32.totalorder %v2134, 90
          %vm2151 = vcmp.lt.s32.totalorder %v2135, 90
          %vm2152 = vcmp.lt.s32.totalorder %v2136, 90
          %vm2153 = vcmp.lt.s32.totalorder %v2137, 90
          %vm2154 = vcmp.lt.s32.totalorder %v2138, 90
          %vm2155 = vcmp.lt.s32.totalorder %v2139, 90
          %vm2156 = vcmp.lt.s32.totalorder %v2140, 90
          %vm2157 = vcmp.lt.s32.totalorder %v2141, 90
          %vm2158 = vcmp.lt.s32.totalorder %v2142, 90
          %v2159 = vld [vmem:[#allocation5] sm:$0xff]
          %v2160 = vld [vmem:[#allocation5 + $0x8] sm:$0xff]
          %v2161 = vld [vmem:[#allocation5 + $0x10] sm:$0xff]
          %v2162 = vld [vmem:[#allocation5 + $0x18] sm:$0xff]
          %v2163 = vld [vmem:[#allocation5 + $0x20] sm:$0xff]
          %v2164 = vld [vmem:[#allocation5 + $0x28] sm:$0xff]
          %v2165 = vld [vmem:[#allocation5 + $0x30] sm:$0xff]
          %v2166 = vld [vmem:[#allocation5 + $0x38] sm:$0xff]
          %v2167 = vld [vmem:[#allocation5 + $0x40] sm:$0xff]
          %v2168 = vld [vmem:[#allocation5 + $0x48] sm:$0xff]
          %v2169 = vld [vmem:[#allocation5 + $0x50] sm:$0xff]
          %v2170 = vld [vmem:[#allocation5 + $0x58] sm:$0xff]
          %v2171 = vld [vmem:[#allocation5 + $0x60] sm:$0xff]
          %v2172 = vld [vmem:[#allocation5 + $0x68] sm:$0xff]
          %v2173 = vld [vmem:[#allocation5 + $0x70] sm:$0xff]
          %v2174 = vld [vmem:[#allocation5 + $0x78] sm:$0xff]
          %v2175 = vld [vmem:[#allocation4] sm:$0xff]
          %v2176 = vld [vmem:[#allocation4 + $0x8] sm:$0xff]
          %v2177 = vld [vmem:[#allocation4 + $0x10] sm:$0xff]
          %v2178 = vld [vmem:[#allocation4 + $0x18] sm:$0xff]
          %v2179 = vld [vmem:[#allocation4 + $0x20] sm:$0xff]
          %v2180 = vld [vmem:[#allocation4 + $0x28] sm:$0xff]
          %v2181 = vld [vmem:[#allocation4 + $0x30] sm:$0xff]
          %v2182 = vld [vmem:[#allocation4 + $0x38] sm:$0xff]
          %v2183 = vld [vmem:[#allocation4 + $0x40] sm:$0xff]
          %v2184 = vld [vmem:[#allocation4 + $0x48] sm:$0xff]
          %v2185 = vld [vmem:[#allocation4 + $0x50] sm:$0xff]
          %v2186 = vld [vmem:[#allocation4 + $0x58] sm:$0xff]
          %v2187 = vld [vmem:[#allocation4 + $0x60] sm:$0xff]
          %v2188 = vld [vmem:[#allocation4 + $0x68] sm:$0xff]
          %v2189 = vld [vmem:[#allocation4 + $0x70] sm:$0xff]
          %v2190 = vld [vmem:[#allocation4 + $0x78] sm:$0xff]
          %v2191 = vsel %vm2143, %v2159, %v2175
          %v2192 = vsel %vm2144, %v2160, %v2176
          %v2193 = vsel %vm2145, %v2161, %v2177
          %v2194 = vsel %vm2146, %v2162, %v2178
          %v2195 = vsel %vm2147, %v2163, %v2179
          %v2196 = vsel %vm2148, %v2164, %v2180
          %v2197 = vsel %vm2149, %v2165, %v2181
          %v2198 = vsel %vm2150, %v2166, %v2182
          %v2199 = vsel %vm2151, %v2167, %v2183
          %v2200 = vsel %vm2152, %v2168, %v2184
          %v2201 = vsel %vm2153, %v2169, %v2185
          %v2202 = vsel %vm2154, %v2170, %v2186
          %v2203 = vsel %vm2155, %v2171, %v2187
          %v2204 = vsel %vm2156, %v2172, %v2188
          %v2205 = vsel %vm2157, %v2173, %v2189
          %v2206 = vsel %vm2158, %v2174, %v2190
          %v2207 = vld [vmem:[#allocation2] sm:$0xff]
          %v2208 = vld [vmem:[#allocation2 + $0x8] sm:$0xff]
          %v2209 = vld [vmem:[#allocation2 + $0x10] sm:$0xff]
          %v2210 = vld [vmem:[#allocation2 + $0x18] sm:$0xff]
          %v2211 = vld [vmem:[#allocation2 + $0x20] sm:$0xff]
          %v2212 = vld [vmem:[#allocation2 + $0x28] sm:$0xff]
          %v2213 = vld [vmem:[#allocation2 + $0x30] sm:$0xff]
          %v2214 = vld [vmem:[#allocation2 + $0x38] sm:$0xff]
          %v2215 = vld [vmem:[#allocation2 + $0x40] sm:$0xff]
          %v2216 = vld [vmem:[#allocation2 + $0x48] sm:$0xff]
          %v2217 = vld [vmem:[#allocation2 + $0x50] sm:$0xff]
          %v2218 = vld [vmem:[#allocation2 + $0x58] sm:$0xff]
          %v2219 = vld [vmem:[#allocation2 + $0x60] sm:$0xff]
          %v2220 = vld [vmem:[#allocation2 + $0x68] sm:$0xff]
          %v2221 = vld [vmem:[#allocation2 + $0x70] sm:$0xff]
          %v2222 = vld [vmem:[#allocation2 + $0x78] sm:$0xff]
          %v2223 = vrcp.pop %v2191
          %v2224 = vmul.f32 %v2191, %v2223
          %v2225 = vsub.f32 1.0, %v2224
          %v2226 = vmul.f32 %v2223, %v2225
          %v2227 = vadd.f32 %v2223, %v2226
          %vm2228 = vweird.f32 %v2191
          %vm2229 = vweird.f32 %v2223
          %vm2230 = vmor %vm2228, %vm2229
          %v2231 = vsel %vm2230, %v2223, %v2227
          %v2232 = vand.u32 2147483647, %v2191
          %vm2233 = vcmp.eq.f32.partialorder %v2232, 8.507059e+37
          %v2234 = vand.u32 %v2191, 2147483648
          %v2235 = vor.u32 1.1754944e-38, %v2234
          %v2236 = vsel %vm2233, %v2235, %v2231
          %v2237 = vrcp.pop %v2192
          %v2238 = vmul.f32 %v2192, %v2237
          %v2239 = vsub.f32 1.0, %v2238
          %v2240 = vmul.f32 %v2237, %v2239
          %v2241 = vadd.f32 %v2237, %v2240
          %vm2242 = vweird.f32 %v2192
          %vm2243 = vweird.f32 %v2237
          %vm2244 = vmor %vm2242, %vm2243
          %v2245 = vsel %vm2244, %v2237, %v2241
          %v2246 = vand.u32 2147483647, %v2192
          %vm2247 = vcmp.eq.f32.partialorder %v2246, 8.507059e+37
          %v2248 = vand.u32 %v2192, 2147483648
          %v2249 = vor.u32 1.1754944e-38, %v2248
          %v2250 = vsel %vm2247, %v2249, %v2245
          %v2251 = vrcp.pop %v2193
          %v2252 = vmul.f32 %v2193, %v2251
          %v2253 = vsub.f32 1.0, %v2252
          %v2254 = vmul.f32 %v2251, %v2253
          %v2255 = vadd.f32 %v2251, %v2254
          %vm2256 = vweird.f32 %v2193
          %vm2257 = vweird.f32 %v2251
          %vm2258 = vmor %vm2256, %vm2257
          %v2259 = vsel %vm2258, %v2251, %v2255
          %v2260 = vand.u32 2147483647, %v2193
          %vm2261 = vcmp.eq.f32.partialorder %v2260, 8.507059e+37
          %v2262 = vand.u32 %v2193, 2147483648
          %v2263 = vor.u32 1.1754944e-38, %v2262
          %v2264 = vsel %vm2261, %v2263, %v2259
          %v2265 = vrcp.pop %v2194
          %v2266 = vmul.f32 %v2194, %v2265
          %v2267 = vsub.f32 1.0, %v2266
          %v2268 = vmul.f32 %v2265, %v2267
          %v2269 = vadd.f32 %v2265, %v2268
          %vm2270 = vweird.f32 %v2194
          %vm2271 = vweird.f32 %v2265
          %vm2272 = vmor %vm2270, %vm2271
          %v2273 = vsel %vm2272, %v2265, %v2269
          %v2274 = vand.u32 2147483647, %v2194
          %vm2275 = vcmp.eq.f32.partialorder %v2274, 8.507059e+37
          %v2276 = vand.u32 %v2194, 2147483648
          %v2277 = vor.u32 1.1754944e-38, %v2276
          %v2278 = vsel %vm2275, %v2277, %v2273
          %v2279 = vrcp.pop %v2195
          %v2280 = vmul.f32 %v2195, %v2279
          %v2281 = vsub.f32 1.0, %v2280
          %v2282 = vmul.f32 %v2279, %v2281
          %v2283 = vadd.f32 %v2279, %v2282
          %vm2284 = vweird.f32 %v2195
          %vm2285 = vweird.f32 %v2279
          %vm2286 = vmor %vm2284, %vm2285
          %v2287 = vsel %vm2286, %v2279, %v2283
          %v2288 = vand.u32 2147483647, %v2195
          %vm2289 = vcmp.eq.f32.partialorder %v2288, 8.507059e+37
          %v2290 = vand.u32 %v2195, 2147483648
          %v2291 = vor.u32 1.1754944e-38, %v2290
          %v2292 = vsel %vm2289, %v2291, %v2287
          %v2293 = vrcp.pop %v2196
          %v2294 = vmul.f32 %v2196, %v2293
          %v2295 = vsub.f32 1.0, %v2294
          %v2296 = vmul.f32 %v2293, %v2295
          %v2297 = vadd.f32 %v2293, %v2296
          %vm2298 = vweird.f32 %v2196
          %vm2299 = vweird.f32 %v2293
          %vm2300 = vmor %vm2298, %vm2299
          %v2301 = vsel %vm2300, %v2293, %v2297
          %v2302 = vand.u32 2147483647, %v2196
          %vm2303 = vcmp.eq.f32.partialorder %v2302, 8.507059e+37
          %v2304 = vand.u32 %v2196, 2147483648
          %v2305 = vor.u32 1.1754944e-38, %v2304
          %v2306 = vsel %vm2303, %v2305, %v2301
          %v2307 = vrcp.pop %v2197
          %v2308 = vmul.f32 %v2197, %v2307
          %v2309 = vsub.f32 1.0, %v2308
          %v2310 = vmul.f32 %v2307, %v2309
          %v2311 = vadd.f32 %v2307, %v2310
          %vm2312 = vweird.f32 %v2197
          %vm2313 = vweird.f32 %v2307
          %vm2314 = vmor %vm2312, %vm2313
          %v2315 = vsel %vm2314, %v2307, %v2311
          %v2316 = vand.u32 2147483647, %v2197
          %vm2317 = vcmp.eq.f32.partialorder %v2316, 8.507059e+37
          %v2318 = vand.u32 %v2197, 2147483648
          %v2319 = vor.u32 1.1754944e-38, %v2318
          %v2320 = vsel %vm2317, %v2319, %v2315
          %v2321 = vrcp.pop %v2198
          %v2322 = vmul.f32 %v2198, %v2321
          %v2323 = vsub.f32 1.0, %v2322
          %v2324 = vmul.f32 %v2321, %v2323
          %v2325 = vadd.f32 %v2321, %v2324
          %vm2326 = vweird.f32 %v2198
          %vm2327 = vweird.f32 %v2321
          %vm2328 = vmor %vm2326, %vm2327
          %v2329 = vsel %vm2328, %v2321, %v2325
          %v2330 = vand.u32 2147483647, %v2198
          %vm2331 = vcmp.eq.f32.partialorder %v2330, 8.507059e+37
          %v2332 = vand.u32 %v2198, 2147483648
          %v2333 = vor.u32 1.1754944e-38, %v2332
          %v2334 = vsel %vm2331, %v2333, %v2329
          %v2335 = vrcp.pop %v2199
          %v2336 = vmul.f32 %v2199, %v2335
          %v2337 = vsub.f32 1.0, %v2336
          %v2338 = vmul.f32 %v2335, %v2337
          %v2339 = vadd.f32 %v2335, %v2338
          %vm2340 = vweird.f32 %v2199
          %vm2341 = vweird.f32 %v2335
          %vm2342 = vmor %vm2340, %vm2341
          %v2343 = vsel %vm2342, %v2335, %v2339
          %v2344 = vand.u32 2147483647, %v2199
          %vm2345 = vcmp.eq.f32.partialorder %v2344, 8.507059e+37
          %v2346 = vand.u32 %v2199, 2147483648
          %v2347 = vor.u32 1.1754944e-38, %v2346
          %v2348 = vsel %vm2345, %v2347, %v2343
          %v2349 = vrcp.pop %v2200
          %v2350 = vmul.f32 %v2200, %v2349
          %v2351 = vsub.f32 1.0, %v2350
          %v2352 = vmul.f32 %v2349, %v2351
          %v2353 = vadd.f32 %v2349, %v2352
          %vm2354 = vweird.f32 %v2200
          %vm2355 = vweird.f32 %v2349
          %vm2356 = vmor %vm2354, %vm2355
          %v2357 = vsel %vm2356, %v2349, %v2353
          %v2358 = vand.u32 2147483647, %v2200
          %vm2359 = vcmp.eq.f32.partialorder %v2358, 8.507059e+37
          %v2360 = vand.u32 %v2200, 2147483648
          %v2361 = vor.u32 1.1754944e-38, %v2360
          %v2362 = vsel %vm2359, %v2361, %v2357
          %v2363 = vrcp.pop %v2201
          %v2364 = vmul.f32 %v2201, %v2363
          %v2365 = vsub.f32 1.0, %v2364
          %v2366 = vmul.f32 %v2363, %v2365
          %v2367 = vadd.f32 %v2363, %v2366
          %vm2368 = vweird.f32 %v2201
          %vm2369 = vweird.f32 %v2363
          %vm2370 = vmor %vm2368, %vm2369
          %v2371 = vsel %vm2370, %v2363, %v2367
          %v2372 = vand.u32 2147483647, %v2201
          %vm2373 = vcmp.eq.f32.partialorder %v2372, 8.507059e+37
          %v2374 = vand.u32 %v2201, 2147483648
          %v2375 = vor.u32 1.1754944e-38, %v2374
          %v2376 = vsel %vm2373, %v2375, %v2371
          %v2377 = vrcp.pop %v2202
          %v2378 = vmul.f32 %v2202, %v2377
          %v2379 = vsub.f32 1.0, %v2378
          %v2380 = vmul.f32 %v2377, %v2379
          %v2381 = vadd.f32 %v2377, %v2380
          %vm2382 = vweird.f32 %v2202
          %vm2383 = vweird.f32 %v2377
          %vm2384 = vmor %vm2382, %vm2383
          %v2385 = vsel %vm2384, %v2377, %v2381
          %v2386 = vand.u32 2147483647, %v2202
          %vm2387 = vcmp.eq.f32.partialorder %v2386, 8.507059e+37
          %v2388 = vand.u32 %v2202, 2147483648
          %v2389 = vor.u32 1.1754944e-38, %v2388
          %v2390 = vsel %vm2387, %v2389, %v2385
          %v2391 = vrcp.pop %v2203
          %v2392 = vmul.f32 %v2203, %v2391
          %v2393 = vsub.f32 1.0, %v2392
          %v2394 = vmul.f32 %v2391, %v2393
          %v2395 = vadd.f32 %v2391, %v2394
          %vm2396 = vweird.f32 %v2203
          %vm2397 = vweird.f32 %v2391
          %vm2398 = vmor %vm2396, %vm2397
          %v2399 = vsel %vm2398, %v2391, %v2395
          %v2400 = vand.u32 2147483647, %v2203
          %vm2401 = vcmp.eq.f32.partialorder %v2400, 8.507059e+37
          %v2402 = vand.u32 %v2203, 2147483648
          %v2403 = vor.u32 1.1754944e-38, %v2402
          %v2404 = vsel %vm2401, %v2403, %v2399
          %v2405 = vrcp.pop %v2204
          %v2406 = vmul.f32 %v2204, %v2405
          %v2407 = vsub.f32 1.0, %v2406
          %v2408 = vmul.f32 %v2405, %v2407
          %v2409 = vadd.f32 %v2405, %v2408
          %vm2410 = vweird.f32 %v2204
          %vm2411 = vweird.f32 %v2405
          %vm2412 = vmor %vm2410, %vm2411
          %v2413 = vsel %vm2412, %v2405, %v2409
          %v2414 = vand.u32 2147483647, %v2204
          %vm2415 = vcmp.eq.f32.partialorder %v2414, 8.507059e+37
          %v2416 = vand.u32 %v2204, 2147483648
          %v2417 = vor.u32 1.1754944e-38, %v2416
          %v2418 = vsel %vm2415, %v2417, %v2413
          %v2419 = vrcp.pop %v2205
          %v2420 = vmul.f32 %v2205, %v2419
          %v2421 = vsub.f32 1.0, %v2420
          %v2422 = vmul.f32 %v2419, %v2421
          %v2423 = vadd.f32 %v2419, %v2422
          %vm2424 = vweird.f32 %v2205
          %vm2425 = vweird.f32 %v2419
          %vm2426 = vmor %vm2424, %vm2425
          %v2427 = vsel %vm2426, %v2419, %v2423
          %v2428 = vand.u32 2147483647, %v2205
          %vm2429 = vcmp.eq.f32.partialorder %v2428, 8.507059e+37
          %v2430 = vand.u32 %v2205, 2147483648
          %v2431 = vor.u32 1.1754944e-38, %v2430
          %v2432 = vsel %vm2429, %v2431, %v2427
          %v2433 = vrcp.pop %v2206
          %v2434 = vmul.f32 %v2206, %v2433
          %v2435 = vsub.f32 1.0, %v2434
          %v2436 = vmul.f32 %v2433, %v2435
          %v2437 = vadd.f32 %v2433, %v2436
          %vm2438 = vweird.f32 %v2206
          %vm2439 = vweird.f32 %v2433
          %vm2440 = vmor %vm2438, %vm2439
          %v2441 = vsel %vm2440, %v2433, %v2437
          %v2442 = vand.u32 2147483647, %v2206
          %vm2443 = vcmp.eq.f32.partialorder %v2442, 8.507059e+37
          %v2444 = vand.u32 %v2206, 2147483648
          %v2445 = vor.u32 1.1754944e-38, %v2444
          %v2446 = vsel %vm2443, %v2445, %v2441
          %2448 = vset.pattern.permute.xlu0 0
          %2449 = vperm.xlu0 %2448, %v2236
          %v2450 = vpop.permute.xlu0 %2449
          %2453 = vset.pattern.permute.xlu0 0
          %2454 = vperm.xlu0 %2453, %v2250
          %v2455 = vpop.permute.xlu0 %2454
          %2458 = vset.pattern.permute.xlu0 0
          %2459 = vperm.xlu0 %2458, %v2264
          %v2460 = vpop.permute.xlu0 %2459
          %2463 = vset.pattern.permute.xlu0 0
          %2464 = vperm.xlu0 %2463, %v2278
          %v2465 = vpop.permute.xlu0 %2464
          %2468 = vset.pattern.permute.xlu0 0
          %2469 = vperm.xlu0 %2468, %v2292
          %v2470 = vpop.permute.xlu0 %2469
          %2473 = vset.pattern.permute.xlu0 0
          %2474 = vperm.xlu0 %2473, %v2306
          %v2475 = vpop.permute.xlu0 %2474
          %2478 = vset.pattern.permute.xlu0 0
          %2479 = vperm.xlu0 %2478, %v2320
          %v2480 = vpop.permute.xlu0 %2479
          %2483 = vset.pattern.permute.xlu0 0
          %2484 = vperm.xlu0 %2483, %v2334
          %v2485 = vpop.permute.xlu0 %2484
          %2488 = vset.pattern.permute.xlu0 0
          %2489 = vperm.xlu0 %2488, %v2348
          %v2490 = vpop.permute.xlu0 %2489
          %2493 = vset.pattern.permute.xlu0 0
          %2494 = vperm.xlu0 %2493, %v2362
          %v2495 = vpop.permute.xlu0 %2494
          %2498 = vset.pattern.permute.xlu0 0
          %2499 = vperm.xlu0 %2498, %v2376
          %v2500 = vpop.permute.xlu0 %2499
          %2503 = vset.pattern.permute.xlu0 0
          %2504 = vperm.xlu0 %2503, %v2390
          %v2505 = vpop.permute.xlu0 %2504
          %2508 = vset.pattern.permute.xlu0 0
          %2509 = vperm.xlu0 %2508, %v2404
          %v2510 = vpop.permute.xlu0 %2509
          %2513 = vset.pattern.permute.xlu0 0
          %2514 = vperm.xlu0 %2513, %v2418
          %v2515 = vpop.permute.xlu0 %2514
          %2518 = vset.pattern.permute.xlu0 0
          %2519 = vperm.xlu0 %2518, %v2432
          %v2520 = vpop.permute.xlu0 %2519
          %2523 = vset.pattern.permute.xlu0 0
          %2524 = vperm.xlu0 %2523, %v2446
          %v2525 = vpop.permute.xlu0 %2524
          %v2527 = vmul.f32 %v2207, %v2450
          %v2528 = vmul.f32 %v2208, %v2455
          %v2529 = vmul.f32 %v2209, %v2460
          %v2530 = vmul.f32 %v2210, %v2465
          %v2531 = vmul.f32 %v2211, %v2470
          %v2532 = vmul.f32 %v2212, %v2475
          %v2533 = vmul.f32 %v2213, %v2480
          %v2534 = vmul.f32 %v2214, %v2485
          %v2535 = vmul.f32 %v2215, %v2490
          %v2536 = vmul.f32 %v2216, %v2495
          %v2537 = vmul.f32 %v2217, %v2500
          %v2538 = vmul.f32 %v2218, %v2505
          %v2539 = vmul.f32 %v2219, %v2510
          %v2540 = vmul.f32 %v2220, %v2515
          %v2541 = vmul.f32 %v2221, %v2520
          %v2542 = vmul.f32 %v2222, %v2525
          %v2543 = vld [vmem:[%s4] sm:$0xff]
          %v2544 = vld [vmem:[%s4 + $0x8] sm:$0xff]
          %v2545 = vld [vmem:[%s4 + $0x10] sm:$0xff]
          %v2546 = vld [vmem:[%s4 + $0x18] sm:$0xff]
          %v2547 = vld [vmem:[%s4 + $0x20] sm:$0xff]
          %v2548 = vld [vmem:[%s4 + $0x28] sm:$0xff]
          %v2549 = vld [vmem:[%s4 + $0x30] sm:$0xff]
          %v2550 = vld [vmem:[%s4 + $0x38] sm:$0xff]
          %v2551 = vld [vmem:[%s4 + $0x40] sm:$0xff]
          %v2552 = vld [vmem:[%s4 + $0x48] sm:$0xff]
          %v2553 = vld [vmem:[%s4 + $0x50] sm:$0xff]
          %v2554 = vld [vmem:[%s4 + $0x58] sm:$0xff]
          %v2555 = vld [vmem:[%s4 + $0x60] sm:$0xff]
          %v2556 = vld [vmem:[%s4 + $0x68] sm:$0xff]
          %v2557 = vld [vmem:[%s4 + $0x70] sm:$0xff]
          %v2558 = vld [vmem:[%s4 + $0x78] sm:$0xff]
          %v2559 = vand.u32 %v2558, 4294901760
          %2560 = vmatpush.msra.mxu0 %v2559
          %v2561 = vand.u32 %v2557, 4294901760
          %2562 = vmatpush.msra.mxu0 %v2561
          %v2563 = vand.u32 %v2556, 4294901760
          %2564 = vmatpush.msra.mxu0 %v2563
          %v2565 = vand.u32 %v2555, 4294901760
          %2566 = vmatpush.msra.mxu0 %v2565
          %v2567 = vand.u32 %v2554, 4294901760
          %2568 = vmatpush.msra.mxu0 %v2567
          %v2569 = vand.u32 %v2553, 4294901760
          %2570 = vmatpush.msra.mxu0 %v2569
          %v2571 = vand.u32 %v2552, 4294901760
          %2572 = vmatpush.msra.mxu0 %v2571
          %v2573 = vand.u32 %v2551, 4294901760
          %2574 = vmatpush.msra.mxu0 %v2573
          %v2575 = vand.u32 %v2550, 4294901760
          %2576 = vmatpush.msra.mxu0 %v2575
          %v2577 = vand.u32 %v2549, 4294901760
          %2578 = vmatpush.msra.mxu0 %v2577
          %v2579 = vand.u32 %v2548, 4294901760
          %2580 = vmatpush.msra.mxu0 %v2579
          %v2581 = vand.u32 %v2547, 4294901760
          %2582 = vmatpush.msra.mxu0 %v2581
          %v2583 = vand.u32 %v2546, 4294901760
          %2584 = vmatpush.msra.mxu0 %v2583
          %v2585 = vand.u32 %v2545, 4294901760
          %2586 = vmatpush.msra.mxu0 %v2585
          %v2587 = vand.u32 %v2544, 4294901760
          %2588 = vmatpush.msra.mxu0 %v2587
          %v2589 = vand.u32 %v2543, 4294901760
          %2590 = vmatpush.msra.mxu0 %v2589
          %v2591 = vand.u32 %v2527, 4294901760
          %v2592 = vsub.f32 %v2527, %v2591
          %v2593 = vand.u32 %v2592, 4294901760
          %v2594 = vsub.f32 %v2592, %v2593
          %v2595 = vand.u32 %v2594, 4294901760
          %2596 = vmatmul.f32.gmra.mxu0 %v2595
          %v2597 = vpop.f32.mrf.mxu0
          %v2598 = vadd.f32 0.0, %v2597
          %v2599 = vand.u32 %v2528, 4294901760
          %v2600 = vsub.f32 %v2528, %v2599
          %v2601 = vand.u32 %v2600, 4294901760
          %v2602 = vsub.f32 %v2600, %v2601
          %v2603 = vand.u32 %v2602, 4294901760
          %2604 = vmatmul.f32.gmra.mxu0 %v2603
          %v2605 = vpop.f32.mrf.mxu0
          %v2606 = vadd.f32 0.0, %v2605
          %v2607 = vand.u32 %v2529, 4294901760
          %v2608 = vsub.f32 %v2529, %v2607
          %v2609 = vand.u32 %v2608, 4294901760
          %v2610 = vsub.f32 %v2608, %v2609
          %v2611 = vand.u32 %v2610, 4294901760
          %2612 = vmatmul.f32.gmra.mxu0 %v2611
          %v2613 = vpop.f32.mrf.mxu0
          %v2614 = vadd.f32 0.0, %v2613
          %v2615 = vand.u32 %v2530, 4294901760
          %v2616 = vsub.f32 %v2530, %v2615
          %v2617 = vand.u32 %v2616, 4294901760
          %v2618 = vsub.f32 %v2616, %v2617
          %v2619 = vand.u32 %v2618, 4294901760
          %2620 = vmatmul.f32.gmra.mxu0 %v2619
          %v2621 = vpop.f32.mrf.mxu0
          %v2622 = vadd.f32 0.0, %v2621
          %v2623 = vand.u32 %v2531, 4294901760
          %v2624 = vsub.f32 %v2531, %v2623
          %v2625 = vand.u32 %v2624, 4294901760
          %v2626 = vsub.f32 %v2624, %v2625
          %v2627 = vand.u32 %v2626, 4294901760
          %2628 = vmatmul.f32.gmra.mxu0 %v2627
          %v2629 = vpop.f32.mrf.mxu0
          %v2630 = vadd.f32 0.0, %v2629
          %v2631 = vand.u32 %v2532, 4294901760
          %v2632 = vsub.f32 %v2532, %v2631
          %v2633 = vand.u32 %v2632, 4294901760
          %v2634 = vsub.f32 %v2632, %v2633
          %v2635 = vand.u32 %v2634, 4294901760
          %2636 = vmatmul.f32.gmra.mxu0 %v2635
          %v2637 = vpop.f32.mrf.mxu0
          %v2638 = vadd.f32 0.0, %v2637
          %v2639 = vand.u32 %v2533, 4294901760
          %v2640 = vsub.f32 %v2533, %v2639
          %v2641 = vand.u32 %v2640, 4294901760
          %v2642 = vsub.f32 %v2640, %v2641
          %v2643 = vand.u32 %v2642, 4294901760
          %2644 = vmatmul.f32.gmra.mxu0 %v2643
          %v2645 = vpop.f32.mrf.mxu0
          %v2646 = vadd.f32 0.0, %v2645
          %v2647 = vand.u32 %v2534, 4294901760
          %v2648 = vsub.f32 %v2534, %v2647
          %v2649 = vand.u32 %v2648, 4294901760
          %v2650 = vsub.f32 %v2648, %v2649
          %v2651 = vand.u32 %v2650, 4294901760
          %2652 = vmatmul.f32.gmra.mxu0 %v2651
          %v2653 = vpop.f32.mrf.mxu0
          %v2654 = vadd.f32 0.0, %v2653
          %v2655 = vand.u32 %v2535, 4294901760
          %v2656 = vsub.f32 %v2535, %v2655
          %v2657 = vand.u32 %v2656, 4294901760
          %v2658 = vsub.f32 %v2656, %v2657
          %v2659 = vand.u32 %v2658, 4294901760
          %2660 = vmatmul.f32.gmra.mxu0 %v2659
          %v2661 = vpop.f32.mrf.mxu0
          %v2662 = vadd.f32 0.0, %v2661
          %v2663 = vand.u32 %v2536, 4294901760
          %v2664 = vsub.f32 %v2536, %v2663
          %v2665 = vand.u32 %v2664, 4294901760
          %v2666 = vsub.f32 %v2664, %v2665
          %v2667 = vand.u32 %v2666, 4294901760
          %2668 = vmatmul.f32.gmra.mxu0 %v2667
          %v2669 = vpop.f32.mrf.mxu0
          %v2670 = vadd.f32 0.0, %v2669
          %v2671 = vand.u32 %v2537, 4294901760
          %v2672 = vsub.f32 %v2537, %v2671
          %v2673 = vand.u32 %v2672, 4294901760
          %v2674 = vsub.f32 %v2672, %v2673
          %v2675 = vand.u32 %v2674, 4294901760
          %2676 = vmatmul.f32.gmra.mxu0 %v2675
          %v2677 = vpop.f32.mrf.mxu0
          %v2678 = vadd.f32 0.0, %v2677
          %v2679 = vand.u32 %v2538, 4294901760
          %v2680 = vsub.f32 %v2538, %v2679
          %v2681 = vand.u32 %v2680, 4294901760
          %v2682 = vsub.f32 %v2680, %v2681
          %v2683 = vand.u32 %v2682, 4294901760
          %2684 = vmatmul.f32.gmra.mxu0 %v2683
          %v2685 = vpop.f32.mrf.mxu0
          %v2686 = vadd.f32 0.0, %v2685
          %v2687 = vand.u32 %v2539, 4294901760
          %v2688 = vsub.f32 %v2539, %v2687
          %v2689 = vand.u32 %v2688, 4294901760
          %v2690 = vsub.f32 %v2688, %v2689
          %v2691 = vand.u32 %v2690, 4294901760
          %2692 = vmatmul.f32.gmra.mxu0 %v2691
          %v2693 = vpop.f32.mrf.mxu0
          %v2694 = vadd.f32 0.0, %v2693
          %v2695 = vand.u32 %v2540, 4294901760
          %v2696 = vsub.f32 %v2540, %v2695
          %v2697 = vand.u32 %v2696, 4294901760
          %v2698 = vsub.f32 %v2696, %v2697
          %v2699 = vand.u32 %v2698, 4294901760
          %2700 = vmatmul.f32.gmra.mxu0 %v2699
          %v2701 = vpop.f32.mrf.mxu0
          %v2702 = vadd.f32 0.0, %v2701
          %v2703 = vand.u32 %v2541, 4294901760
          %v2704 = vsub.f32 %v2541, %v2703
          %v2705 = vand.u32 %v2704, 4294901760
          %v2706 = vsub.f32 %v2704, %v2705
          %v2707 = vand.u32 %v2706, 4294901760
          %2708 = vmatmul.f32.gmra.mxu0 %v2707
          %v2709 = vpop.f32.mrf.mxu0
          %v2710 = vadd.f32 0.0, %v2709
          %v2711 = vand.u32 %v2542, 4294901760
          %v2712 = vsub.f32 %v2542, %v2711
          %v2713 = vand.u32 %v2712, 4294901760
          %v2714 = vsub.f32 %v2712, %v2713
          %v2715 = vand.u32 %v2714, 4294901760
          %2716 = vmatmul.f32.gmra.mxu0 %v2715
          %v2717 = vpop.f32.mrf.mxu0
          %v2718 = vadd.f32 0.0, %v2717
          %2719 = vdwg.mxu0
          %v2720 = vand.u32 %v2558, 4294901760
          %v2721 = vsub.f32 %v2558, %v2720
          %v2722 = vand.u32 %v2721, 4294901760
          %v2723 = vsub.f32 %v2721, %v2722
          %v2724 = vand.u32 %v2723, 4294901760
          %2725 = vmatpush.msra.mxu0 %v2724
          %v2726 = vand.u32 %v2557, 4294901760
          %v2727 = vsub.f32 %v2557, %v2726
          %v2728 = vand.u32 %v2727, 4294901760
          %v2729 = vsub.f32 %v2727, %v2728
          %v2730 = vand.u32 %v2729, 4294901760
          %2731 = vmatpush.msra.mxu0 %v2730
          %v2732 = vand.u32 %v2556, 4294901760
          %v2733 = vsub.f32 %v2556, %v2732
          %v2734 = vand.u32 %v2733, 4294901760
          %v2735 = vsub.f32 %v2733, %v2734
          %v2736 = vand.u32 %v2735, 4294901760
          %2737 = vmatpush.msra.mxu0 %v2736
          %v2738 = vand.u32 %v2555, 4294901760
          %v2739 = vsub.f32 %v2555, %v2738
          %v2740 = vand.u32 %v2739, 4294901760
          %v2741 = vsub.f32 %v2739, %v2740
          %v2742 = vand.u32 %v2741, 4294901760
          %2743 = vmatpush.msra.mxu0 %v2742
          %v2744 = vand.u32 %v2554, 4294901760
          %v2745 = vsub.f32 %v2554, %v2744
          %v2746 = vand.u32 %v2745, 4294901760
          %v2747 = vsub.f32 %v2745, %v2746
          %v2748 = vand.u32 %v2747, 4294901760
          %2749 = vmatpush.msra.mxu0 %v2748
          %v2750 = vand.u32 %v2553, 4294901760
          %v2751 = vsub.f32 %v2553, %v2750
          %v2752 = vand.u32 %v2751, 4294901760
          %v2753 = vsub.f32 %v2751, %v2752
          %v2754 = vand.u32 %v2753, 4294901760
          %2755 = vmatpush.msra.mxu0 %v2754
          %v2756 = vand.u32 %v2552, 4294901760
          %v2757 = vsub.f32 %v2552, %v2756
          %v2758 = vand.u32 %v2757, 4294901760
          %v2759 = vsub.f32 %v2757, %v2758
          %v2760 = vand.u32 %v2759, 4294901760
          %2761 = vmatpush.msra.mxu0 %v2760
          %v2762 = vand.u32 %v2551, 4294901760
          %v2763 = vsub.f32 %v2551, %v2762
          %v2764 = vand.u32 %v2763, 4294901760
          %v2765 = vsub.f32 %v2763, %v2764
          %v2766 = vand.u32 %v2765, 4294901760
          %2767 = vmatpush.msra.mxu0 %v2766
          %v2768 = vand.u32 %v2550, 4294901760
          %v2769 = vsub.f32 %v2550, %v2768
          %v2770 = vand.u32 %v2769, 4294901760
          %v2771 = vsub.f32 %v2769, %v2770
          %v2772 = vand.u32 %v2771, 4294901760
          %2773 = vmatpush.msra.mxu0 %v2772
          %v2774 = vand.u32 %v2549, 4294901760
          %v2775 = vsub.f32 %v2549, %v2774
          %v2776 = vand.u32 %v2775, 4294901760
          %v2777 = vsub.f32 %v2775, %v2776
          %v2778 = vand.u32 %v2777, 4294901760
          %2779 = vmatpush.msra.mxu0 %v2778
          %v2780 = vand.u32 %v2548, 4294901760
          %v2781 = vsub.f32 %v2548, %v2780
          %v2782 = vand.u32 %v2781, 4294901760
          %v2783 = vsub.f32 %v2781, %v2782
          %v2784 = vand.u32 %v2783, 4294901760
          %2785 = vmatpush.msra.mxu0 %v2784
          %v2786 = vand.u32 %v2547, 4294901760
          %v2787 = vsub.f32 %v2547, %v2786
          %v2788 = vand.u32 %v2787, 4294901760
          %v2789 = vsub.f32 %v2787, %v2788
          %v2790 = vand.u32 %v2789, 4294901760
          %2791 = vmatpush.msra.mxu0 %v2790
          %v2792 = vand.u32 %v2546, 4294901760
          %v2793 = vsub.f32 %v2546, %v2792
          %v2794 = vand.u32 %v2793, 4294901760
          %v2795 = vsub.f32 %v2793, %v2794
          %v2796 = vand.u32 %v2795, 4294901760
          %2797 = vmatpush.msra.mxu0 %v2796
          %v2798 = vand.u32 %v2545, 4294901760
          %v2799 = vsub.f32 %v2545, %v2798
          %v2800 = vand.u32 %v2799, 4294901760
          %v2801 = vsub.f32 %v2799, %v2800
          %v2802 = vand.u32 %v2801, 4294901760
          %2803 = vmatpush.msra.mxu0 %v2802
          %v2804 = vand.u32 %v2544, 4294901760
          %v2805 = vsub.f32 %v2544, %v2804
          %v2806 = vand.u32 %v2805, 4294901760
          %v2807 = vsub.f32 %v2805, %v2806
          %v2808 = vand.u32 %v2807, 4294901760
          %2809 = vmatpush.msra.mxu0 %v2808
          %v2810 = vand.u32 %v2543, 4294901760
          %v2811 = vsub.f32 %v2543, %v2810
          %v2812 = vand.u32 %v2811, 4294901760
          %v2813 = vsub.f32 %v2811, %v2812
          %v2814 = vand.u32 %v2813, 4294901760
          %2815 = vmatpush.msra.mxu0 %v2814
          %v2816 = vand.u32 %v2527, 4294901760
          %2817 = vmatmul.f32.gmra.mxu0 %v2816
          %v2818 = vpop.f32.mrf.mxu0
          %v2819 = vadd.f32 %v2598, %v2818
          %v2820 = vand.u32 %v2528, 4294901760
          %2821 = vmatmul.f32.gmra.mxu0 %v2820
          %v2822 = vpop.f32.mrf.mxu0
          %v2823 = vadd.f32 %v2606, %v2822
          %v2824 = vand.u32 %v2529, 4294901760
          %2825 = vmatmul.f32.gmra.mxu0 %v2824
          %v2826 = vpop.f32.mrf.mxu0
          %v2827 = vadd.f32 %v2614, %v2826
          %v2828 = vand.u32 %v2530, 4294901760
          %2829 = vmatmul.f32.gmra.mxu0 %v2828
          %v2830 = vpop.f32.mrf.mxu0
          %v2831 = vadd.f32 %v2622, %v2830
          %v2832 = vand.u32 %v2531, 4294901760
          %2833 = vmatmul.f32.gmra.mxu0 %v2832
          %v2834 = vpop.f32.mrf.mxu0
          %v2835 = vadd.f32 %v2630, %v2834
          %v2836 = vand.u32 %v2532, 4294901760
          %2837 = vmatmul.f32.gmra.mxu0 %v2836
          %v2838 = vpop.f32.mrf.mxu0
          %v2839 = vadd.f32 %v2638, %v2838
          %v2840 = vand.u32 %v2533, 4294901760
          %2841 = vmatmul.f32.gmra.mxu0 %v2840
          %v2842 = vpop.f32.mrf.mxu0
          %v2843 = vadd.f32 %v2646, %v2842
          %v2844 = vand.u32 %v2534, 4294901760
          %2845 = vmatmul.f32.gmra.mxu0 %v2844
          %v2846 = vpop.f32.mrf.mxu0
          %v2847 = vadd.f32 %v2654, %v2846
          %v2848 = vand.u32 %v2535, 4294901760
          %2849 = vmatmul.f32.gmra.mxu0 %v2848
          %v2850 = vpop.f32.mrf.mxu0
          %v2851 = vadd.f32 %v2662, %v2850
          %v2852 = vand.u32 %v2536, 4294901760
          %2853 = vmatmul.f32.gmra.mxu0 %v2852
          %v2854 = vpop.f32.mrf.mxu0
          %v2855 = vadd.f32 %v2670, %v2854
          %v2856 = vand.u32 %v2537, 4294901760
          %2857 = vmatmul.f32.gmra.mxu0 %v2856
          %v2858 = vpop.f32.mrf.mxu0
          %v2859 = vadd.f32 %v2678, %v2858
          %v2860 = vand.u32 %v2538, 4294901760
          %2861 = vmatmul.f32.gmra.mxu0 %v2860
          %v2862 = vpop.f32.mrf.mxu0
          %v2863 = vadd.f32 %v2686, %v2862
          %v2864 = vand.u32 %v2539, 4294901760
          %2865 = vmatmul.f32.gmra.mxu0 %v2864
          %v2866 = vpop.f32.mrf.mxu0
          %v2867 = vadd.f32 %v2694, %v2866
          %v2868 = vand.u32 %v2540, 4294901760
          %2869 = vmatmul.f32.gmra.mxu0 %v2868
          %v2870 = vpop.f32.mrf.mxu0
          %v2871 = vadd.f32 %v2702, %v2870
          %v2872 = vand.u32 %v2541, 4294901760
          %2873 = vmatmul.f32.gmra.mxu0 %v2872
          %v2874 = vpop.f32.mrf.mxu0
          %v2875 = vadd.f32 %v2710, %v2874
          %v2876 = vand.u32 %v2542, 4294901760
          %2877 = vmatmul.f32.gmra.mxu0 %v2876
          %v2878 = vpop.f32.mrf.mxu0
          %v2879 = vadd.f32 %v2718, %v2878
          %2880 = vdwg.mxu0
          %v2881 = vand.u32 %v2558, 4294901760
          %v2882 = vsub.f32 %v2558, %v2881
          %2883 = vmatpush.msra.mxu0 %v2882
          %v2884 = vand.u32 %v2557, 4294901760
          %v2885 = vsub.f32 %v2557, %v2884
          %2886 = vmatpush.msra.mxu0 %v2885
          %v2887 = vand.u32 %v2556, 4294901760
          %v2888 = vsub.f32 %v2556, %v2887
          %2889 = vmatpush.msra.mxu0 %v2888
          %v2890 = vand.u32 %v2555, 4294901760
          %v2891 = vsub.f32 %v2555, %v2890
          %2892 = vmatpush.msra.mxu0 %v2891
          %v2893 = vand.u32 %v2554, 4294901760
          %v2894 = vsub.f32 %v2554, %v2893
          %2895 = vmatpush.msra.mxu0 %v2894
          %v2896 = vand.u32 %v2553, 4294901760
          %v2897 = vsub.f32 %v2553, %v2896
          %2898 = vmatpush.msra.mxu0 %v2897
          %v2899 = vand.u32 %v2552, 4294901760
          %v2900 = vsub.f32 %v2552, %v2899
          %2901 = vmatpush.msra.mxu0 %v2900
          %v2902 = vand.u32 %v2551, 4294901760
          %v2903 = vsub.f32 %v2551, %v2902
          %2904 = vmatpush.msra.mxu0 %v2903
          %v2905 = vand.u32 %v2550, 4294901760
          %v2906 = vsub.f32 %v2550, %v2905
          %2907 = vmatpush.msra.mxu0 %v2906
          %v2908 = vand.u32 %v2549, 4294901760
          %v2909 = vsub.f32 %v2549, %v2908
          %2910 = vmatpush.msra.mxu0 %v2909
          %v2911 = vand.u32 %v2548, 4294901760
          %v2912 = vsub.f32 %v2548, %v2911
          %2913 = vmatpush.msra.mxu0 %v2912
          %v2914 = vand.u32 %v2547, 4294901760
          %v2915 = vsub.f32 %v2547, %v2914
          %2916 = vmatpush.msra.mxu0 %v2915
          %v2917 = vand.u32 %v2546, 4294901760
          %v2918 = vsub.f32 %v2546, %v2917
          %2919 = vmatpush.msra.mxu0 %v2918
          %v2920 = vand.u32 %v2545, 4294901760
          %v2921 = vsub.f32 %v2545, %v2920
          %2922 = vmatpush.msra.mxu0 %v2921
          %v2923 = vand.u32 %v2544, 4294901760
          %v2924 = vsub.f32 %v2544, %v2923
          %2925 = vmatpush.msra.mxu0 %v2924
          %v2926 = vand.u32 %v2543, 4294901760
          %v2927 = vsub.f32 %v2543, %v2926
          %2928 = vmatpush.msra.mxu0 %v2927
          %v2929 = vand.u32 %v2527, 4294901760
          %v2930 = vsub.f32 %v2527, %v2929
          %2931 = vmatmul.f32.gmra.mxu0 %v2930
          %v2932 = vpop.f32.mrf.mxu0
          %v2933 = vadd.f32 %v2819, %v2932
          %v2934 = vand.u32 %v2528, 4294901760
          %v2935 = vsub.f32 %v2528, %v2934
          %2936 = vmatmul.f32.gmra.mxu0 %v2935
          %v2937 = vpop.f32.mrf.mxu0
          %v2938 = vadd.f32 %v2823, %v2937
          %v2939 = vand.u32 %v2529, 4294901760
          %v2940 = vsub.f32 %v2529, %v2939
          %2941 = vmatmul.f32.gmra.mxu0 %v2940
          %v2942 = vpop.f32.mrf.mxu0
          %v2943 = vadd.f32 %v2827, %v2942
          %v2944 = vand.u32 %v2530, 4294901760
          %v2945 = vsub.f32 %v2530, %v2944
          %2946 = vmatmul.f32.gmra.mxu0 %v2945
          %v2947 = vpop.f32.mrf.mxu0
          %v2948 = vadd.f32 %v2831, %v2947
          %v2949 = vand.u32 %v2531, 4294901760
          %v2950 = vsub.f32 %v2531, %v2949
          %2951 = vmatmul.f32.gmra.mxu0 %v2950
          %v2952 = vpop.f32.mrf.mxu0
          %v2953 = vadd.f32 %v2835, %v2952
          %v2954 = vand.u32 %v2532, 4294901760
          %v2955 = vsub.f32 %v2532, %v2954
          %2956 = vmatmul.f32.gmra.mxu0 %v2955
          %v2957 = vpop.f32.mrf.mxu0
          %v2958 = vadd.f32 %v2839, %v2957
          %v2959 = vand.u32 %v2533, 4294901760
          %v2960 = vsub.f32 %v2533, %v2959
          %2961 = vmatmul.f32.gmra.mxu0 %v2960
          %v2962 = vpop.f32.mrf.mxu0
          %v2963 = vadd.f32 %v2843, %v2962
          %v2964 = vand.u32 %v2534, 4294901760
          %v2965 = vsub.f32 %v2534, %v2964
          %2966 = vmatmul.f32.gmra.mxu0 %v2965
          %v2967 = vpop.f32.mrf.mxu0
          %v2968 = vadd.f32 %v2847, %v2967
          %v2969 = vand.u32 %v2535, 4294901760
          %v2970 = vsub.f32 %v2535, %v2969
          %2971 = vmatmul.f32.gmra.mxu0 %v2970
          %v2972 = vpop.f32.mrf.mxu0
          %v2973 = vadd.f32 %v2851, %v2972
          %v2974 = vand.u32 %v2536, 4294901760
          %v2975 = vsub.f32 %v2536, %v2974
          %2976 = vmatmul.f32.gmra.mxu0 %v2975
          %v2977 = vpop.f32.mrf.mxu0
          %v2978 = vadd.f32 %v2855, %v2977
          %v2979 = vand.u32 %v2537, 4294901760
          %v2980 = vsub.f32 %v2537, %v2979
          %2981 = vmatmul.f32.gmra.mxu0 %v2980
          %v2982 = vpop.f32.mrf.mxu0
          %v2983 = vadd.f32 %v2859, %v2982
          %v2984 = vand.u32 %v2538, 4294901760
          %v2985 = vsub.f32 %v2538, %v2984
          %2986 = vmatmul.f32.gmra.mxu0 %v2985
          %v2987 = vpop.f32.mrf.mxu0
          %v2988 = vadd.f32 %v2863, %v2987
          %v2989 = vand.u32 %v2539, 4294901760
          %v2990 = vsub.f32 %v2539, %v2989
          %2991 = vmatmul.f32.gmra.mxu0 %v2990
          %v2992 = vpop.f32.mrf.mxu0
          %v2993 = vadd.f32 %v2867, %v2992
          %v2994 = vand.u32 %v2540, 4294901760
          %v2995 = vsub.f32 %v2540, %v2994
          %2996 = vmatmul.f32.gmra.mxu0 %v2995
          %v2997 = vpop.f32.mrf.mxu0
          %v2998 = vadd.f32 %v2871, %v2997
          %v2999 = vand.u32 %v2541, 4294901760
          %v3000 = vsub.f32 %v2541, %v2999
          %3001 = vmatmul.f32.gmra.mxu0 %v3000
          %v3002 = vpop.f32.mrf.mxu0
          %v3003 = vadd.f32 %v2875, %v3002
          %v3004 = vand.u32 %v2542, 4294901760
          %v3005 = vsub.f32 %v2542, %v3004
          %3006 = vmatmul.f32.gmra.mxu0 %v3005
          %v3007 = vpop.f32.mrf.mxu0
          %v3008 = vadd.f32 %v2879, %v3007
          %3009 = vdwg.mxu0
          %v3010 = vand.u32 %v2558, 4294901760
          %3011 = vmatpush.msra.mxu0 %v3010
          %v3012 = vand.u32 %v2557, 4294901760
          %3013 = vmatpush.msra.mxu0 %v3012
          %v3014 = vand.u32 %v2556, 4294901760
          %3015 = vmatpush.msra.mxu0 %v3014
          %v3016 = vand.u32 %v2555, 4294901760
          %3017 = vmatpush.msra.mxu0 %v3016
          %v3018 = vand.u32 %v2554, 4294901760
          %3019 = vmatpush.msra.mxu0 %v3018
          %v3020 = vand.u32 %v2553, 4294901760
          %3021 = vmatpush.msra.mxu0 %v3020
          %v3022 = vand.u32 %v2552, 4294901760
          %3023 = vmatpush.msra.mxu0 %v3022
          %v3024 = vand.u32 %v2551, 4294901760
          %3025 = vmatpush.msra.mxu0 %v3024
          %v3026 = vand.u32 %v2550, 4294901760
          %3027 = vmatpush.msra.mxu0 %v3026
          %v3028 = vand.u32 %v2549, 4294901760
          %3029 = vmatpush.msra.mxu0 %v3028
          %v3030 = vand.u32 %v2548, 4294901760
          %3031 = vmatpush.msra.mxu0 %v3030
          %v3032 = vand.u32 %v2547, 4294901760
          %3033 = vmatpush.msra.mxu0 %v3032
          %v3034 = vand.u32 %v2546, 4294901760
          %3035 = vmatpush.msra.mxu0 %v3034
          %v3036 = vand.u32 %v2545, 4294901760
          %3037 = vmatpush.msra.mxu0 %v3036
          %v3038 = vand.u32 %v2544, 4294901760
          %3039 = vmatpush.msra.mxu0 %v3038
          %v3040 = vand.u32 %v2543, 4294901760
          %3041 = vmatpush.msra.mxu0 %v3040
          %v3042 = vand.u32 %v2527, 4294901760
          %v3043 = vsub.f32 %v2527, %v3042
          %v3044 = vand.u32 %v3043, 4294901760
          %3045 = vmatmul.f32.gmra.mxu0 %v3044
          %v3046 = vpop.f32.mrf.mxu0
          %v3047 = vadd.f32 %v2933, %v3046
          %v3048 = vand.u32 %v2528, 4294901760
          %v3049 = vsub.f32 %v2528, %v3048
          %v3050 = vand.u32 %v3049, 4294901760
          %3051 = vmatmul.f32.gmra.mxu0 %v3050
          %v3052 = vpop.f32.mrf.mxu0
          %v3053 = vadd.f32 %v2938, %v3052
          %v3054 = vand.u32 %v2529, 4294901760
          %v3055 = vsub.f32 %v2529, %v3054
          %v3056 = vand.u32 %v3055, 4294901760
          %3057 = vmatmul.f32.gmra.mxu0 %v3056
          %v3058 = vpop.f32.mrf.mxu0
          %v3059 = vadd.f32 %v2943, %v3058
          %v3060 = vand.u32 %v2530, 4294901760
          %v3061 = vsub.f32 %v2530, %v3060
          %v3062 = vand.u32 %v3061, 4294901760
          %3063 = vmatmul.f32.gmra.mxu0 %v3062
          %v3064 = vpop.f32.mrf.mxu0
          %v3065 = vadd.f32 %v2948, %v3064
          %v3066 = vand.u32 %v2531, 4294901760
          %v3067 = vsub.f32 %v2531, %v3066
          %v3068 = vand.u32 %v3067, 4294901760
          %3069 = vmatmul.f32.gmra.mxu0 %v3068
          %v3070 = vpop.f32.mrf.mxu0
          %v3071 = vadd.f32 %v2953, %v3070
          %v3072 = vand.u32 %v2532, 4294901760
          %v3073 = vsub.f32 %v2532, %v3072
          %v3074 = vand.u32 %v3073, 4294901760
          %3075 = vmatmul.f32.gmra.mxu0 %v3074
          %v3076 = vpop.f32.mrf.mxu0
          %v3077 = vadd.f32 %v2958, %v3076
          %v3078 = vand.u32 %v2533, 4294901760
          %v3079 = vsub.f32 %v2533, %v3078
          %v3080 = vand.u32 %v3079, 4294901760
          %3081 = vmatmul.f32.gmra.mxu0 %v3080
          %v3082 = vpop.f32.mrf.mxu0
          %v3083 = vadd.f32 %v2963, %v3082
          %v3084 = vand.u32 %v2534, 4294901760
          %v3085 = vsub.f32 %v2534, %v3084
          %v3086 = vand.u32 %v3085, 4294901760
          %3087 = vmatmul.f32.gmra.mxu0 %v3086
          %v3088 = vpop.f32.mrf.mxu0
          %v3089 = vadd.f32 %v2968, %v3088
          %v3090 = vand.u32 %v2535, 4294901760
          %v3091 = vsub.f32 %v2535, %v3090
          %v3092 = vand.u32 %v3091, 4294901760
          %3093 = vmatmul.f32.gmra.mxu0 %v3092
          %v3094 = vpop.f32.mrf.mxu0
          %v3095 = vadd.f32 %v2973, %v3094
          %v3096 = vand.u32 %v2536, 4294901760
          %v3097 = vsub.f32 %v2536, %v3096
          %v3098 = vand.u32 %v3097, 4294901760
          %3099 = vmatmul.f32.gmra.mxu0 %v3098
          %v3100 = vpop.f32.mrf.mxu0
          %v3101 = vadd.f32 %v2978, %v3100
          %v3102 = vand.u32 %v2537, 4294901760
          %v3103 = vsub.f32 %v2537, %v3102
          %v3104 = vand.u32 %v3103, 4294901760
          %3105 = vmatmul.f32.gmra.mxu0 %v3104
          %v3106 = vpop.f32.mrf.mxu0
          %v3107 = vadd.f32 %v2983, %v3106
          %v3108 = vand.u32 %v2538, 4294901760
          %v3109 = vsub.f32 %v2538, %v3108
          %v3110 = vand.u32 %v3109, 4294901760
          %3111 = vmatmul.f32.gmra.mxu0 %v3110
          %v3112 = vpop.f32.mrf.mxu0
          %v3113 = vadd.f32 %v2988, %v3112
          %v3114 = vand.u32 %v2539, 4294901760
          %v3115 = vsub.f32 %v2539, %v3114
          %v3116 = vand.u32 %v3115, 4294901760
          %3117 = vmatmul.f32.gmra.mxu0 %v3116
          %v3118 = vpop.f32.mrf.mxu0
          %v3119 = vadd.f32 %v2993, %v3118
          %v3120 = vand.u32 %v2540, 4294901760
          %v3121 = vsub.f32 %v2540, %v3120
          %v3122 = vand.u32 %v3121, 4294901760
          %3123 = vmatmul.f32.gmra.mxu0 %v3122
          %v3124 = vpop.f32.mrf.mxu0
          %v3125 = vadd.f32 %v2998, %v3124
          %v3126 = vand.u32 %v2541, 4294901760
          %v3127 = vsub.f32 %v2541, %v3126
          %v3128 = vand.u32 %v3127, 4294901760
          %3129 = vmatmul.f32.gmra.mxu0 %v3128
          %v3130 = vpop.f32.mrf.mxu0
          %v3131 = vadd.f32 %v3003, %v3130
          %v3132 = vand.u32 %v2542, 4294901760
          %v3133 = vsub.f32 %v2542, %v3132
          %v3134 = vand.u32 %v3133, 4294901760
          %3135 = vmatmul.f32.gmra.mxu0 %v3134
          %v3136 = vpop.f32.mrf.mxu0
          %v3137 = vadd.f32 %v3008, %v3136
          %3138 = vdwg.mxu0
          %v3139 = vand.u32 %v2558, 4294901760
          %v3140 = vsub.f32 %v2558, %v3139
          %v3141 = vand.u32 %v3140, 4294901760
          %3142 = vmatpush.msra.mxu0 %v3141
          %v3143 = vand.u32 %v2557, 4294901760
          %v3144 = vsub.f32 %v2557, %v3143
          %v3145 = vand.u32 %v3144, 4294901760
          %3146 = vmatpush.msra.mxu0 %v3145
          %v3147 = vand.u32 %v2556, 4294901760
          %v3148 = vsub.f32 %v2556, %v3147
          %v3149 = vand.u32 %v3148, 4294901760
          %3150 = vmatpush.msra.mxu0 %v3149
          %v3151 = vand.u32 %v2555, 4294901760
          %v3152 = vsub.f32 %v2555, %v3151
          %v3153 = vand.u32 %v3152, 4294901760
          %3154 = vmatpush.msra.mxu0 %v3153
          %v3155 = vand.u32 %v2554, 4294901760
          %v3156 = vsub.f32 %v2554, %v3155
          %v3157 = vand.u32 %v3156, 4294901760
          %3158 = vmatpush.msra.mxu0 %v3157
          %v3159 = vand.u32 %v2553, 4294901760
          %v3160 = vsub.f32 %v2553, %v3159
          %v3161 = vand.u32 %v3160, 4294901760
          %3162 = vmatpush.msra.mxu0 %v3161
          %v3163 = vand.u32 %v2552, 4294901760
          %v3164 = vsub.f32 %v2552, %v3163
          %v3165 = vand.u32 %v3164, 4294901760
          %3166 = vmatpush.msra.mxu0 %v3165
          %v3167 = vand.u32 %v2551, 4294901760
          %v3168 = vsub.f32 %v2551, %v3167
          %v3169 = vand.u32 %v3168, 4294901760
          %3170 = vmatpush.msra.mxu0 %v3169
          %v3171 = vand.u32 %v2550, 4294901760
          %v3172 = vsub.f32 %v2550, %v3171
          %v3173 = vand.u32 %v3172, 4294901760
          %3174 = vmatpush.msra.mxu0 %v3173
          %v3175 = vand.u32 %v2549, 4294901760
          %v3176 = vsub.f32 %v2549, %v3175
          %v3177 = vand.u32 %v3176, 4294901760
          %3178 = vmatpush.msra.mxu0 %v3177
          %v3179 = vand.u32 %v2548, 4294901760
          %v3180 = vsub.f32 %v2548, %v3179
          %v3181 = vand.u32 %v3180, 4294901760
          %3182 = vmatpush.msra.mxu0 %v3181
          %v3183 = vand.u32 %v2547, 4294901760
          %v3184 = vsub.f32 %v2547, %v3183
          %v3185 = vand.u32 %v3184, 4294901760
          %3186 = vmatpush.msra.mxu0 %v3185
          %v3187 = vand.u32 %v2546, 4294901760
          %v3188 = vsub.f32 %v2546, %v3187
          %v3189 = vand.u32 %v3188, 4294901760
          %3190 = vmatpush.msra.mxu0 %v3189
          %v3191 = vand.u32 %v2545, 4294901760
          %v3192 = vsub.f32 %v2545, %v3191
          %v3193 = vand.u32 %v3192, 4294901760
          %3194 = vmatpush.msra.mxu0 %v3193
          %v3195 = vand.u32 %v2544, 4294901760
          %v3196 = vsub.f32 %v2544, %v3195
          %v3197 = vand.u32 %v3196, 4294901760
          %3198 = vmatpush.msra.mxu0 %v3197
          %v3199 = vand.u32 %v2543, 4294901760
          %v3200 = vsub.f32 %v2543, %v3199
          %v3201 = vand.u32 %v3200, 4294901760
          %3202 = vmatpush.msra.mxu0 %v3201
          %v3203 = vand.u32 %v2527, 4294901760
          %3204 = vmatmul.f32.gmra.mxu0 %v3203
          %v3205 = vpop.f32.mrf.mxu0
          %v3206 = vadd.f32 %v3047, %v3205
          %v3207 = vand.u32 %v2528, 4294901760
          %3208 = vmatmul.f32.gmra.mxu0 %v3207
          %v3209 = vpop.f32.mrf.mxu0
          %v3210 = vadd.f32 %v3053, %v3209
          %v3211 = vand.u32 %v2529, 4294901760
          %3212 = vmatmul.f32.gmra.mxu0 %v3211
          %v3213 = vpop.f32.mrf.mxu0
          %v3214 = vadd.f32 %v3059, %v3213
          %v3215 = vand.u32 %v2530, 4294901760
          %3216 = vmatmul.f32.gmra.mxu0 %v3215
          %v3217 = vpop.f32.mrf.mxu0
          %v3218 = vadd.f32 %v3065, %v3217
          %v3219 = vand.u32 %v2531, 4294901760
          %3220 = vmatmul.f32.gmra.mxu0 %v3219
          %v3221 = vpop.f32.mrf.mxu0
          %v3222 = vadd.f32 %v3071, %v3221
          %v3223 = vand.u32 %v2532, 4294901760
          %3224 = vmatmul.f32.gmra.mxu0 %v3223
          %v3225 = vpop.f32.mrf.mxu0
          %v3226 = vadd.f32 %v3077, %v3225
          %v3227 = vand.u32 %v2533, 4294901760
          %3228 = vmatmul.f32.gmra.mxu0 %v3227
          %v3229 = vpop.f32.mrf.mxu0
          %v3230 = vadd.f32 %v3083, %v3229
          %v3231 = vand.u32 %v2534, 4294901760
          %3232 = vmatmul.f32.gmra.mxu0 %v3231
          %v3233 = vpop.f32.mrf.mxu0
          %v3234 = vadd.f32 %v3089, %v3233
          %v3235 = vand.u32 %v2535, 4294901760
          %3236 = vmatmul.f32.gmra.mxu0 %v3235
          %v3237 = vpop.f32.mrf.mxu0
          %v3238 = vadd.f32 %v3095, %v3237
          %v3239 = vand.u32 %v2536, 4294901760
          %3240 = vmatmul.f32.gmra.mxu0 %v3239
          %v3241 = vpop.f32.mrf.mxu0
          %v3242 = vadd.f32 %v3101, %v3241
          %v3243 = vand.u32 %v2537, 4294901760
          %3244 = vmatmul.f32.gmra.mxu0 %v3243
          %v3245 = vpop.f32.mrf.mxu0
          %v3246 = vadd.f32 %v3107, %v3245
          %v3247 = vand.u32 %v2538, 4294901760
          %3248 = vmatmul.f32.gmra.mxu0 %v3247
          %v3249 = vpop.f32.mrf.mxu0
          %v3250 = vadd.f32 %v3113, %v3249
          %v3251 = vand.u32 %v2539, 4294901760
          %3252 = vmatmul.f32.gmra.mxu0 %v3251
          %v3253 = vpop.f32.mrf.mxu0
          %v3254 = vadd.f32 %v3119, %v3253
          %v3255 = vand.u32 %v2540, 4294901760
          %3256 = vmatmul.f32.gmra.mxu0 %v3255
          %v3257 = vpop.f32.mrf.mxu0
          %v3258 = vadd.f32 %v3125, %v3257
          %v3259 = vand.u32 %v2541, 4294901760
          %3260 = vmatmul.f32.gmra.mxu0 %v3259
          %v3261 = vpop.f32.mrf.mxu0
          %v3262 = vadd.f32 %v3131, %v3261
          %v3263 = vand.u32 %v2542, 4294901760
          %3264 = vmatmul.f32.gmra.mxu0 %v3263
          %v3265 = vpop.f32.mrf.mxu0
          %v3266 = vadd.f32 %v3137, %v3265
          %3267 = vdwg.mxu0
          %v3268 = vand.u32 %v2558, 4294901760
          %3269 = vmatpush.msra.mxu0 %v3268
          %v3270 = vand.u32 %v2557, 4294901760
          %3271 = vmatpush.msra.mxu0 %v3270
          %v3272 = vand.u32 %v2556, 4294901760
          %3273 = vmatpush.msra.mxu0 %v3272
          %v3274 = vand.u32 %v2555, 4294901760
          %3275 = vmatpush.msra.mxu0 %v3274
          %v3276 = vand.u32 %v2554, 4294901760
          %3277 = vmatpush.msra.mxu0 %v3276
          %v3278 = vand.u32 %v2553, 4294901760
          %3279 = vmatpush.msra.mxu0 %v3278
          %v3280 = vand.u32 %v2552, 4294901760
          %3281 = vmatpush.msra.mxu0 %v3280
          %v3282 = vand.u32 %v2551, 4294901760
          %3283 = vmatpush.msra.mxu0 %v3282
          %v3284 = vand.u32 %v2550, 4294901760
          %3285 = vmatpush.msra.mxu0 %v3284
          %v3286 = vand.u32 %v2549, 4294901760
          %3287 = vmatpush.msra.mxu0 %v3286
          %v3288 = vand.u32 %v2548, 4294901760
          %3289 = vmatpush.msra.mxu0 %v3288
          %v3290 = vand.u32 %v2547, 4294901760
          %3291 = vmatpush.msra.mxu0 %v3290
          %v3292 = vand.u32 %v2546, 4294901760
          %3293 = vmatpush.msra.mxu0 %v3292
          %v3294 = vand.u32 %v2545, 4294901760
          %3295 = vmatpush.msra.mxu0 %v3294
          %v3296 = vand.u32 %v2544, 4294901760
          %3297 = vmatpush.msra.mxu0 %v3296
          %v3298 = vand.u32 %v2543, 4294901760
          %3299 = vmatpush.msra.mxu0 %v3298
          %v3300 = vand.u32 %v2527, 4294901760
          %3301 = vmatmul.f32.gmra.mxu0 %v3300
          %v3302 = vpop.f32.mrf.mxu0
          %v3303 = vadd.f32 %v3206, %v3302
          %v3304 = vand.u32 %v2528, 4294901760
          %3305 = vmatmul.f32.gmra.mxu0 %v3304
          %v3306 = vpop.f32.mrf.mxu0
          %v3307 = vadd.f32 %v3210, %v3306
          %v3308 = vand.u32 %v2529, 4294901760
          %3309 = vmatmul.f32.gmra.mxu0 %v3308
          %v3310 = vpop.f32.mrf.mxu0
          %v3311 = vadd.f32 %v3214, %v3310
          %v3312 = vand.u32 %v2530, 4294901760
          %3313 = vmatmul.f32.gmra.mxu0 %v3312
          %v3314 = vpop.f32.mrf.mxu0
          %v3315 = vadd.f32 %v3218, %v3314
          %v3316 = vand.u32 %v2531, 4294901760
          %3317 = vmatmul.f32.gmra.mxu0 %v3316
          %v3318 = vpop.f32.mrf.mxu0
          %v3319 = vadd.f32 %v3222, %v3318
          %v3320 = vand.u32 %v2532, 4294901760
          %3321 = vmatmul.f32.gmra.mxu0 %v3320
          %v3322 = vpop.f32.mrf.mxu0
          %v3323 = vadd.f32 %v3226, %v3322
          %v3324 = vand.u32 %v2533, 4294901760
          %3325 = vmatmul.f32.gmra.mxu0 %v3324
          %v3326 = vpop.f32.mrf.mxu0
          %v3327 = vadd.f32 %v3230, %v3326
          %v3328 = vand.u32 %v2534, 4294901760
          %3329 = vmatmul.f32.gmra.mxu0 %v3328
          %v3330 = vpop.f32.mrf.mxu0
          %v3331 = vadd.f32 %v3234, %v3330
          %v3332 = vand.u32 %v2535, 4294901760
          %3333 = vmatmul.f32.gmra.mxu0 %v3332
          %v3334 = vpop.f32.mrf.mxu0
          %v3335 = vadd.f32 %v3238, %v3334
          %v3336 = vand.u32 %v2536, 4294901760
          %3337 = vmatmul.f32.gmra.mxu0 %v3336
          %v3338 = vpop.f32.mrf.mxu0
          %v3339 = vadd.f32 %v3242, %v3338
          %v3340 = vand.u32 %v2537, 4294901760
          %3341 = vmatmul.f32.gmra.mxu0 %v3340
          %v3342 = vpop.f32.mrf.mxu0
          %v3343 = vadd.f32 %v3246, %v3342
          %v3344 = vand.u32 %v2538, 4294901760
          %3345 = vmatmul.f32.gmra.mxu0 %v3344
          %v3346 = vpop.f32.mrf.mxu0
          %v3347 = vadd.f32 %v3250, %v3346
          %v3348 = vand.u32 %v2539, 4294901760
          %3349 = vmatmul.f32.gmra.mxu0 %v3348
          %v3350 = vpop.f32.mrf.mxu0
          %v3351 = vadd.f32 %v3254, %v3350
          %v3352 = vand.u32 %v2540, 4294901760
          %3353 = vmatmul.f32.gmra.mxu0 %v3352
          %v3354 = vpop.f32.mrf.mxu0
          %v3355 = vadd.f32 %v3258, %v3354
          %v3356 = vand.u32 %v2541, 4294901760
          %3357 = vmatmul.f32.gmra.mxu0 %v3356
          %v3358 = vpop.f32.mrf.mxu0
          %v3359 = vadd.f32 %v3262, %v3358
          %v3360 = vand.u32 %v2542, 4294901760
          %3361 = vmatmul.f32.gmra.mxu0 %v3360
          %v3362 = vpop.f32.mrf.mxu0
          %v3363 = vadd.f32 %v3266, %v3362
          %3364 = vdwg.mxu0
          %v3365 = vtanh.pop %v3303
          %v3366 = vtanh.pop %v3307
          %v3367 = vtanh.pop %v3311
          %v3368 = vtanh.pop %v3315
          %v3369 = vtanh.pop %v3319
          %v3370 = vtanh.pop %v3323
          %v3371 = vtanh.pop %v3327
          %v3372 = vtanh.pop %v3331
          %v3373 = vtanh.pop %v3335
          %v3374 = vtanh.pop %v3339
          %v3375 = vtanh.pop %v3343
          %v3376 = vtanh.pop %v3347
          %v3377 = vtanh.pop %v3351
          %v3378 = vtanh.pop %v3355
          %v3379 = vtanh.pop %v3359
          %v3380 = vtanh.pop %v3363
          %3381 = vst [vmem:[%s395] sm:$0xff] %v3365
          %3382 = vst [vmem:[%s395 + $0x8] sm:$0xff] %v3366
          %3383 = vst [vmem:[%s395 + $0x10] sm:$0xff] %v3367
          %3384 = vst [vmem:[%s395 + $0x18] sm:$0xff] %v3368
          %3385 = vst [vmem:[%s395 + $0x20] sm:$0xff] %v3369
          %3386 = vst [vmem:[%s395 + $0x28] sm:$0xff] %v3370
          %3387 = vst [vmem:[%s395 + $0x30] sm:$0xff] %v3371
          %3388 = vst [vmem:[%s395 + $0x38] sm:$0xff] %v3372
          %3389 = vst [vmem:[%s395 + $0x40] sm:$0xff] %v3373
          %3390 = vst [vmem:[%s395 + $0x48] sm:$0xff] %v3374
          %3391 = vst [vmem:[%s395 + $0x50] sm:$0xff] %v3375
          %3392 = vst [vmem:[%s395 + $0x58] sm:$0xff] %v3376
          %3393 = vst [vmem:[%s395 + $0x60] sm:$0xff] %v3377
          %3394 = vst [vmem:[%s395 + $0x68] sm:$0xff] %v3378
          %3395 = vst [vmem:[%s395 + $0x70] sm:$0xff] %v3379
          %3396 = vst [vmem:[%s395 + $0x78] sm:$0xff] %v3380
        $region90: #{gat_forward.2} parent=73 // pred_fallthru
          _
        %s3397 = smul.u32 16, %s20
        %p3398 = scmp.lt.s32.totalorder %s3397, 31
        %s3399 = scalar_select %p3398, %s3397, 31
        %s3400 = smul.addr %s3399, 8
        %s3401 = scalar_lea.vmem %s5, %s3400
        // Predicated region
        $region91: #{gat_forward.2} parent=73 // pred_check
          %p3402 = pneg %p173
        $region92: #{gat_forward.2} parent=73 // pred_check_branch
          %3404 = sbr.rel (%p3402) target = $region94
        $region93: #{gat_forward.2} parent=73 // pred_region
          %s3405 = smul.u32 16, %s20
        $region94: #{gat_forward.2} parent=73 // pred_fallthru
          _
      $region74: #{gat_forward.2} parent=5 // pred_fallthru
        _
      %p3406 = scmp.le.s32.totalorder 2, %s11
      // Predicated region
      $region95: #{gat_forward.2} parent=5 // pred_check
        %p3407 = pneg %p3406
      $region96: #{gat_forward.2} parent=5 // pred_check_branch
        %3409 = sbr.rel (%p3407) target = $region98
      $region97: #{gat_forward.2} parent=5 // pred_region
        %s3410 = ssub.s32 %s11, 2
        // Predicated region
        $region99: #{gat_forward.2} parent=97 // pred_check
          %p3411 = pneg %p179
        $region100: #{gat_forward.2} parent=97 // pred_check_branch
          %3413 = sbr.rel (%p3411) target = $region102
        $region101: #{gat_forward.2} parent=97 // pred_region
          %s3414 = smul.u32 16, %s22
          %p3415 = scmp.lt.s32.totalorder %s3414, 31
          %s3416 = scalar_select %p3415, %s3414, 31
          %s3417 = smul.addr %s3416, 8
          %s3418 = scalar_lea.vmem %s5, %s3417
        $region102: #{gat_forward.2} parent=97 // pred_fallthru
          _
      $region98: #{gat_forward.2} parent=5 // pred_fallthru
        _
    $region6: #{gat_forward.2} parent=1 // loop_footer
      %s15 = sadd.s32 1, %s11
    $region7: #{gat_forward.2} parent=1 // loop_footer_branch
      %10 = sbr.rel target = $region3
    $region8: #{gat_forward.2} parent=1 // loop_exit
      _

</llo_original>
